<compile_context>
chip_gen: v5e
topology: v5e:2x2
jax: 0.10.0
libtpu: 0.0.40
codegen_flags: <defaults>
</compile_context>

<pallas_src>
import jax
import jax.numpy as jnp
from jax import lax
from jax.experimental import pallas as pl
from jax.experimental.pallas import tpu as pltpu


# ---------------------------------------------------------------------------
# Pallas kernel: fused (mean-aggregate -> W @ agg.T -> tanh) for both branches.
# ---------------------------------------------------------------------------
def _layer_encoder_kernel(wb_ref, wu_ref, feat_ref, rows_p_ref, rows_n_ref,
                          ob_ref, ou_ref):
    # wb_ref / wu_ref   : [E, F]   (embed_dim, feat_dim)     -- resident
    # feat_ref          : [V, F]   (all node features)       -- resident
    # rows_p_ref/_n_ref : [TN, V]  (adjacency rows, {0,1})    -- tiled over N
    # ob_ref / ou_ref   : [E, TN]  (lane-dense output tiles)
    feats = feat_ref[...]
    w_bal = wb_ref[...]
    w_unbal = wu_ref[...]

    def aggregate(rows):
        # mean over neighbors: (rows @ feats) / degree   -> [TN, F]
        deg = jnp.maximum(jnp.sum(rows, axis=1, keepdims=True), 1.0)
        agg = jnp.dot(rows, feats, preferred_element_type=jnp.float32)
        return agg * pl.reciprocal(deg, approx=False)

    agg_p = aggregate(rows_p_ref[...])
    agg_n = aggregate(rows_n_ref[...])

    # Contract last dim of both operands: [E,F] x [TN,F] -> [E,TN].
    # (No explicit .T -> no XLU relayout / VMEM copy.)
    dn = (((1,), (1,)), ((), ()))
    ob_ref[...] = jnp.tanh(
        lax.dot_general(w_bal, agg_p, dn, preferred_element_type=jnp.float32)
    ).astype(ob_ref.dtype)
    ou_ref[...] = jnp.tanh(
        lax.dot_general(w_unbal, agg_n, dn, preferred_element_type=jnp.float32)
    ).astype(ou_ref.dtype)


def layer_encoder_forward(weight_bal, weight_unbal, node_features,
                          adj_pos_rows, adj_neg_rows, *, node_tile=256):
    """Fused LayerEncoder forward.

    weight_bal, weight_unbal : [embed_dim, feat_dim]
    node_features            : [V, feat_dim]
    adj_pos_rows/adj_neg_rows: [N, V] dense 0/1 adjacency rows for the batch
    returns (mapped_bal, mapped_unbal), each [embed_dim, N]
    """
    E, F = weight_bal.shape
    V, Ff = node_features.shape
    N, Vr = adj_pos_rows.shape
    assert F == Ff and V == Vr and adj_neg_rows.shape == (N, V)

    # Pad the node batch to a multiple of the tile (padded rows have zero
    # degree -> harmless; padded outputs sliced off below).
    n_pad = (-N) % node_tile
    if n_pad:
        adj_pos_rows = jnp.pad(adj_pos_rows, ((0, n_pad), (0, 0)))
        adj_neg_rows = jnp.pad(adj_neg_rows, ((0, n_pad), (0, 0)))
    n_padded = N + n_pad
    grid = (n_padded // node_tile,)

    out_shape = (
        jax.ShapeDtypeStruct((E, n_padded), jnp.float32),
        jax.ShapeDtypeStruct((E, n_padded), jnp.float32),
    )

    ob, ou = pl.pallas_call(
        _layer_encoder_kernel,
        out_shape=out_shape,
        grid=grid,
        in_specs=[
            pl.BlockSpec((E, F), lambda i: (0, 0)),          # W_bal   (resident)
            pl.BlockSpec((E, F), lambda i: (0, 0)),          # W_unbal (resident)
            pl.BlockSpec((V, F), lambda i: (0, 0)),          # node feats (resident)
            pl.BlockSpec((node_tile, V), lambda i: (i, 0)),  # pos adj rows (tiled)
            pl.BlockSpec((node_tile, V), lambda i: (i, 0)),  # neg adj rows (tiled)
        ],
        out_specs=(
            pl.BlockSpec((E, node_tile), lambda i: (0, i)),  # lane-dense [E, TN]
            pl.BlockSpec((E, node_tile), lambda i: (0, i)),
        ),
        compiler_params=pltpu.CompilerParams(
            dimension_semantics=("parallel",),               # node axis -> megacore split
        ),
    )(weight_bal, weight_unbal, node_features, adj_pos_rows, adj_neg_rows)

    return ob[:, :N], ou[:, :N]


# ---------------------------------------------------------------------------
# Glue: deterministic parameter init (xavier_uniform_) matching __init__.
# ---------------------------------------------------------------------------
def xavier_uniform(key, shape):
    fan_out, fan_in = shape  # torch.FloatTensor(embed_dim, feat_dim)
    bound = (6.0 / (fan_in + fan_out)) ** 0.5
    return jax.random.uniform(key, shape, jnp.float32, -bound, bound)


if __name__ == "__main__":
    key = jax.random.PRNGKey(0)
    k_wb, k_wu, k_feat, k_adjp, k_adjn = jax.random.split(key, 5)

    num_total_nodes = 512   # V: graph size
    feat_dim = 64
    embed_dim = 64
    batch_nodes = 512       # N: node batch (tiled 256 per grid step)

    # Parameters (deterministic init, matches __init__ shapes).
    weight_bal = xavier_uniform(k_wb, (embed_dim, feat_dim))
    weight_unbal = xavier_uniform(k_wu, (embed_dim, feat_dim))

    # Synthetic graph + raw node features.
    node_features = jax.random.normal(
        k_feat, (num_total_nodes, feat_dim), jnp.float32)
    adj_pos = (jax.random.uniform(
        k_adjp, (num_total_nodes, num_total_nodes)) > 0.9).astype(jnp.float32)
    adj_neg = (jax.random.uniform(
        k_adjn, (num_total_nodes, num_total_nodes)) > 0.9).astype(jnp.float32)

    # Batch of nodes; gather their adjacency rows (aggregator's neighbor lookup).
    # TODO(synk): SGCN's random num_sample neighbor subsampling is Python-set
    # logic with no static Pallas expression; full-neighborhood mean is used.
    nodes = jnp.arange(batch_nodes, dtype=jnp.int32)
    rows_pos = adj_pos[nodes]   # [N, V]
    rows_neg = adj_neg[nodes]   # [N, V]

    # Fused Pallas kernel: mean-aggregate + tanh(W @ agg.T), both branches.
    mapped_bal, mapped_unbal = layer_encoder_forward(
        weight_bal, weight_unbal, node_features, rows_pos, rows_neg,
        node_tile=256,
    )
    jax.block_until_ready((mapped_bal, mapped_unbal))

    # Reference check in plain JAX.
    def ref_branch(rows, w):
        deg = jnp.maximum(rows.sum(axis=1, keepdims=True), 1.0)
        agg = (rows @ node_features) / deg
        return jnp.tanh(w @ agg.T)

    ref_bal = ref_branch(rows_pos, weight_bal)
    ref_unbal = ref_branch(rows_neg, weight_unbal)

    assert mapped_bal.shape == (embed_dim, batch_nodes)
    assert mapped_unbal.shape == (embed_dim, batch_nodes)
    assert jnp.allclose(mapped_bal, ref_bal, atol=2e-3, rtol=2e-3)
    assert jnp.allclose(mapped_unbal, ref_unbal, atol=2e-3, rtol=2e-3)

    print("KERNEL_OK")
</pallas_src>

<mosaic_0001>
module attributes {stable_mosaic.version = 11 : i64} {
  func.func @_layer_encoder_kernel(%arg0: i32, %arg1: memref<64x64xf32, #tpu.memory_space<vmem>>, %arg2: memref<64x64xf32, #tpu.memory_space<vmem>>, %arg3: memref<512x64xf32, #tpu.memory_space<vmem>>, %arg4: memref<256x512xf32, #tpu.memory_space<vmem>>, %arg5: memref<256x512xf32, #tpu.memory_space<vmem>>, %arg6: memref<64x256xf32, #tpu.memory_space<vmem>>, %arg7: memref<64x256xf32, #tpu.memory_space<vmem>>) attributes {dimension_semantics = [#tpu.dimension_semantics<parallel>], iteration_bounds = array<i64: 2>, scalar_prefetch = 0 : i64, scratch_operands = 0 : i64, tpu.core_type = #tpu.core_type<tc>, window_params = [{pipeline_mode = #tpu.pipeline_mode<synchronous>, transform_indices = @transform_0, window_bounds = array<i64: 64, 64>}, {pipeline_mode = #tpu.pipeline_mode<synchronous>, transform_indices = @transform_1, window_bounds = array<i64: 64, 64>}, {pipeline_mode = #tpu.pipeline_mode<synchronous>, transform_indices = @transform_2, window_bounds = array<i64: 512, 64>}, {transform_indices = @transform_3, window_bounds = array<i64: 256, 512>}, {transform_indices = @transform_4, window_bounds = array<i64: 256, 512>}, {transform_indices = @transform_5, window_bounds = array<i64: 64, 256>}, {transform_indices = @transform_6, window_bounds = array<i64: 64, 256>}]} {
    %c0 = arith.constant 0 : index
    %c0_0 = arith.constant 0 : index
    %0 = vector.load %arg3[%c0, %c0_0] : memref<512x64xf32, #tpu.memory_space<vmem>>, vector<512x64xf32>
    %c0_1 = arith.constant 0 : index
    %c0_2 = arith.constant 0 : index
    %1 = vector.load %arg1[%c0_1, %c0_2] : memref<64x64xf32, #tpu.memory_space<vmem>>, vector<64x64xf32>
    %c0_3 = arith.constant 0 : index
    %c0_4 = arith.constant 0 : index
    %2 = vector.load %arg2[%c0_3, %c0_4] : memref<64x64xf32, #tpu.memory_space<vmem>>, vector<64x64xf32>
    %c0_5 = arith.constant 0 : index
    %c0_6 = arith.constant 0 : index
    %3 = vector.load %arg4[%c0_5, %c0_6] : memref<256x512xf32, #tpu.memory_space<vmem>>, vector<256x512xf32>
    %cst = arith.constant dense<0.000000e+00> : vector<256xf32>
    %4 = vector.multi_reduction <add>, %3, %cst [1] : vector<256x512xf32> to vector<256xf32>
    %5 = vector.shape_cast %4 : vector<256xf32> to vector<256x1xf32>
    %cst_7 = arith.constant 1.000000e+00 : f32
    %6 = vector.broadcast %cst_7 : f32 to vector<256x1xf32>
    %7 = arith.maximumf %5, %6 : vector<256x1xf32>
    %cst_8 = arith.constant dense<0.000000e+00> : vector<256x64xf32>
    %8 = tpu.matmul %3, %0, %cst_8 {dimension_numbers = #tpu.dot_dimension_numbers<[1], [0], [0], [1], [0, 0, 1, 1], [], []>} : vector<256x512xf32>, vector<512x64xf32>, vector<256x64xf32> -> vector<256x64xf32>
    %9 = tpu.reciprocal %7 : vector<256x1xf32> -> vector<256x1xf32>
    %10 = vector.broadcast %9 : vector<256x1xf32> to vector<256x64xf32>
    %11 = arith.mulf %8, %10 : vector<256x64xf32>
    %c0_9 = arith.constant 0 : index
    %c0_10 = arith.constant 0 : index
    %12 = vector.load %arg5[%c0_9, %c0_10] : memref<256x512xf32, #tpu.memory_space<vmem>>, vector<256x512xf32>
    %cst_11 = arith.constant dense<0.000000e+00> : vector<256xf32>
    %13 = vector.multi_reduction <add>, %12, %cst_11 [1] : vector<256x512xf32> to vector<256xf32>
    %14 = vector.shape_cast %13 : vector<256xf32> to vector<256x1xf32>
    %cst_12 = arith.constant 1.000000e+00 : f32
    %15 = vector.broadcast %cst_12 : f32 to vector<256x1xf32>
    %16 = arith.maximumf %14, %15 : vector<256x1xf32>
    %cst_13 = arith.constant dense<0.000000e+00> : vector<256x64xf32>
    %17 = tpu.matmul %12, %0, %cst_13 {dimension_numbers = #tpu.dot_dimension_numbers<[1], [0], [0], [1], [0, 0, 1, 1], [], []>} : vector<256x512xf32>, vector<512x64xf32>, vector<256x64xf32> -> vector<256x64xf32>
    %18 = tpu.reciprocal %16 : vector<256x1xf32> -> vector<256x1xf32>
    %19 = vector.broadcast %18 : vector<256x1xf32> to vector<256x64xf32>
    %20 = arith.mulf %17, %19 : vector<256x64xf32>
    %cst_14 = arith.constant dense<0.000000e+00> : vector<64x256xf32>
    %21 = tpu.matmul %1, %11, %cst_14 {dimension_numbers = #tpu.dot_dimension_numbers<[1], [1], [0], [0], [0, 0, 1, 0], [], []>} : vector<64x64xf32>, vector<256x64xf32>, vector<64x256xf32> -> vector<64x256xf32>
    %22 = math.tanh %21 : vector<64x256xf32>
    %c0_15 = arith.constant 0 : index
    %c0_16 = arith.constant 0 : index
    %23 = vector.load %arg6[%c0_15, %c0_16] : memref<64x256xf32, #tpu.memory_space<vmem>>, vector<64x256xf32>
    tpu.vector_store %arg6[%c0_15, %c0_16], %22 {strides = array<i32>} : memref<64x256xf32, #tpu.memory_space<vmem>>, vector<64x256xf32>,
    %cst_17 = arith.constant dense<0.000000e+00> : vector<64x256xf32>
    %24 = tpu.matmul %2, %20, %cst_17 {dimension_numbers = #tpu.dot_dimension_numbers<[1], [1], [0], [0], [0, 0, 1, 0], [], []>} : vector<64x64xf32>, vector<256x64xf32>, vector<64x256xf32> -> vector<64x256xf32>
    %25 = math.tanh %24 : vector<64x256xf32>
    %c0_18 = arith.constant 0 : index
    %c0_19 = arith.constant 0 : index
    %26 = vector.load %arg7[%c0_18, %c0_19] : memref<64x256xf32, #tpu.memory_space<vmem>>, vector<64x256xf32>
    tpu.vector_store %arg7[%c0_18, %c0_19], %25 {strides = array<i32>} : memref<64x256xf32, #tpu.memory_space<vmem>>, vector<64x256xf32>,
    return
  }
  func.func @transform_0(%arg0: i32) -> (i32, i32) {
    %c0_i32 = arith.constant 0 : i32
    %c0_i32_0 = arith.constant 0 : i32
    %c0_i32_1 = arith.constant 0 : i32
    return %c0_i32, %c0_i32_0 : i32, i32
  }
  func.func @transform_1(%arg0: i32) -> (i32, i32) {
    %c0_i32 = arith.constant 0 : i32
    %c0_i32_0 = arith.constant 0 : i32
    %c0_i32_1 = arith.constant 0 : i32
    return %c0_i32, %c0_i32_0 : i32, i32
  }
  func.func @transform_2(%arg0: i32) -> (i32, i32) {
    %c0_i32 = arith.constant 0 : i32
    %c0_i32_0 = arith.constant 0 : i32
    %c0_i32_1 = arith.constant 0 : i32
    return %c0_i32, %c0_i32_0 : i32, i32
  }
  func.func @transform_3(%arg0: i32) -> (i32, i32) {
    %c0_i32 = arith.constant 0 : i32
    %c0_i32_0 = arith.constant 0 : i32
    return %arg0, %c0_i32 : i32, i32
  }
  func.func @transform_4(%arg0: i32) -> (i32, i32) {
    %c0_i32 = arith.constant 0 : i32
    %c0_i32_0 = arith.constant 0 : i32
    return %arg0, %c0_i32 : i32, i32
  }
  func.func @transform_5(%arg0: i32) -> (i32, i32) {
    %c0_i32 = arith.constant 0 : i32
    %c0_i32_0 = arith.constant 0 : i32
    return %c0_i32, %arg0 : i32, i32
  }
  func.func @transform_6(%arg0: i32) -> (i32, i32) {
    %c0_i32 = arith.constant 0 : i32
    %c0_i32_0 = arith.constant 0 : i32
    return %c0_i32, %arg0 : i32, i32
  }
}

</mosaic_0001>

<llo_original>
// kernel: tpu_custom_call.1
$region0: #{tpu_custom_call.1}
  #allocation0 [shape = 'u32[]', space=smem, size = 0x4, offset = 0x4, fixed_abs, tag = 'smem constant byte address 0x4 - core index']
  #allocation1 [shape = 'u32[72,128]{1,0:T(1,128)}', space=vmem, size = 0x9000, scoped, tag = 'internal scratch']
  %s0 = inlined_call_operand.vmem [shape: f32[64,64], index: 0, kind: input, shape index: {}]
  %s1 = inlined_call_operand.vmem [shape: f32[64,64], index: 1, kind: input, shape index: {}]
  %s2 = inlined_call_operand.vmem [shape: f32[512,64], index: 2, kind: input, shape index: {}]
  %s3 = inlined_call_operand.hbm [shape: f32[512,512], index: 3, kind: input, shape index: {}]
  %s4 = inlined_call_operand.hbm [shape: f32[512,512], index: 4, kind: input, shape index: {}]
  %s5 = inlined_call_operand.hbm [shape: f32[64,512], index: 5, kind: output, shape index: {0}]
  %s6 = inlined_call_operand.hbm [shape: f32[64,512], index: 6, kind: output, shape index: {1}]
  %7 = xla_tuple %s5, %s6
  %s8 = sld [smem:[#allocation0]]
  $region69: #{tpu_custom_call.1} parent=0
    _
  %s10 = ssub.s32 1, %s8
  %s11 = scalar_select 0, %s10, %s8
  $region1: #{tpu_custom_call.1} parent=0
    #allocation2 [shape = 'u8[1048576]{0}', space=vmem, size = 0x100000, scoped, tag = 'input window, operand 3']
    #allocation3 [shape = 's32[2]{0}', space=sflag, size = 0x8, scoped, tag = 'scoped memory for tpu_custom_call.1']
    #allocation4 [shape = 's32[2]{0}', space=sflag, size = 0x8, scoped, tag = 'scoped memory for tpu_custom_call.1']
    #allocation5 [shape = 'u8[1048576]{0}', space=vmem, size = 0x100000, scoped, tag = 'input window, operand 4']
    #allocation6 [shape = 's32[2]{0}', space=sflag, size = 0x8, scoped, tag = 'scoped memory for tpu_custom_call.1']
    #allocation7 [shape = 'u8[131072]{0}', space=vmem, size = 0x20000, scoped, tag = 'output window, operand 0']
    #allocation8 [shape = 'u8[131072]{0}', space=vmem, size = 0x20000, scoped, tag = 'output window, operand 1']
    #allocation9 [shape = 's32[2]{0}', space=sflag, size = 0x8, scoped, tag = 'scoped memory for tpu_custom_call.1']
    %12 = vsyncpa [#allocation3], 0
    %s13 = scalar_lea.sflag [#allocation3], 1
    %14 = vsyncpa %s13, 0
    %15 = vsyncpa [#allocation6], 0
    %s16 = scalar_lea.sflag [#allocation6], 1
    %17 = vsyncpa %s16, 0
    %18 = vsyncpa [#allocation4], 0
    %s19 = scalar_lea.sflag [#allocation4], 1
    %20 = vsyncpa %s19, 0
    %21 = vsyncpa [#allocation9], 0
    %s22 = scalar_lea.sflag [#allocation9], 1
    %23 = vsyncpa %s22, 0
    loop: start=0, step=1, limit=4
    $region2: #{tpu_custom_call.1} parent=1 // loop_pre_header
      _
    $region3: #{tpu_custom_call.1} parent=1 // loop_header
      %s25 = sphi 0, %s29
      %p26 = scmp.ge.s32.totalorder %s25, 4
      %s33 = sphi 0, %s33
      %s35 = sphi 0, %s33
      %s36 = sphi 0, %s35
      %s50 = sphi 0, %s36
      %s54 = sphi 0, %s54
      %s56 = sphi 0, %s54
      %s57 = sphi 0, %s56
      %s71 = sphi 0, %s57
      %s75 = sphi 0, %s75
      %s77 = sphi 0, %s75
      %s78 = sphi 0, %s77
      %s92 = sphi 0, %s78
      %s98 = sphi 0, %s100
      %s101 = sphi 0, %s98
      %s102 = sphi 0, %s101
      %s118 = sphi 0, %s102
      %s124 = sphi 0, %s126
      %s127 = sphi 0, %s124
      %s128 = sphi 0, %s127
      %s144 = sphi 0, %s128
      %s150 = sphi 0, %s152
      %s153 = sphi 0, %s150
      %s154 = sphi 0, %s153
      %s170 = sphi 0, %s154
      %s176 = sphi 0, %s178
      %s179 = sphi 0, %s176
      %s180 = sphi 0, %s179
      %s196 = sphi 0, %s180
    $region4: #{tpu_custom_call.1} parent=1 // loop_header_branch
      %28 = sbr.rel (%p26) target = $region8
    $region5: #{tpu_custom_call.1} parent=1 // loop_body
      %s30 = ssub.s32 %s25, 1
      %s31 = ssub.s32 %s25, 2
      %s32 = sadd.s32 %s25, 1
      %s34 = sadd.s32 %s33, 1
      %p37 = scmp.eq.s32.totalorder %s25, 1
      %p38 = scmp.ne.s32.totalorder %s33, %s35
      %p39 = scmp.eq.s32.totalorder %s25, 0
      %p40 = por %p38, %p39
      %p41 = scmp.ne.s32.totalorder %s33, %s35
      %p42 = scmp.eq.s32.totalorder %s30, 1
      %p43 = por %p41, %p42
      %p44 = scmp.ne.s32.totalorder %s35, %s36
      %p45 = scmp.eq.s32.totalorder %s30, 0
      %p46 = por %p44, %p45
      %p47 = scmp.ne.s32.totalorder %s35, %s36
      %p48 = scmp.eq.s32.totalorder %s31, 1
      %p49 = por %p47, %p48
      %p51 = scmp.ne.s32.totalorder %s36, %s50
      %p52 = scmp.eq.s32.totalorder %s31, 0
      %p53 = por %p51, %p52
      %s55 = sadd.s32 %s54, 1
      %p58 = scmp.eq.s32.totalorder %s25, 1
      %p59 = scmp.ne.s32.totalorder %s54, %s56
      %p60 = scmp.eq.s32.totalorder %s25, 0
      %p61 = por %p59, %p60
      %p62 = scmp.ne.s32.totalorder %s54, %s56
      %p63 = scmp.eq.s32.totalorder %s30, 1
      %p64 = por %p62, %p63
      %p65 = scmp.ne.s32.totalorder %s56, %s57
      %p66 = scmp.eq.s32.totalorder %s30, 0
      %p67 = por %p65, %p66
      %p68 = scmp.ne.s32.totalorder %s56, %s57
      %p69 = scmp.eq.s32.totalorder %s31, 1
      %p70 = por %p68, %p69
      %p72 = scmp.ne.s32.totalorder %s57, %s71
      %p73 = scmp.eq.s32.totalorder %s31, 0
      %p74 = por %p72, %p73
      %s76 = sadd.s32 %s75, 1
      %p79 = scmp.eq.s32.totalorder %s25, 1
      %p80 = scmp.ne.s32.totalorder %s75, %s77
      %p81 = scmp.eq.s32.totalorder %s25, 0
      %p82 = por %p80, %p81
      %p83 = scmp.ne.s32.totalorder %s75, %s77
      %p84 = scmp.eq.s32.totalorder %s30, 1
      %p85 = por %p83, %p84
      %p86 = scmp.ne.s32.totalorder %s77, %s78
      %p87 = scmp.eq.s32.totalorder %s30, 0
      %p88 = por %p86, %p87
      %p89 = scmp.ne.s32.totalorder %s77, %s78
      %p90 = scmp.eq.s32.totalorder %s31, 1
      %p91 = por %p89, %p90
      %p93 = scmp.ne.s32.totalorder %s78, %s92
      %p94 = scmp.eq.s32.totalorder %s31, 0
      %p95 = por %p93, %p94
      %s96 = ssub.s32 %s25, %s32
      %p97 = scmp.eq.s32.totalorder %s96, 0
      %s99 = sadd.s32 %s98, 1
      %s100 = scalar_select %p97, %s98, %s99
      %p103 = pneg %p97
      %p104 = scmp.eq.s32.totalorder %s25, 1
      %p105 = por %p103, %p104
      %p106 = scmp.ne.s32.totalorder %s98, %s101
      %p107 = scmp.eq.s32.totalorder %s25, 0
      %p108 = por %p106, %p107
      %p109 = scmp.ne.s32.totalorder %s98, %s101
      %p110 = scmp.eq.s32.totalorder %s30, 1
      %p111 = por %p109, %p110
      %p112 = scmp.ne.s32.totalorder %s101, %s102
      %p113 = scmp.eq.s32.totalorder %s30, 0
      %p114 = por %p112, %p113
      %p115 = scmp.ne.s32.totalorder %s101, %s102
      %p116 = scmp.eq.s32.totalorder %s31, 1
      %p117 = por %p115, %p116
      %p119 = scmp.ne.s32.totalorder %s102, %s118
      %p120 = scmp.eq.s32.totalorder %s31, 0
      %p121 = por %p119, %p120
      %s122 = ssub.s32 %s25, %s32
      %p123 = scmp.eq.s32.totalorder %s122, 0
      %s125 = sadd.s32 %s124, 1
      %s126 = scalar_select %p123, %s124, %s125
      %p129 = pneg %p123
      %p130 = scmp.eq.s32.totalorder %s25, 1
      %p131 = por %p129, %p130
      %p132 = scmp.ne.s32.totalorder %s124, %s127
      %p133 = scmp.eq.s32.totalorder %s25, 0
      %p134 = por %p132, %p133
      %p135 = scmp.ne.s32.totalorder %s124, %s127
      %p136 = scmp.eq.s32.totalorder %s30, 1
      %p137 = por %p135, %p136
      %p138 = scmp.ne.s32.totalorder %s127, %s128
      %p139 = scmp.eq.s32.totalorder %s30, 0
      %p140 = por %p138, %p139
      %p141 = scmp.ne.s32.totalorder %s127, %s128
      %p142 = scmp.eq.s32.totalorder %s31, 1
      %p143 = por %p141, %p142
      %p145 = scmp.ne.s32.totalorder %s128, %s144
      %p146 = scmp.eq.s32.totalorder %s31, 0
      %p147 = por %p145, %p146
      %s148 = ssub.s32 %s25, %s32
      %p149 = scmp.eq.s32.totalorder %s148, 0
      %s151 = sadd.s32 %s150, 1
      %s152 = scalar_select %p149, %s150, %s151
      %p155 = pneg %p149
      %p156 = scmp.eq.s32.totalorder %s25, 1
      %p157 = por %p155, %p156
      %p158 = scmp.ne.s32.totalorder %s150, %s153
      %p159 = scmp.eq.s32.totalorder %s25, 0
      %p160 = por %p158, %p159
      %p161 = scmp.ne.s32.totalorder %s150, %s153
      %p162 = scmp.eq.s32.totalorder %s30, 1
      %p163 = por %p161, %p162
      %p164 = scmp.ne.s32.totalorder %s153, %s154
      %p165 = scmp.eq.s32.totalorder %s30, 0
      %p166 = por %p164, %p165
      %p167 = scmp.ne.s32.totalorder %s153, %s154
      %p168 = scmp.eq.s32.totalorder %s31, 1
      %p169 = por %p167, %p168
      %p171 = scmp.ne.s32.totalorder %s154, %s170
      %p172 = scmp.eq.s32.totalorder %s31, 0
      %p173 = por %p171, %p172
      %s174 = ssub.s32 %s25, %s32
      %p175 = scmp.eq.s32.totalorder %s174, 0
      %s177 = sadd.s32 %s176, 1
      %s178 = scalar_select %p175, %s176, %s177
      %p181 = pneg %p175
      %p182 = scmp.eq.s32.totalorder %s25, 1
      %p183 = por %p181, %p182
      %p184 = scmp.ne.s32.totalorder %s176, %s179
      %p185 = scmp.eq.s32.totalorder %s25, 0
      %p186 = por %p184, %p185
      %p187 = scmp.ne.s32.totalorder %s176, %s179
      %p188 = scmp.eq.s32.totalorder %s30, 1
      %p189 = por %p187, %p188
      %p190 = scmp.ne.s32.totalorder %s179, %s180
      %p191 = scmp.eq.s32.totalorder %s30, 0
      %p192 = por %p190, %p191
      %p193 = scmp.ne.s32.totalorder %s179, %s180
      %p194 = scmp.eq.s32.totalorder %s31, 1
      %p195 = por %p193, %p194
      %p197 = scmp.ne.s32.totalorder %s180, %s196
      %p198 = scmp.eq.s32.totalorder %s31, 0
      %p199 = por %p197, %p198
      %p200 = scmp.le.s32.totalorder 1, %s25
      %p201 = scmp.lt.s32.totalorder %s25, 3
      %p202 = pnand %p200, %p201
      %p203 = pneg %p202
      // Predicated region
      $region9: #{tpu_custom_call.1} parent=5 // pred_check
        _
      $region10: #{tpu_custom_call.1} parent=5 // pred_check_branch
        %205 = sbr.rel (%p202) target = $region12
      $region11: #{tpu_custom_call.1} parent=5 // pred_region
        %s206 = ssub.s32 %s25, 1
        // Predicated region
        $region13: #{tpu_custom_call.1} parent=11 // pred_check
          %p207 = pneg %p46
        $region14: #{tpu_custom_call.1} parent=11 // pred_check_branch
          %209 = sbr.rel (%p207) target = $region16
        $region15: #{tpu_custom_call.1} parent=11 // pred_region
          _
        $region16: #{tpu_custom_call.1} parent=11 // pred_fallthru
          _
        // Predicated region
        $region17: #{tpu_custom_call.1} parent=11 // pred_check
          %p210 = pneg %p67
        $region18: #{tpu_custom_call.1} parent=11 // pred_check_branch
          %212 = sbr.rel (%p210) target = $region20
        $region19: #{tpu_custom_call.1} parent=11 // pred_region
          _
        $region20: #{tpu_custom_call.1} parent=11 // pred_fallthru
          _
        // Predicated region
        $region21: #{tpu_custom_call.1} parent=11 // pred_check
          %p213 = pneg %p88
        $region22: #{tpu_custom_call.1} parent=11 // pred_check_branch
          %215 = sbr.rel (%p213) target = $region24
        $region23: #{tpu_custom_call.1} parent=11 // pred_region
          _
        $region24: #{tpu_custom_call.1} parent=11 // pred_fallthru
          _
      $region12: #{tpu_custom_call.1} parent=5 // pred_fallthru
        _
      %p216 = scmp.lt.s32.totalorder %s25, 2
      // Predicated region
      $region25: #{tpu_custom_call.1} parent=5 // pred_check
        %p217 = pneg %p216
      $region26: #{tpu_custom_call.1} parent=5 // pred_check_branch
        %219 = sbr.rel (%p217) target = $region28
      $region27: #{tpu_custom_call.1} parent=5 // pred_region
        // Predicated region
        $region29: #{tpu_custom_call.1} parent=27 // pred_check
          %p220 = pneg %p108
        $region30: #{tpu_custom_call.1} parent=27 // pred_check_branch
          %222 = sbr.rel (%p220) target = $region32
        $region31: #{tpu_custom_call.1} parent=27 // pred_region
          %s223 = sand.u32 %s98, 1
          %s224 = scalar_lea.sflag [#allocation3], %s223
          %s225 = sand.u32 %s98, 1
          %s226 = smul.addr %s225, 1024
          %s227 = scalar_lea.vmem [#allocation2], %s226
          %s228 = smul.u32 32, %s25
          %230 = vsyncadd %s224, 0
          %s231 = smul.addr %s228, 4
          %s232 = smul.addr %s231, 8
          %s233 = scalar_lea.hbm %s3, %s232
          %s234 = sshll.u32 %s233, 4
          %s235 = int_to_ptr.hbm [resolvable:$true] %s234
          %s236 = sshll.u32 %s227, 4
          %s237 = int_to_ptr.vmem [resolvable:$true] %s236
          %242 = dma.hbm_to_vmem [thread:$0]  %s235, 16384, %s237, %s224, 512, 512, 32
        $region32: #{tpu_custom_call.1} parent=27 // pred_fallthru
          _
        // Predicated region
        $region33: #{tpu_custom_call.1} parent=27 // pred_check
          %p243 = pneg %p134
        $region34: #{tpu_custom_call.1} parent=27 // pred_check_branch
          %245 = sbr.rel (%p243) target = $region36
        $region35: #{tpu_custom_call.1} parent=27 // pred_region
          %s246 = sand.u32 %s124, 1
          %s247 = scalar_lea.sflag [#allocation6], %s246
          %s248 = sand.u32 %s124, 1
          %s249 = smul.addr %s248, 1024
          %s250 = scalar_lea.vmem [#allocation5], %s249
          %s251 = smul.u32 32, %s25
          %253 = vsyncadd %s247, 0
          %s254 = smul.addr %s251, 4
          %s255 = smul.addr %s254, 8
          %s256 = scalar_lea.hbm %s4, %s255
          %s257 = sshll.u32 %s256, 4
          %s258 = int_to_ptr.hbm [resolvable:$true] %s257
          %s259 = sshll.u32 %s250, 4
          %s260 = int_to_ptr.vmem [resolvable:$true] %s259
          %265 = dma.hbm_to_vmem [thread:$0]  %s258, 16384, %s260, %s247, 512, 512, 32
        $region36: #{tpu_custom_call.1} parent=27 // pred_fallthru
          _
      $region28: #{tpu_custom_call.1} parent=5 // pred_fallthru
        _
      %p266 = scmp.le.s32.totalorder 1, %s25
      %p267 = scmp.lt.s32.totalorder %s25, 3
      %p268 = pnand %p266, %p267
      %p269 = pneg %p268
      // Predicated region
      $region37: #{tpu_custom_call.1} parent=5 // pred_check
        _
      $region38: #{tpu_custom_call.1} parent=5 // pred_check_branch
        %271 = sbr.rel (%p268) target = $region40
      $region39: #{tpu_custom_call.1} parent=5 // pred_region
        %s272 = ssub.s32 %s25, 1
        %s273 = sand.u32 %s101, 1
        %s274 = scalar_lea.sflag [#allocation3], %s273
        %s275 = sand.u32 %s101, 1
        %s276 = smul.addr %s275, 1024
        %s277 = scalar_lea.vmem [#allocation2], %s276
        // Predicated region
        $region41: #{tpu_custom_call.1} parent=39 // pred_check
          %p278 = pneg %p114
        $region42: #{tpu_custom_call.1} parent=39 // pred_check_branch
          %280 = sbr.rel (%p278) target = $region44
        $region43: #{tpu_custom_call.1} parent=39 // pred_region
          %282 = dma.done %s274, 16384
        $region44: #{tpu_custom_call.1} parent=39 // pred_fallthru
          _
        %s283 = sand.u32 %s127, 1
        %s284 = scalar_lea.sflag [#allocation6], %s283
        %s285 = sand.u32 %s127, 1
        %s286 = smul.addr %s285, 1024
        %s287 = scalar_lea.vmem [#allocation5], %s286
        // Predicated region
        $region45: #{tpu_custom_call.1} parent=39 // pred_check
          %p288 = pneg %p140
        $region46: #{tpu_custom_call.1} parent=39 // pred_check_branch
          %290 = sbr.rel (%p288) target = $region48
        $region47: #{tpu_custom_call.1} parent=39 // pred_region
          %292 = dma.done %s284, 16384
        $region48: #{tpu_custom_call.1} parent=39 // pred_fallthru
          _
        %p293 = pneg %p46
        %p294 = pneg %p43
        %p295 = pneg %p67
        %p296 = pneg %p64
        %p297 = pneg %p88
        %p298 = pneg %p85
        %s299 = sand.u32 %s101, 1
        %s300 = scalar_lea.sflag [#allocation3], %s299
        %s301 = sand.u32 %s101, 1
        %s302 = smul.addr %s301, 1024
        %s303 = scalar_lea.vmem [#allocation2], %s302
        %p304 = pneg %p114
        %p305 = pneg %p111
        %s306 = sand.u32 %s127, 1
        %s307 = scalar_lea.sflag [#allocation6], %s306
        %s308 = sand.u32 %s127, 1
        %s309 = smul.addr %s308, 1024
        %s310 = scalar_lea.vmem [#allocation5], %s309
        %p311 = pneg %p140
        %p312 = pneg %p137
        %p313 = pneg %p166
        %p314 = pneg %p163
        %s315 = sand.u32 %s153, 1
        %s316 = scalar_lea.sflag [#allocation4], %s315
        %s317 = sand.u32 %s153, 1
        %s318 = smul.addr %s317, 128
        %s319 = scalar_lea.vmem [#allocation7], %s318
        %p320 = pneg %p192
        %p321 = pneg %p189
        %s322 = sand.u32 %s179, 1
        %s323 = scalar_lea.sflag [#allocation9], %s322
        %s324 = sand.u32 %s179, 1
        %s325 = smul.addr %s324, 128
        %s326 = scalar_lea.vmem [#allocation8], %s325
        %s327 = smul.u32 32, %s30
        %s328 = smul.u32 32, %s30
        %s329 = smul.u32 2, %s30
        %s330 = smul.u32 2, %s30
        %v331 = vld [vmem:[%s2] sm:$0xff]
        %v332 = vld [vmem:[%s2 + $0x8] sm:$0xff]
        %v333 = vld [vmem:[%s2 + $0x10] sm:$0xff]
        %v334 = vld [vmem:[%s2 + $0x18] sm:$0xff]
        %v335 = vld [vmem:[%s2 + $0x20] sm:$0xff]
        %v336 = vld [vmem:[%s2 + $0x28] sm:$0xff]
        %v337 = vld [vmem:[%s2 + $0x30] sm:$0xff]
        %v338 = vld [vmem:[%s2 + $0x38] sm:$0xff]
        %v339 = vld [vmem:[%s2 + $0x40] sm:$0xff]
        %v340 = vld [vmem:[%s2 + $0x48] sm:$0xff]
        %v341 = vld [vmem:[%s2 + $0x50] sm:$0xff]
        %v342 = vld [vmem:[%s2 + $0x58] sm:$0xff]
        %v343 = vld [vmem:[%s2 + $0x60] sm:$0xff]
        %v344 = vld [vmem:[%s2 + $0x68] sm:$0xff]
        %v345 = vld [vmem:[%s2 + $0x70] sm:$0xff]
        %v346 = vld [vmem:[%s2 + $0x78] sm:$0xff]
        %v347 = vld [vmem:[%s2 + $0x80] sm:$0xff]
        %v348 = vld [vmem:[%s2 + $0x88] sm:$0xff]
        %v349 = vld [vmem:[%s2 + $0x90] sm:$0xff]
        %v350 = vld [vmem:[%s2 + $0x98] sm:$0xff]
        %v351 = vld [vmem:[%s2 + $0xa0] sm:$0xff]
        %v352 = vld [vmem:[%s2 + $0xa8] sm:$0xff]
        %v353 = vld [vmem:[%s2 + $0xb0] sm:$0xff]
        %v354 = vld [vmem:[%s2 + $0xb8] sm:$0xff]
        %v355 = vld [vmem:[%s2 + $0xc0] sm:$0xff]
        %v356 = vld [vmem:[%s2 + $0xc8] sm:$0xff]
        %v357 = vld [vmem:[%s2 + $0xd0] sm:$0xff]
        %v358 = vld [vmem:[%s2 + $0xd8] sm:$0xff]
        %v359 = vld [vmem:[%s2 + $0xe0] sm:$0xff]
        %v360 = vld [vmem:[%s2 + $0xe8] sm:$0xff]
        %v361 = vld [vmem:[%s2 + $0xf0] sm:$0xff]
        %v362 = vld [vmem:[%s2 + $0xf8] sm:$0xff]
        %v363 = vld [vmem:[%s2 + $0x100] sm:$0xff]
        %v364 = vld [vmem:[%s2 + $0x108] sm:$0xff]
        %v365 = vld [vmem:[%s2 + $0x110] sm:$0xff]
        %v366 = vld [vmem:[%s2 + $0x118] sm:$0xff]
        %v367 = vld [vmem:[%s2 + $0x120] sm:$0xff]
        %v368 = vld [vmem:[%s2 + $0x128] sm:$0xff]
        %v369 = vld [vmem:[%s2 + $0x130] sm:$0xff]
        %v370 = vld [vmem:[%s2 + $0x138] sm:$0xff]
        %v371 = vld [vmem:[%s2 + $0x140] sm:$0xff]
        %v372 = vld [vmem:[%s2 + $0x148] sm:$0xff]
        %v373 = vld [vmem:[%s2 + $0x150] sm:$0xff]
        %v374 = vld [vmem:[%s2 + $0x158] sm:$0xff]
        %v375 = vld [vmem:[%s2 + $0x160] sm:$0xff]
        %v376 = vld [vmem:[%s2 + $0x168] sm:$0xff]
        %v377 = vld [vmem:[%s2 + $0x170] sm:$0xff]
        %v378 = vld [vmem:[%s2 + $0x178] sm:$0xff]
        %v379 = vld [vmem:[%s2 + $0x180] sm:$0xff]
        %v380 = vld [vmem:[%s2 + $0x188] sm:$0xff]
        %v381 = vld [vmem:[%s2 + $0x190] sm:$0xff]
        %v382 = vld [vmem:[%s2 + $0x198] sm:$0xff]
        %v383 = vld [vmem:[%s2 + $0x1a0] sm:$0xff]
        %v384 = vld [vmem:[%s2 + $0x1a8] sm:$0xff]
        %v385 = vld [vmem:[%s2 + $0x1b0] sm:$0xff]
        %v386 = vld [vmem:[%s2 + $0x1b8] sm:$0xff]
        %v387 = vld [vmem:[%s2 + $0x1c0] sm:$0xff]
        %v388 = vld [vmem:[%s2 + $0x1c8] sm:$0xff]
        %v389 = vld [vmem:[%s2 + $0x1d0] sm:$0xff]
        %v390 = vld [vmem:[%s2 + $0x1d8] sm:$0xff]
        %v391 = vld [vmem:[%s2 + $0x1e0] sm:$0xff]
        %v392 = vld [vmem:[%s2 + $0x1e8] sm:$0xff]
        %v393 = vld [vmem:[%s2 + $0x1f0] sm:$0xff]
        %v394 = vld [vmem:[%s2 + $0x1f8] sm:$0xff]
        %v395 = vld [vmem:[%s0] sm:$0xff]
        %v396 = vld [vmem:[%s0 + $0x8] sm:$0xff]
        %v397 = vld [vmem:[%s0 + $0x10] sm:$0xff]
        %v398 = vld [vmem:[%s0 + $0x18] sm:$0xff]
        %v399 = vld [vmem:[%s0 + $0x20] sm:$0xff]
        %v400 = vld [vmem:[%s0 + $0x28] sm:$0xff]
        %v401 = vld [vmem:[%s0 + $0x30] sm:$0xff]
        %v402 = vld [vmem:[%s0 + $0x38] sm:$0xff]
        %v403 = vld [vmem:[%s1] sm:$0xff]
        %v404 = vld [vmem:[%s1 + $0x8] sm:$0xff]
        %v405 = vld [vmem:[%s1 + $0x10] sm:$0xff]
        %v406 = vld [vmem:[%s1 + $0x18] sm:$0xff]
        %v407 = vld [vmem:[%s1 + $0x20] sm:$0xff]
        %v408 = vld [vmem:[%s1 + $0x28] sm:$0xff]
        %v409 = vld [vmem:[%s1 + $0x30] sm:$0xff]
        %v410 = vld [vmem:[%s1 + $0x38] sm:$0xff]
        %v411 = vld [vmem:[%s277] sm:$0xff]
        %v412 = vld [vmem:[%s277 + $0x8] sm:$0xff]
        %v413 = vld [vmem:[%s277 + $0x10] sm:$0xff]
        %v414 = vld [vmem:[%s277 + $0x18] sm:$0xff]
        %v415 = vld [vmem:[%s277 + $0x20] sm:$0xff]
        %v416 = vld [vmem:[%s277 + $0x28] sm:$0xff]
        %v417 = vld [vmem:[%s277 + $0x30] sm:$0xff]
        %v418 = vld [vmem:[%s277 + $0x38] sm:$0xff]
        %v419 = vld [vmem:[%s277 + $0x40] sm:$0xff]
        %v420 = vld [vmem:[%s277 + $0x48] sm:$0xff]
        %v421 = vld [vmem:[%s277 + $0x50] sm:$0xff]
        %v422 = vld [vmem:[%s277 + $0x58] sm:$0xff]
        %v423 = vld [vmem:[%s277 + $0x60] sm:$0xff]
        %v424 = vld [vmem:[%s277 + $0x68] sm:$0xff]
        %v425 = vld [vmem:[%s277 + $0x70] sm:$0xff]
        %v426 = vld [vmem:[%s277 + $0x78] sm:$0xff]
        %v427 = vld [vmem:[%s277 + $0x80] sm:$0xff]
        %v428 = vld [vmem:[%s277 + $0x88] sm:$0xff]
        %v429 = vld [vmem:[%s277 + $0x90] sm:$0xff]
        %v430 = vld [vmem:[%s277 + $0x98] sm:$0xff]
        %v431 = vld [vmem:[%s277 + $0xa0] sm:$0xff]
        %v432 = vld [vmem:[%s277 + $0xa8] sm:$0xff]
        %v433 = vld [vmem:[%s277 + $0xb0] sm:$0xff]
        %v434 = vld [vmem:[%s277 + $0xb8] sm:$0xff]
        %v435 = vld [vmem:[%s277 + $0xc0] sm:$0xff]
        %v436 = vld [vmem:[%s277 + $0xc8] sm:$0xff]
        %v437 = vld [vmem:[%s277 + $0xd0] sm:$0xff]
        %v438 = vld [vmem:[%s277 + $0xd8] sm:$0xff]
        %v439 = vld [vmem:[%s277 + $0xe0] sm:$0xff]
        %v440 = vld [vmem:[%s277 + $0xe8] sm:$0xff]
        %v441 = vld [vmem:[%s277 + $0xf0] sm:$0xff]
        %v442 = vld [vmem:[%s277 + $0xf8] sm:$0xff]
        %v443 = vld [vmem:[%s277 + $0x100] sm:$0xff]
        %v444 = vld [vmem:[%s277 + $0x108] sm:$0xff]
        %v445 = vld [vmem:[%s277 + $0x110] sm:$0xff]
        %v446 = vld [vmem:[%s277 + $0x118] sm:$0xff]
        %v447 = vld [vmem:[%s277 + $0x120] sm:$0xff]
        %v448 = vld [vmem:[%s277 + $0x128] sm:$0xff]
        %v449 = vld [vmem:[%s277 + $0x130] sm:$0xff]
        %v450 = vld [vmem:[%s277 + $0x138] sm:$0xff]
        %v451 = vld [vmem:[%s277 + $0x140] sm:$0xff]
        %v452 = vld [vmem:[%s277 + $0x148] sm:$0xff]
        %v453 = vld [vmem:[%s277 + $0x150] sm:$0xff]
        %v454 = vld [vmem:[%s277 + $0x158] sm:$0xff]
        %v455 = vld [vmem:[%s277 + $0x160] sm:$0xff]
        %v456 = vld [vmem:[%s277 + $0x168] sm:$0xff]
        %v457 = vld [vmem:[%s277 + $0x170] sm:$0xff]
        %v458 = vld [vmem:[%s277 + $0x178] sm:$0xff]
        %v459 = vld [vmem:[%s277 + $0x180] sm:$0xff]
        %v460 = vld [vmem:[%s277 + $0x188] sm:$0xff]
        %v461 = vld [vmem:[%s277 + $0x190] sm:$0xff]
        %v462 = vld [vmem:[%s277 + $0x198] sm:$0xff]
        %v463 = vld [vmem:[%s277 + $0x1a0] sm:$0xff]
        %v464 = vld [vmem:[%s277 + $0x1a8] sm:$0xff]
        %v465 = vld [vmem:[%s277 + $0x1b0] sm:$0xff]
        %v466 = vld [vmem:[%s277 + $0x1b8] sm:$0xff]
        %v467 = vld [vmem:[%s277 + $0x1c0] sm:$0xff]
        %v468 = vld [vmem:[%s277 + $0x1c8] sm:$0xff]
        %v469 = vld [vmem:[%s277 + $0x1d0] sm:$0xff]
        %v470 = vld [vmem:[%s277 + $0x1d8] sm:$0xff]
        %v471 = vld [vmem:[%s277 + $0x1e0] sm:$0xff]
        %v472 = vld [vmem:[%s277 + $0x1e8] sm:$0xff]
        %v473 = vld [vmem:[%s277 + $0x1f0] sm:$0xff]
        %v474 = vld [vmem:[%s277 + $0x1f8] sm:$0xff]
        %v475 = vld [vmem:[%s277 + $0x200] sm:$0xff]
        %v476 = vld [vmem:[%s277 + $0x208] sm:$0xff]
        %v477 = vld [vmem:[%s277 + $0x210] sm:$0xff]
        %v478 = vld [vmem:[%s277 + $0x218] sm:$0xff]
        %v479 = vld [vmem:[%s277 + $0x220] sm:$0xff]
        %v480 = vld [vmem:[%s277 + $0x228] sm:$0xff]
        %v481 = vld [vmem:[%s277 + $0x230] sm:$0xff]
        %v482 = vld [vmem:[%s277 + $0x238] sm:$0xff]
        %v483 = vld [vmem:[%s277 + $0x240] sm:$0xff]
        %v484 = vld [vmem:[%s277 + $0x248] sm:$0xff]
        %v485 = vld [vmem:[%s277 + $0x250] sm:$0xff]
        %v486 = vld [vmem:[%s277 + $0x258] sm:$0xff]
        %v487 = vld [vmem:[%s277 + $0x260] sm:$0xff]
        %v488 = vld [vmem:[%s277 + $0x268] sm:$0xff]
        %v489 = vld [vmem:[%s277 + $0x270] sm:$0xff]
        %v490 = vld [vmem:[%s277 + $0x278] sm:$0xff]
        %v491 = vld [vmem:[%s277 + $0x280] sm:$0xff]
        %v492 = vld [vmem:[%s277 + $0x288] sm:$0xff]
        %v493 = vld [vmem:[%s277 + $0x290] sm:$0xff]
        %v494 = vld [vmem:[%s277 + $0x298] sm:$0xff]
        %v495 = vld [vmem:[%s277 + $0x2a0] sm:$0xff]
        %v496 = vld [vmem:[%s277 + $0x2a8] sm:$0xff]
        %v497 = vld [vmem:[%s277 + $0x2b0] sm:$0xff]
        %v498 = vld [vmem:[%s277 + $0x2b8] sm:$0xff]
        %v499 = vld [vmem:[%s277 + $0x2c0] sm:$0xff]
        %v500 = vld [vmem:[%s277 + $0x2c8] sm:$0xff]
        %v501 = vld [vmem:[%s277 + $0x2d0] sm:$0xff]
        %v502 = vld [vmem:[%s277 + $0x2d8] sm:$0xff]
        %v503 = vld [vmem:[%s277 + $0x2e0] sm:$0xff]
        %v504 = vld [vmem:[%s277 + $0x2e8] sm:$0xff]
        %v505 = vld [vmem:[%s277 + $0x2f0] sm:$0xff]
        %v506 = vld [vmem:[%s277 + $0x2f8] sm:$0xff]
        %v507 = vld [vmem:[%s277 + $0x300] sm:$0xff]
        %v508 = vld [vmem:[%s277 + $0x308] sm:$0xff]
        %v509 = vld [vmem:[%s277 + $0x310] sm:$0xff]
        %v510 = vld [vmem:[%s277 + $0x318] sm:$0xff]
        %v511 = vld [vmem:[%s277 + $0x320] sm:$0xff]
        %v512 = vld [vmem:[%s277 + $0x328] sm:$0xff]
        %v513 = vld [vmem:[%s277 + $0x330] sm:$0xff]
        %v514 = vld [vmem:[%s277 + $0x338] sm:$0xff]
        %v515 = vld [vmem:[%s277 + $0x340] sm:$0xff]
        %v516 = vld [vmem:[%s277 + $0x348] sm:$0xff]
        %v517 = vld [vmem:[%s277 + $0x350] sm:$0xff]
        %v518 = vld [vmem:[%s277 + $0x358] sm:$0xff]
        %v519 = vld [vmem:[%s277 + $0x360] sm:$0xff]
        %v520 = vld [vmem:[%s277 + $0x368] sm:$0xff]
        %v521 = vld [vmem:[%s277 + $0x370] sm:$0xff]
        %v522 = vld [vmem:[%s277 + $0x378] sm:$0xff]
        %v523 = vld [vmem:[%s277 + $0x380] sm:$0xff]
        %v524 = vld [vmem:[%s277 + $0x388] sm:$0xff]
        %v525 = vld [vmem:[%s277 + $0x390] sm:$0xff]
        %v526 = vld [vmem:[%s277 + $0x398] sm:$0xff]
        %v527 = vld [vmem:[%s277 + $0x3a0] sm:$0xff]
        %v528 = vld [vmem:[%s277 + $0x3a8] sm:$0xff]
        %v529 = vld [vmem:[%s277 + $0x3b0] sm:$0xff]
        %v530 = vld [vmem:[%s277 + $0x3b8] sm:$0xff]
        %v531 = vld [vmem:[%s277 + $0x3c0] sm:$0xff]
        %v532 = vld [vmem:[%s277 + $0x3c8] sm:$0xff]
        %v533 = vld [vmem:[%s277 + $0x3d0] sm:$0xff]
        %v534 = vld [vmem:[%s277 + $0x3d8] sm:$0xff]
        %v535 = vld [vmem:[%s277 + $0x3e0] sm:$0xff]
        %v536 = vld [vmem:[%s277 + $0x3e8] sm:$0xff]
        %v537 = vld [vmem:[%s277 + $0x3f0] sm:$0xff]
        %v538 = vld [vmem:[%s277 + $0x3f8] sm:$0xff]
        %v539 = vadd.f32 %v411, %v412
        %v540 = vadd.f32 %v539, %v413
        %v541 = vadd.f32 %v540, %v414
        %542 = vadd.xlane.f32.xlu0 %v541
        %v543 = vpop.xlane.xlu0 %542
        %v544 = vadd.f32 %v415, %v416
        %v545 = vadd.f32 %v544, %v417
        %v546 = vadd.f32 %v545, %v418
        %547 = vadd.xlane.f32.xlu0 %v546
        %v548 = vpop.xlane.xlu0 %547
        %v549 = vadd.f32 %v419, %v420
        %v550 = vadd.f32 %v549, %v421
        %v551 = vadd.f32 %v550, %v422
        %552 = vadd.xlane.f32.xlu0 %v551
        %v553 = vpop.xlane.xlu0 %552
        %v554 = vadd.f32 %v423, %v424
        %v555 = vadd.f32 %v554, %v425
        %v556 = vadd.f32 %v555, %v426
        %557 = vadd.xlane.f32.xlu0 %v556
        %v558 = vpop.xlane.xlu0 %557
        %v559 = vadd.f32 %v427, %v428
        %v560 = vadd.f32 %v559, %v429
        %v561 = vadd.f32 %v560, %v430
        %562 = vadd.xlane.f32.xlu0 %v561
        %v563 = vpop.xlane.xlu0 %562
        %v564 = vadd.f32 %v431, %v432
        %v565 = vadd.f32 %v564, %v433
        %v566 = vadd.f32 %v565, %v434
        %567 = vadd.xlane.f32.xlu0 %v566
        %v568 = vpop.xlane.xlu0 %567
        %v569 = vadd.f32 %v435, %v436
        %v570 = vadd.f32 %v569, %v437
        %v571 = vadd.f32 %v570, %v438
        %572 = vadd.xlane.f32.xlu0 %v571
        %v573 = vpop.xlane.xlu0 %572
        %v574 = vadd.f32 %v439, %v440
        %v575 = vadd.f32 %v574, %v441
        %v576 = vadd.f32 %v575, %v442
        %577 = vadd.xlane.f32.xlu0 %v576
        %v578 = vpop.xlane.xlu0 %577
        %v579 = vadd.f32 %v443, %v444
        %v580 = vadd.f32 %v579, %v445
        %v581 = vadd.f32 %v580, %v446
        %582 = vadd.xlane.f32.xlu0 %v581
        %v583 = vpop.xlane.xlu0 %582
        %v584 = vadd.f32 %v447, %v448
        %v585 = vadd.f32 %v584, %v449
        %v586 = vadd.f32 %v585, %v450
        %587 = vadd.xlane.f32.xlu0 %v586
        %v588 = vpop.xlane.xlu0 %587
        %v589 = vadd.f32 %v451, %v452
        %v590 = vadd.f32 %v589, %v453
        %v591 = vadd.f32 %v590, %v454
        %592 = vadd.xlane.f32.xlu0 %v591
        %v593 = vpop.xlane.xlu0 %592
        %v594 = vadd.f32 %v455, %v456
        %v595 = vadd.f32 %v594, %v457
        %v596 = vadd.f32 %v595, %v458
        %597 = vadd.xlane.f32.xlu0 %v596
        %v598 = vpop.xlane.xlu0 %597
        %v599 = vadd.f32 %v459, %v460
        %v600 = vadd.f32 %v599, %v461
        %v601 = vadd.f32 %v600, %v462
        %602 = vadd.xlane.f32.xlu0 %v601
        %v603 = vpop.xlane.xlu0 %602
        %v604 = vadd.f32 %v463, %v464
        %v605 = vadd.f32 %v604, %v465
        %v606 = vadd.f32 %v605, %v466
        %607 = vadd.xlane.f32.xlu0 %v606
        %v608 = vpop.xlane.xlu0 %607
        %v609 = vadd.f32 %v467, %v468
        %v610 = vadd.f32 %v609, %v469
        %v611 = vadd.f32 %v610, %v470
        %612 = vadd.xlane.f32.xlu0 %v611
        %v613 = vpop.xlane.xlu0 %612
        %v614 = vadd.f32 %v471, %v472
        %v615 = vadd.f32 %v614, %v473
        %v616 = vadd.f32 %v615, %v474
        %617 = vadd.xlane.f32.xlu0 %v616
        %v618 = vpop.xlane.xlu0 %617
        %v619 = vadd.f32 %v475, %v476
        %v620 = vadd.f32 %v619, %v477
        %v621 = vadd.f32 %v620, %v478
        %622 = vadd.xlane.f32.xlu0 %v621
        %v623 = vpop.xlane.xlu0 %622
        %v624 = vadd.f32 %v479, %v480
        %v625 = vadd.f32 %v624, %v481
        %v626 = vadd.f32 %v625, %v482
        %627 = vadd.xlane.f32.xlu0 %v626
        %v628 = vpop.xlane.xlu0 %627
        %v629 = vadd.f32 %v483, %v484
        %v630 = vadd.f32 %v629, %v485
        %v631 = vadd.f32 %v630, %v486
        %632 = vadd.xlane.f32.xlu0 %v631
        %v633 = vpop.xlane.xlu0 %632
        %v634 = vadd.f32 %v487, %v488
        %v635 = vadd.f32 %v634, %v489
        %v636 = vadd.f32 %v635, %v490
        %637 = vadd.xlane.f32.xlu0 %v636
        %v638 = vpop.xlane.xlu0 %637
        %v639 = vadd.f32 %v491, %v492
        %v640 = vadd.f32 %v639, %v493
        %v641 = vadd.f32 %v640, %v494
        %642 = vadd.xlane.f32.xlu0 %v641
        %v643 = vpop.xlane.xlu0 %642
        %v644 = vadd.f32 %v495, %v496
        %v645 = vadd.f32 %v644, %v497
        %v646 = vadd.f32 %v645, %v498
        %647 = vadd.xlane.f32.xlu0 %v646
        %v648 = vpop.xlane.xlu0 %647
        %v649 = vadd.f32 %v499, %v500
        %v650 = vadd.f32 %v649, %v501
        %v651 = vadd.f32 %v650, %v502
        %652 = vadd.xlane.f32.xlu0 %v651
        %v653 = vpop.xlane.xlu0 %652
        %v654 = vadd.f32 %v503, %v504
        %v655 = vadd.f32 %v654, %v505
        %v656 = vadd.f32 %v655, %v506
        %657 = vadd.xlane.f32.xlu0 %v656
        %v658 = vpop.xlane.xlu0 %657
        %v659 = vadd.f32 %v507, %v508
        %v660 = vadd.f32 %v659, %v509
        %v661 = vadd.f32 %v660, %v510
        %662 = vadd.xlane.f32.xlu0 %v661
        %v663 = vpop.xlane.xlu0 %662
        %v664 = vadd.f32 %v511, %v512
        %v665 = vadd.f32 %v664, %v513
        %v666 = vadd.f32 %v665, %v514
        %667 = vadd.xlane.f32.xlu0 %v666
        %v668 = vpop.xlane.xlu0 %667
        %v669 = vadd.f32 %v515, %v516
        %v670 = vadd.f32 %v669, %v517
        %v671 = vadd.f32 %v670, %v518
        %672 = vadd.xlane.f32.xlu0 %v671
        %v673 = vpop.xlane.xlu0 %672
        %v674 = vadd.f32 %v519, %v520
        %v675 = vadd.f32 %v674, %v521
        %v676 = vadd.f32 %v675, %v522
        %677 = vadd.xlane.f32.xlu0 %v676
        %v678 = vpop.xlane.xlu0 %677
        %v679 = vadd.f32 %v523, %v524
        %v680 = vadd.f32 %v679, %v525
        %v681 = vadd.f32 %v680, %v526
        %682 = vadd.xlane.f32.xlu0 %v681
        %v683 = vpop.xlane.xlu0 %682
        %v684 = vadd.f32 %v527, %v528
        %v685 = vadd.f32 %v684, %v529
        %v686 = vadd.f32 %v685, %v530
        %687 = vadd.xlane.f32.xlu0 %v686
        %v688 = vpop.xlane.xlu0 %687
        %v689 = vadd.f32 %v531, %v532
        %v690 = vadd.f32 %v689, %v533
        %v691 = vadd.f32 %v690, %v534
        %692 = vadd.xlane.f32.xlu0 %v691
        %v693 = vpop.xlane.xlu0 %692
        %v694 = vadd.f32 %v535, %v536
        %v695 = vadd.f32 %v694, %v537
        %v696 = vadd.f32 %v695, %v538
        %697 = vadd.xlane.f32.xlu0 %v696
        %v698 = vpop.xlane.xlu0 %697
        %v699 = vmax.f32 %v543, 1.0
        %v700 = vmax.f32 %v548, 1.0
        %v701 = vmax.f32 %v553, 1.0
        %v702 = vmax.f32 %v558, 1.0
        %v703 = vmax.f32 %v563, 1.0
        %v704 = vmax.f32 %v568, 1.0
        %v705 = vmax.f32 %v573, 1.0
        %v706 = vmax.f32 %v578, 1.0
        %v707 = vmax.f32 %v583, 1.0
        %v708 = vmax.f32 %v588, 1.0
        %v709 = vmax.f32 %v593, 1.0
        %v710 = vmax.f32 %v598, 1.0
        %v711 = vmax.f32 %v603, 1.0
        %v712 = vmax.f32 %v608, 1.0
        %v713 = vmax.f32 %v613, 1.0
        %v714 = vmax.f32 %v618, 1.0
        %v715 = vmax.f32 %v623, 1.0
        %v716 = vmax.f32 %v628, 1.0
        %v717 = vmax.f32 %v633, 1.0
        %v718 = vmax.f32 %v638, 1.0
        %v719 = vmax.f32 %v643, 1.0
        %v720 = vmax.f32 %v648, 1.0
        %v721 = vmax.f32 %v653, 1.0
        %v722 = vmax.f32 %v658, 1.0
        %v723 = vmax.f32 %v663, 1.0
        %v724 = vmax.f32 %v668, 1.0
        %v725 = vmax.f32 %v673, 1.0
        %v726 = vmax.f32 %v678, 1.0
        %v727 = vmax.f32 %v683, 1.0
        %v728 = vmax.f32 %v688, 1.0
        %v729 = vmax.f32 %v693, 1.0
        %v730 = vmax.f32 %v698, 1.0
        %731 = vmatpush.msra.mxu0 %v346
        %732 = vmatpush.msra.mxu0 %v345
        %733 = vmatpush.msra.mxu0 %v344
        %734 = vmatpush.msra.mxu0 %v343
        %735 = vmatpush.msra.mxu0 %v342
        %736 = vmatpush.msra.mxu0 %v341
        %737 = vmatpush.msra.mxu0 %v340
        %738 = vmatpush.msra.mxu0 %v339
        %739 = vmatpush.msra.mxu0 %v338
        %740 = vmatpush.msra.mxu0 %v337
        %741 = vmatpush.msra.mxu0 %v336
        %742 = vmatpush.msra.mxu0 %v335
        %743 = vmatpush.msra.mxu0 %v334
        %744 = vmatpush.msra.mxu0 %v333
        %745 = vmatpush.msra.mxu0 %v332
        %746 = vmatpush.msra.mxu0 %v331
        %747 = vmatmul.f32.gmra.mxu0 %v411
        %v748 = vpop.f32.mrf.mxu0
        %v749 = vadd.f32 0.0, %v748
        %750 = vmatmul.f32.gmra.mxu0 %v415
        %v751 = vpop.f32.mrf.mxu0
        %v752 = vadd.f32 0.0, %v751
        %753 = vmatmul.f32.gmra.mxu0 %v419
        %v754 = vpop.f32.mrf.mxu0
        %v755 = vadd.f32 0.0, %v754
        %756 = vmatmul.f32.gmra.mxu0 %v423
        %v757 = vpop.f32.mrf.mxu0
        %v758 = vadd.f32 0.0, %v757
        %759 = vmatmul.f32.gmra.mxu0 %v427
        %v760 = vpop.f32.mrf.mxu0
        %v761 = vadd.f32 0.0, %v760
        %762 = vmatmul.f32.gmra.mxu0 %v431
        %v763 = vpop.f32.mrf.mxu0
        %v764 = vadd.f32 0.0, %v763
        %765 = vmatmul.f32.gmra.mxu0 %v435
        %v766 = vpop.f32.mrf.mxu0
        %v767 = vadd.f32 0.0, %v766
        %768 = vmatmul.f32.gmra.mxu0 %v439
        %v769 = vpop.f32.mrf.mxu0
        %v770 = vadd.f32 0.0, %v769
        %771 = vmatmul.f32.gmra.mxu0 %v443
        %v772 = vpop.f32.mrf.mxu0
        %v773 = vadd.f32 0.0, %v772
        %774 = vmatmul.f32.gmra.mxu0 %v447
        %v775 = vpop.f32.mrf.mxu0
        %v776 = vadd.f32 0.0, %v775
        %777 = vmatmul.f32.gmra.mxu0 %v451
        %v778 = vpop.f32.mrf.mxu0
        %v779 = vadd.f32 0.0, %v778
        %780 = vmatmul.f32.gmra.mxu0 %v455
        %v781 = vpop.f32.mrf.mxu0
        %v782 = vadd.f32 0.0, %v781
        %783 = vmatmul.f32.gmra.mxu0 %v459
        %v784 = vpop.f32.mrf.mxu0
        %v785 = vadd.f32 0.0, %v784
        %786 = vmatmul.f32.gmra.mxu0 %v463
        %v787 = vpop.f32.mrf.mxu0
        %v788 = vadd.f32 0.0, %v787
        %789 = vmatmul.f32.gmra.mxu0 %v467
        %v790 = vpop.f32.mrf.mxu0
        %v791 = vadd.f32 0.0, %v790
        %792 = vmatmul.f32.gmra.mxu0 %v471
        %v793 = vpop.f32.mrf.mxu0
        %v794 = vadd.f32 0.0, %v793
        %795 = vmatmul.f32.gmra.mxu0 %v475
        %v796 = vpop.f32.mrf.mxu0
        %v797 = vadd.f32 0.0, %v796
        %798 = vmatmul.f32.gmra.mxu0 %v479
        %v799 = vpop.f32.mrf.mxu0
        %v800 = vadd.f32 0.0, %v799
        %801 = vmatmul.f32.gmra.mxu0 %v483
        %v802 = vpop.f32.mrf.mxu0
        %v803 = vadd.f32 0.0, %v802
        %804 = vmatmul.f32.gmra.mxu0 %v487
        %v805 = vpop.f32.mrf.mxu0
        %v806 = vadd.f32 0.0, %v805
        %807 = vmatmul.f32.gmra.mxu0 %v491
        %v808 = vpop.f32.mrf.mxu0
        %v809 = vadd.f32 0.0, %v808
        %810 = vmatmul.f32.gmra.mxu0 %v495
        %v811 = vpop.f32.mrf.mxu0
        %v812 = vadd.f32 0.0, %v811
        %813 = vmatmul.f32.gmra.mxu0 %v499
        %v814 = vpop.f32.mrf.mxu0
        %v815 = vadd.f32 0.0, %v814
        %816 = vmatmul.f32.gmra.mxu0 %v503
        %v817 = vpop.f32.mrf.mxu0
        %v818 = vadd.f32 0.0, %v817
        %819 = vmatmul.f32.gmra.mxu0 %v507
        %v820 = vpop.f32.mrf.mxu0
        %v821 = vadd.f32 0.0, %v820
        %822 = vmatmul.f32.gmra.mxu0 %v511
        %v823 = vpop.f32.mrf.mxu0
        %v824 = vadd.f32 0.0, %v823
        %825 = vmatmul.f32.gmra.mxu0 %v515
        %v826 = vpop.f32.mrf.mxu0
        %v827 = vadd.f32 0.0, %v826
        %828 = vmatmul.f32.gmra.mxu0 %v519
        %v829 = vpop.f32.mrf.mxu0
        %v830 = vadd.f32 0.0, %v829
        %831 = vmatmul.f32.gmra.mxu0 %v523
        %v832 = vpop.f32.mrf.mxu0
        %v833 = vadd.f32 0.0, %v832
        %834 = vmatmul.f32.gmra.mxu0 %v527
        %v835 = vpop.f32.mrf.mxu0
        %v836 = vadd.f32 0.0, %v835
        %837 = vmatmul.f32.gmra.mxu0 %v531
        %v838 = vpop.f32.mrf.mxu0
        %v839 = vadd.f32 0.0, %v838
        %840 = vmatmul.f32.gmra.mxu0 %v535
        %v841 = vpop.f32.mrf.mxu0
        %v842 = vadd.f32 0.0, %v841
        %843 = vdwg.mxu0
        %844 = vmatpush.msra.mxu0 %v362
        %845 = vmatpush.msra.mxu0 %v361
        %846 = vmatpush.msra.mxu0 %v360
        %847 = vmatpush.msra.mxu0 %v359
        %848 = vmatpush.msra.mxu0 %v358
        %849 = vmatpush.msra.mxu0 %v357
        %850 = vmatpush.msra.mxu0 %v356
        %851 = vmatpush.msra.mxu0 %v355
        %852 = vmatpush.msra.mxu0 %v354
        %853 = vmatpush.msra.mxu0 %v353
        %854 = vmatpush.msra.mxu0 %v352
        %855 = vmatpush.msra.mxu0 %v351
        %856 = vmatpush.msra.mxu0 %v350
        %857 = vmatpush.msra.mxu0 %v349
        %858 = vmatpush.msra.mxu0 %v348
        %859 = vmatpush.msra.mxu0 %v347
        %860 = vmatmul.f32.gmra.mxu0 %v412
        %v861 = vpop.f32.mrf.mxu0
        %v862 = vadd.f32 %v749, %v861
        %863 = vmatmul.f32.gmra.mxu0 %v416
        %v864 = vpop.f32.mrf.mxu0
        %v865 = vadd.f32 %v752, %v864
        %866 = vmatmul.f32.gmra.mxu0 %v420
        %v867 = vpop.f32.mrf.mxu0
        %v868 = vadd.f32 %v755, %v867
        %869 = vmatmul.f32.gmra.mxu0 %v424
        %v870 = vpop.f32.mrf.mxu0
        %v871 = vadd.f32 %v758, %v870
        %872 = vmatmul.f32.gmra.mxu0 %v428
        %v873 = vpop.f32.mrf.mxu0
        %v874 = vadd.f32 %v761, %v873
        %875 = vmatmul.f32.gmra.mxu0 %v432
        %v876 = vpop.f32.mrf.mxu0
        %v877 = vadd.f32 %v764, %v876
        %878 = vmatmul.f32.gmra.mxu0 %v436
        %v879 = vpop.f32.mrf.mxu0
        %v880 = vadd.f32 %v767, %v879
        %881 = vmatmul.f32.gmra.mxu0 %v440
        %v882 = vpop.f32.mrf.mxu0
        %v883 = vadd.f32 %v770, %v882
        %884 = vmatmul.f32.gmra.mxu0 %v444
        %v885 = vpop.f32.mrf.mxu0
        %v886 = vadd.f32 %v773, %v885
        %887 = vmatmul.f32.gmra.mxu0 %v448
        %v888 = vpop.f32.mrf.mxu0
        %v889 = vadd.f32 %v776, %v888
        %890 = vmatmul.f32.gmra.mxu0 %v452
        %v891 = vpop.f32.mrf.mxu0
        %v892 = vadd.f32 %v779, %v891
        %893 = vmatmul.f32.gmra.mxu0 %v456
        %v894 = vpop.f32.mrf.mxu0
        %v895 = vadd.f32 %v782, %v894
        %896 = vmatmul.f32.gmra.mxu0 %v460
        %v897 = vpop.f32.mrf.mxu0
        %v898 = vadd.f32 %v785, %v897
        %899 = vmatmul.f32.gmra.mxu0 %v464
        %v900 = vpop.f32.mrf.mxu0
        %v901 = vadd.f32 %v788, %v900
        %902 = vmatmul.f32.gmra.mxu0 %v468
        %v903 = vpop.f32.mrf.mxu0
        %v904 = vadd.f32 %v791, %v903
        %905 = vmatmul.f32.gmra.mxu0 %v472
        %v906 = vpop.f32.mrf.mxu0
        %v907 = vadd.f32 %v794, %v906
        %908 = vmatmul.f32.gmra.mxu0 %v476
        %v909 = vpop.f32.mrf.mxu0
        %v910 = vadd.f32 %v797, %v909
        %911 = vmatmul.f32.gmra.mxu0 %v480
        %v912 = vpop.f32.mrf.mxu0
        %v913 = vadd.f32 %v800, %v912
        %914 = vmatmul.f32.gmra.mxu0 %v484
        %v915 = vpop.f32.mrf.mxu0
        %v916 = vadd.f32 %v803, %v915
        %917 = vmatmul.f32.gmra.mxu0 %v488
        %v918 = vpop.f32.mrf.mxu0
        %v919 = vadd.f32 %v806, %v918
        %920 = vmatmul.f32.gmra.mxu0 %v492
        %v921 = vpop.f32.mrf.mxu0
        %v922 = vadd.f32 %v809, %v921
        %923 = vmatmul.f32.gmra.mxu0 %v496
        %v924 = vpop.f32.mrf.mxu0
        %v925 = vadd.f32 %v812, %v924
        %926 = vmatmul.f32.gmra.mxu0 %v500
        %v927 = vpop.f32.mrf.mxu0
        %v928 = vadd.f32 %v815, %v927
        %929 = vmatmul.f32.gmra.mxu0 %v504
        %v930 = vpop.f32.mrf.mxu0
        %v931 = vadd.f32 %v818, %v930
        %932 = vmatmul.f32.gmra.mxu0 %v508
        %v933 = vpop.f32.mrf.mxu0
        %v934 = vadd.f32 %v821, %v933
        %935 = vmatmul.f32.gmra.mxu0 %v512
        %v936 = vpop.f32.mrf.mxu0
        %v937 = vadd.f32 %v824, %v936
        %938 = vmatmul.f32.gmra.mxu0 %v516
        %v939 = vpop.f32.mrf.mxu0
        %v940 = vadd.f32 %v827, %v939
        %941 = vmatmul.f32.gmra.mxu0 %v520
        %v942 = vpop.f32.mrf.mxu0
        %v943 = vadd.f32 %v830, %v942
        %944 = vmatmul.f32.gmra.mxu0 %v524
        %v945 = vpop.f32.mrf.mxu0
        %v946 = vadd.f32 %v833, %v945
        %947 = vmatmul.f32.gmra.mxu0 %v528
        %v948 = vpop.f32.mrf.mxu0
        %v949 = vadd.f32 %v836, %v948
        %950 = vmatmul.f32.gmra.mxu0 %v532
        %v951 = vpop.f32.mrf.mxu0
        %v952 = vadd.f32 %v839, %v951
        %953 = vmatmul.f32.gmra.mxu0 %v536
        %v954 = vpop.f32.mrf.mxu0
        %v955 = vadd.f32 %v842, %v954
        %956 = vdwg.mxu0
        %957 = vmatpush.msra.mxu0 %v378
        %958 = vmatpush.msra.mxu0 %v377
        %959 = vmatpush.msra.mxu0 %v376
        %960 = vmatpush.msra.mxu0 %v375
        %961 = vmatpush.msra.mxu0 %v374
        %962 = vmatpush.msra.mxu0 %v373
        %963 = vmatpush.msra.mxu0 %v372
        %964 = vmatpush.msra.mxu0 %v371
        %965 = vmatpush.msra.mxu0 %v370
        %966 = vmatpush.msra.mxu0 %v369
        %967 = vmatpush.msra.mxu0 %v368
        %968 = vmatpush.msra.mxu0 %v367
        %969 = vmatpush.msra.mxu0 %v366
        %970 = vmatpush.msra.mxu0 %v365
        %971 = vmatpush.msra.mxu0 %v364
        %972 = vmatpush.msra.mxu0 %v363
        %973 = vmatmul.f32.gmra.mxu0 %v413
        %v974 = vpop.f32.mrf.mxu0
        %v975 = vadd.f32 %v862, %v974
        %976 = vmatmul.f32.gmra.mxu0 %v417
        %v977 = vpop.f32.mrf.mxu0
        %v978 = vadd.f32 %v865, %v977
        %979 = vmatmul.f32.gmra.mxu0 %v421
        %v980 = vpop.f32.mrf.mxu0
        %v981 = vadd.f32 %v868, %v980
        %982 = vmatmul.f32.gmra.mxu0 %v425
        %v983 = vpop.f32.mrf.mxu0
        %v984 = vadd.f32 %v871, %v983
        %985 = vmatmul.f32.gmra.mxu0 %v429
        %v986 = vpop.f32.mrf.mxu0
        %v987 = vadd.f32 %v874, %v986
        %988 = vmatmul.f32.gmra.mxu0 %v433
        %v989 = vpop.f32.mrf.mxu0
        %v990 = vadd.f32 %v877, %v989
        %991 = vmatmul.f32.gmra.mxu0 %v437
        %v992 = vpop.f32.mrf.mxu0
        %v993 = vadd.f32 %v880, %v992
        %994 = vmatmul.f32.gmra.mxu0 %v441
        %v995 = vpop.f32.mrf.mxu0
        %v996 = vadd.f32 %v883, %v995
        %997 = vmatmul.f32.gmra.mxu0 %v445
        %v998 = vpop.f32.mrf.mxu0
        %v999 = vadd.f32 %v886, %v998
        %1000 = vmatmul.f32.gmra.mxu0 %v449
        %v1001 = vpop.f32.mrf.mxu0
        %v1002 = vadd.f32 %v889, %v1001
        %1003 = vmatmul.f32.gmra.mxu0 %v453
        %v1004 = vpop.f32.mrf.mxu0
        %v1005 = vadd.f32 %v892, %v1004
        %1006 = vmatmul.f32.gmra.mxu0 %v457
        %v1007 = vpop.f32.mrf.mxu0
        %v1008 = vadd.f32 %v895, %v1007
        %1009 = vmatmul.f32.gmra.mxu0 %v461
        %v1010 = vpop.f32.mrf.mxu0
        %v1011 = vadd.f32 %v898, %v1010
        %1012 = vmatmul.f32.gmra.mxu0 %v465
        %v1013 = vpop.f32.mrf.mxu0
        %v1014 = vadd.f32 %v901, %v1013
        %1015 = vmatmul.f32.gmra.mxu0 %v469
        %v1016 = vpop.f32.mrf.mxu0
        %v1017 = vadd.f32 %v904, %v1016
        %1018 = vmatmul.f32.gmra.mxu0 %v473
        %v1019 = vpop.f32.mrf.mxu0
        %v1020 = vadd.f32 %v907, %v1019
        %1021 = vmatmul.f32.gmra.mxu0 %v477
        %v1022 = vpop.f32.mrf.mxu0
        %v1023 = vadd.f32 %v910, %v1022
        %1024 = vmatmul.f32.gmra.mxu0 %v481
        %v1025 = vpop.f32.mrf.mxu0
        %v1026 = vadd.f32 %v913, %v1025
        %1027 = vmatmul.f32.gmra.mxu0 %v485
        %v1028 = vpop.f32.mrf.mxu0
        %v1029 = vadd.f32 %v916, %v1028
        %1030 = vmatmul.f32.gmra.mxu0 %v489
        %v1031 = vpop.f32.mrf.mxu0
        %v1032 = vadd.f32 %v919, %v1031
        %1033 = vmatmul.f32.gmra.mxu0 %v493
        %v1034 = vpop.f32.mrf.mxu0
        %v1035 = vadd.f32 %v922, %v1034
        %1036 = vmatmul.f32.gmra.mxu0 %v497
        %v1037 = vpop.f32.mrf.mxu0
        %v1038 = vadd.f32 %v925, %v1037
        %1039 = vmatmul.f32.gmra.mxu0 %v501
        %v1040 = vpop.f32.mrf.mxu0
        %v1041 = vadd.f32 %v928, %v1040
        %1042 = vmatmul.f32.gmra.mxu0 %v505
        %v1043 = vpop.f32.mrf.mxu0
        %v1044 = vadd.f32 %v931, %v1043
        %1045 = vmatmul.f32.gmra.mxu0 %v509
        %v1046 = vpop.f32.mrf.mxu0
        %v1047 = vadd.f32 %v934, %v1046
        %1048 = vmatmul.f32.gmra.mxu0 %v513
        %v1049 = vpop.f32.mrf.mxu0
        %v1050 = vadd.f32 %v937, %v1049
        %1051 = vmatmul.f32.gmra.mxu0 %v517
        %v1052 = vpop.f32.mrf.mxu0
        %v1053 = vadd.f32 %v940, %v1052
        %1054 = vmatmul.f32.gmra.mxu0 %v521
        %v1055 = vpop.f32.mrf.mxu0
        %v1056 = vadd.f32 %v943, %v1055
        %1057 = vmatmul.f32.gmra.mxu0 %v525
        %v1058 = vpop.f32.mrf.mxu0
        %v1059 = vadd.f32 %v946, %v1058
        %1060 = vmatmul.f32.gmra.mxu0 %v529
        %v1061 = vpop.f32.mrf.mxu0
        %v1062 = vadd.f32 %v949, %v1061
        %1063 = vmatmul.f32.gmra.mxu0 %v533
        %v1064 = vpop.f32.mrf.mxu0
        %v1065 = vadd.f32 %v952, %v1064
        %1066 = vmatmul.f32.gmra.mxu0 %v537
        %v1067 = vpop.f32.mrf.mxu0
        %v1068 = vadd.f32 %v955, %v1067
        %1069 = vdwg.mxu0
        %1070 = vmatpush.msra.mxu0 %v394
        %1071 = vmatpush.msra.mxu0 %v393
        %1072 = vmatpush.msra.mxu0 %v392
        %1073 = vmatpush.msra.mxu0 %v391
        %1074 = vmatpush.msra.mxu0 %v390
        %1075 = vmatpush.msra.mxu0 %v389
        %1076 = vmatpush.msra.mxu0 %v388
        %1077 = vmatpush.msra.mxu0 %v387
        %1078 = vmatpush.msra.mxu0 %v386
        %1079 = vmatpush.msra.mxu0 %v385
        %1080 = vmatpush.msra.mxu0 %v384
        %1081 = vmatpush.msra.mxu0 %v383
        %1082 = vmatpush.msra.mxu0 %v382
        %1083 = vmatpush.msra.mxu0 %v381
        %1084 = vmatpush.msra.mxu0 %v380
        %1085 = vmatpush.msra.mxu0 %v379
        %1086 = vmatmul.f32.gmra.mxu0 %v414
        %v1087 = vpop.f32.mrf.mxu0
        %v1088 = vadd.f32 %v975, %v1087
        %1089 = vmatmul.f32.gmra.mxu0 %v418
        %v1090 = vpop.f32.mrf.mxu0
        %v1091 = vadd.f32 %v978, %v1090
        %1092 = vmatmul.f32.gmra.mxu0 %v422
        %v1093 = vpop.f32.mrf.mxu0
        %v1094 = vadd.f32 %v981, %v1093
        %1095 = vmatmul.f32.gmra.mxu0 %v426
        %v1096 = vpop.f32.mrf.mxu0
        %v1097 = vadd.f32 %v984, %v1096
        %1098 = vmatmul.f32.gmra.mxu0 %v430
        %v1099 = vpop.f32.mrf.mxu0
        %v1100 = vadd.f32 %v987, %v1099
        %1101 = vmatmul.f32.gmra.mxu0 %v434
        %v1102 = vpop.f32.mrf.mxu0
        %v1103 = vadd.f32 %v990, %v1102
        %1104 = vmatmul.f32.gmra.mxu0 %v438
        %v1105 = vpop.f32.mrf.mxu0
        %v1106 = vadd.f32 %v993, %v1105
        %1107 = vmatmul.f32.gmra.mxu0 %v442
        %v1108 = vpop.f32.mrf.mxu0
        %v1109 = vadd.f32 %v996, %v1108
        %1110 = vmatmul.f32.gmra.mxu0 %v446
        %v1111 = vpop.f32.mrf.mxu0
        %v1112 = vadd.f32 %v999, %v1111
        %1113 = vmatmul.f32.gmra.mxu0 %v450
        %v1114 = vpop.f32.mrf.mxu0
        %v1115 = vadd.f32 %v1002, %v1114
        %1116 = vmatmul.f32.gmra.mxu0 %v454
        %v1117 = vpop.f32.mrf.mxu0
        %v1118 = vadd.f32 %v1005, %v1117
        %1119 = vmatmul.f32.gmra.mxu0 %v458
        %v1120 = vpop.f32.mrf.mxu0
        %v1121 = vadd.f32 %v1008, %v1120
        %1122 = vmatmul.f32.gmra.mxu0 %v462
        %v1123 = vpop.f32.mrf.mxu0
        %v1124 = vadd.f32 %v1011, %v1123
        %1125 = vmatmul.f32.gmra.mxu0 %v466
        %v1126 = vpop.f32.mrf.mxu0
        %v1127 = vadd.f32 %v1014, %v1126
        %1128 = vmatmul.f32.gmra.mxu0 %v470
        %v1129 = vpop.f32.mrf.mxu0
        %v1130 = vadd.f32 %v1017, %v1129
        %1131 = vmatmul.f32.gmra.mxu0 %v474
        %v1132 = vpop.f32.mrf.mxu0
        %v1133 = vadd.f32 %v1020, %v1132
        %1134 = vmatmul.f32.gmra.mxu0 %v478
        %v1135 = vpop.f32.mrf.mxu0
        %v1136 = vadd.f32 %v1023, %v1135
        %1137 = vmatmul.f32.gmra.mxu0 %v482
        %v1138 = vpop.f32.mrf.mxu0
        %v1139 = vadd.f32 %v1026, %v1138
        %1140 = vmatmul.f32.gmra.mxu0 %v486
        %v1141 = vpop.f32.mrf.mxu0
        %v1142 = vadd.f32 %v1029, %v1141
        %1143 = vmatmul.f32.gmra.mxu0 %v490
        %v1144 = vpop.f32.mrf.mxu0
        %v1145 = vadd.f32 %v1032, %v1144
        %1146 = vmatmul.f32.gmra.mxu0 %v494
        %v1147 = vpop.f32.mrf.mxu0
        %v1148 = vadd.f32 %v1035, %v1147
        %1149 = vmatmul.f32.gmra.mxu0 %v498
        %v1150 = vpop.f32.mrf.mxu0
        %v1151 = vadd.f32 %v1038, %v1150
        %1152 = vmatmul.f32.gmra.mxu0 %v502
        %v1153 = vpop.f32.mrf.mxu0
        %v1154 = vadd.f32 %v1041, %v1153
        %1155 = vmatmul.f32.gmra.mxu0 %v506
        %v1156 = vpop.f32.mrf.mxu0
        %v1157 = vadd.f32 %v1044, %v1156
        %1158 = vmatmul.f32.gmra.mxu0 %v510
        %v1159 = vpop.f32.mrf.mxu0
        %v1160 = vadd.f32 %v1047, %v1159
        %1161 = vmatmul.f32.gmra.mxu0 %v514
        %v1162 = vpop.f32.mrf.mxu0
        %v1163 = vadd.f32 %v1050, %v1162
        %1164 = vmatmul.f32.gmra.mxu0 %v518
        %v1165 = vpop.f32.mrf.mxu0
        %v1166 = vadd.f32 %v1053, %v1165
        %1167 = vmatmul.f32.gmra.mxu0 %v522
        %v1168 = vpop.f32.mrf.mxu0
        %v1169 = vadd.f32 %v1056, %v1168
        %1170 = vmatmul.f32.gmra.mxu0 %v526
        %v1171 = vpop.f32.mrf.mxu0
        %v1172 = vadd.f32 %v1059, %v1171
        %1173 = vmatmul.f32.gmra.mxu0 %v530
        %v1174 = vpop.f32.mrf.mxu0
        %v1175 = vadd.f32 %v1062, %v1174
        %1176 = vmatmul.f32.gmra.mxu0 %v534
        %v1177 = vpop.f32.mrf.mxu0
        %v1178 = vadd.f32 %v1065, %v1177
        %1179 = vmatmul.f32.gmra.mxu0 %v538
        %v1180 = vpop.f32.mrf.mxu0
        %v1181 = vadd.f32 %v1068, %v1180
        %1182 = vdwg.mxu0
        %v1183 = vrcp.pop %v699
        %v1184 = vmul.f32 %v699, %v1183
        %v1185 = vsub.f32 1.0, %v1184
        %v1186 = vmul.f32 %v1183, %v1185
        %v1187 = vadd.f32 %v1183, %v1186
        %vm1188 = vweird.f32 %v699
        %vm1189 = vweird.f32 %v1183
        %vm1190 = vmor %vm1188, %vm1189
        %v1191 = vsel %vm1190, %v1183, %v1187
        %v1192 = vand.u32 2147483647, %v699
        %vm1193 = vcmp.eq.f32.partialorder %v1192, 8.507059e+37
        %v1194 = vand.u32 %v699, 2147483648
        %v1195 = vor.u32 1.1754944e-38, %v1194
        %v1196 = vsel %vm1193, %v1195, %v1191
        %v1197 = vrcp.pop %v700
        %v1198 = vmul.f32 %v700, %v1197
        %v1199 = vsub.f32 1.0, %v1198
        %v1200 = vmul.f32 %v1197, %v1199
        %v1201 = vadd.f32 %v1197, %v1200
        %vm1202 = vweird.f32 %v700
        %vm1203 = vweird.f32 %v1197
        %vm1204 = vmor %vm1202, %vm1203
        %v1205 = vsel %vm1204, %v1197, %v1201
        %v1206 = vand.u32 2147483647, %v700
        %vm1207 = vcmp.eq.f32.partialorder %v1206, 8.507059e+37
        %v1208 = vand.u32 %v700, 2147483648
        %v1209 = vor.u32 1.1754944e-38, %v1208
        %v1210 = vsel %vm1207, %v1209, %v1205
        %v1211 = vrcp.pop %v701
        %v1212 = vmul.f32 %v701, %v1211
        %v1213 = vsub.f32 1.0, %v1212
        %v1214 = vmul.f32 %v1211, %v1213
        %v1215 = vadd.f32 %v1211, %v1214
        %vm1216 = vweird.f32 %v701
        %vm1217 = vweird.f32 %v1211
        %vm1218 = vmor %vm1216, %vm1217
        %v1219 = vsel %vm1218, %v1211, %v1215
        %v1220 = vand.u32 2147483647, %v701
        %vm1221 = vcmp.eq.f32.partialorder %v1220, 8.507059e+37
        %v1222 = vand.u32 %v701, 2147483648
        %v1223 = vor.u32 1.1754944e-38, %v1222
        %v1224 = vsel %vm1221, %v1223, %v1219
        %v1225 = vrcp.pop %v702
        %v1226 = vmul.f32 %v702, %v1225
        %v1227 = vsub.f32 1.0, %v1226
        %v1228 = vmul.f32 %v1225, %v1227
        %v1229 = vadd.f32 %v1225, %v1228
        %vm1230 = vweird.f32 %v702
        %vm1231 = vweird.f32 %v1225
        %vm1232 = vmor %vm1230, %vm1231
        %v1233 = vsel %vm1232, %v1225, %v1229
        %v1234 = vand.u32 2147483647, %v702
        %vm1235 = vcmp.eq.f32.partialorder %v1234, 8.507059e+37
        %v1236 = vand.u32 %v702, 2147483648
        %v1237 = vor.u32 1.1754944e-38, %v1236
        %v1238 = vsel %vm1235, %v1237, %v1233
        %v1239 = vrcp.pop %v703
        %v1240 = vmul.f32 %v703, %v1239
        %v1241 = vsub.f32 1.0, %v1240
        %v1242 = vmul.f32 %v1239, %v1241
        %v1243 = vadd.f32 %v1239, %v1242
        %vm1244 = vweird.f32 %v703
        %vm1245 = vweird.f32 %v1239
        %vm1246 = vmor %vm1244, %vm1245
        %v1247 = vsel %vm1246, %v1239, %v1243
        %v1248 = vand.u32 2147483647, %v703
        %vm1249 = vcmp.eq.f32.partialorder %v1248, 8.507059e+37
        %v1250 = vand.u32 %v703, 2147483648
        %v1251 = vor.u32 1.1754944e-38, %v1250
        %v1252 = vsel %vm1249, %v1251, %v1247
        %v1253 = vrcp.pop %v704
        %v1254 = vmul.f32 %v704, %v1253
        %v1255 = vsub.f32 1.0, %v1254
        %v1256 = vmul.f32 %v1253, %v1255
        %v1257 = vadd.f32 %v1253, %v1256
        %vm1258 = vweird.f32 %v704
        %vm1259 = vweird.f32 %v1253
        %vm1260 = vmor %vm1258, %vm1259
        %v1261 = vsel %vm1260, %v1253, %v1257
        %v1262 = vand.u32 2147483647, %v704
        %vm1263 = vcmp.eq.f32.partialorder %v1262, 8.507059e+37
        %v1264 = vand.u32 %v704, 2147483648
        %v1265 = vor.u32 1.1754944e-38, %v1264
        %v1266 = vsel %vm1263, %v1265, %v1261
        %v1267 = vrcp.pop %v705
        %v1268 = vmul.f32 %v705, %v1267
        %v1269 = vsub.f32 1.0, %v1268
        %v1270 = vmul.f32 %v1267, %v1269
        %v1271 = vadd.f32 %v1267, %v1270
        %vm1272 = vweird.f32 %v705
        %vm1273 = vweird.f32 %v1267
        %vm1274 = vmor %vm1272, %vm1273
        %v1275 = vsel %vm1274, %v1267, %v1271
        %v1276 = vand.u32 2147483647, %v705
        %vm1277 = vcmp.eq.f32.partialorder %v1276, 8.507059e+37
        %v1278 = vand.u32 %v705, 2147483648
        %v1279 = vor.u32 1.1754944e-38, %v1278
        %v1280 = vsel %vm1277, %v1279, %v1275
        %v1281 = vrcp.pop %v706
        %v1282 = vmul.f32 %v706, %v1281
        %v1283 = vsub.f32 1.0, %v1282
        %v1284 = vmul.f32 %v1281, %v1283
        %v1285 = vadd.f32 %v1281, %v1284
        %vm1286 = vweird.f32 %v706
        %vm1287 = vweird.f32 %v1281
        %vm1288 = vmor %vm1286, %vm1287
        %v1289 = vsel %vm1288, %v1281, %v1285
        %v1290 = vand.u32 2147483647, %v706
        %vm1291 = vcmp.eq.f32.partialorder %v1290, 8.507059e+37
        %v1292 = vand.u32 %v706, 2147483648
        %v1293 = vor.u32 1.1754944e-38, %v1292
        %v1294 = vsel %vm1291, %v1293, %v1289
        %v1295 = vrcp.pop %v707
        %v1296 = vmul.f32 %v707, %v1295
        %v1297 = vsub.f32 1.0, %v1296
        %v1298 = vmul.f32 %v1295, %v1297
        %v1299 = vadd.f32 %v1295, %v1298
        %vm1300 = vweird.f32 %v707
        %vm1301 = vweird.f32 %v1295
        %vm1302 = vmor %vm1300, %vm1301
        %v1303 = vsel %vm1302, %v1295, %v1299
        %v1304 = vand.u32 2147483647, %v707
        %vm1305 = vcmp.eq.f32.partialorder %v1304, 8.507059e+37
        %v1306 = vand.u32 %v707, 2147483648
        %v1307 = vor.u32 1.1754944e-38, %v1306
        %v1308 = vsel %vm1305, %v1307, %v1303
        %v1309 = vrcp.pop %v708
        %v1310 = vmul.f32 %v708, %v1309
        %v1311 = vsub.f32 1.0, %v1310
        %v1312 = vmul.f32 %v1309, %v1311
        %v1313 = vadd.f32 %v1309, %v1312
        %vm1314 = vweird.f32 %v708
        %vm1315 = vweird.f32 %v1309
        %vm1316 = vmor %vm1314, %vm1315
        %v1317 = vsel %vm1316, %v1309, %v1313
        %v1318 = vand.u32 2147483647, %v708
        %vm1319 = vcmp.eq.f32.partialorder %v1318, 8.507059e+37
        %v1320 = vand.u32 %v708, 2147483648
        %v1321 = vor.u32 1.1754944e-38, %v1320
        %v1322 = vsel %vm1319, %v1321, %v1317
        %v1323 = vrcp.pop %v709
        %v1324 = vmul.f32 %v709, %v1323
        %v1325 = vsub.f32 1.0, %v1324
        %v1326 = vmul.f32 %v1323, %v1325
        %v1327 = vadd.f32 %v1323, %v1326
        %vm1328 = vweird.f32 %v709
        %vm1329 = vweird.f32 %v1323
        %vm1330 = vmor %vm1328, %vm1329
        %v1331 = vsel %vm1330, %v1323, %v1327
        %v1332 = vand.u32 2147483647, %v709
        %vm1333 = vcmp.eq.f32.partialorder %v1332, 8.507059e+37
        %v1334 = vand.u32 %v709, 2147483648
        %v1335 = vor.u32 1.1754944e-38, %v1334
        %v1336 = vsel %vm1333, %v1335, %v1331
        %v1337 = vrcp.pop %v710
        %v1338 = vmul.f32 %v710, %v1337
        %v1339 = vsub.f32 1.0, %v1338
        %v1340 = vmul.f32 %v1337, %v1339
        %v1341 = vadd.f32 %v1337, %v1340
        %vm1342 = vweird.f32 %v710
        %vm1343 = vweird.f32 %v1337
        %vm1344 = vmor %vm1342, %vm1343
        %v1345 = vsel %vm1344, %v1337, %v1341
        %v1346 = vand.u32 2147483647, %v710
        %vm1347 = vcmp.eq.f32.partialorder %v1346, 8.507059e+37
        %v1348 = vand.u32 %v710, 2147483648
        %v1349 = vor.u32 1.1754944e-38, %v1348
        %v1350 = vsel %vm1347, %v1349, %v1345
        %v1351 = vrcp.pop %v711
        %v1352 = vmul.f32 %v711, %v1351
        %v1353 = vsub.f32 1.0, %v1352
        %v1354 = vmul.f32 %v1351, %v1353
        %v1355 = vadd.f32 %v1351, %v1354
        %vm1356 = vweird.f32 %v711
        %vm1357 = vweird.f32 %v1351
        %vm1358 = vmor %vm1356, %vm1357
        %v1359 = vsel %vm1358, %v1351, %v1355
        %v1360 = vand.u32 2147483647, %v711
        %vm1361 = vcmp.eq.f32.partialorder %v1360, 8.507059e+37
        %v1362 = vand.u32 %v711, 2147483648
        %v1363 = vor.u32 1.1754944e-38, %v1362
        %v1364 = vsel %vm1361, %v1363, %v1359
        %v1365 = vrcp.pop %v712
        %v1366 = vmul.f32 %v712, %v1365
        %v1367 = vsub.f32 1.0, %v1366
        %v1368 = vmul.f32 %v1365, %v1367
        %v1369 = vadd.f32 %v1365, %v1368
        %vm1370 = vweird.f32 %v712
        %vm1371 = vweird.f32 %v1365
        %vm1372 = vmor %vm1370, %vm1371
        %v1373 = vsel %vm1372, %v1365, %v1369
        %v1374 = vand.u32 2147483647, %v712
        %vm1375 = vcmp.eq.f32.partialorder %v1374, 8.507059e+37
        %v1376 = vand.u32 %v712, 2147483648
        %v1377 = vor.u32 1.1754944e-38, %v1376
        %v1378 = vsel %vm1375, %v1377, %v1373
        %v1379 = vrcp.pop %v713
        %v1380 = vmul.f32 %v713, %v1379
        %v1381 = vsub.f32 1.0, %v1380
        %v1382 = vmul.f32 %v1379, %v1381
        %v1383 = vadd.f32 %v1379, %v1382
        %vm1384 = vweird.f32 %v713
        %vm1385 = vweird.f32 %v1379
        %vm1386 = vmor %vm1384, %vm1385
        %v1387 = vsel %vm1386, %v1379, %v1383
        %v1388 = vand.u32 2147483647, %v713
        %vm1389 = vcmp.eq.f32.partialorder %v1388, 8.507059e+37
        %v1390 = vand.u32 %v713, 2147483648
        %v1391 = vor.u32 1.1754944e-38, %v1390
        %v1392 = vsel %vm1389, %v1391, %v1387
        %v1393 = vrcp.pop %v714
        %v1394 = vmul.f32 %v714, %v1393
        %v1395 = vsub.f32 1.0, %v1394
        %v1396 = vmul.f32 %v1393, %v1395
        %v1397 = vadd.f32 %v1393, %v1396
        %vm1398 = vweird.f32 %v714
        %vm1399 = vweird.f32 %v1393
        %vm1400 = vmor %vm1398, %vm1399
        %v1401 = vsel %vm1400, %v1393, %v1397
        %v1402 = vand.u32 2147483647, %v714
        %vm1403 = vcmp.eq.f32.partialorder %v1402, 8.507059e+37
        %v1404 = vand.u32 %v714, 2147483648
        %v1405 = vor.u32 1.1754944e-38, %v1404
        %v1406 = vsel %vm1403, %v1405, %v1401
        %v1407 = vrcp.pop %v715
        %v1408 = vmul.f32 %v715, %v1407
        %v1409 = vsub.f32 1.0, %v1408
        %v1410 = vmul.f32 %v1407, %v1409
        %v1411 = vadd.f32 %v1407, %v1410
        %vm1412 = vweird.f32 %v715
        %vm1413 = vweird.f32 %v1407
        %vm1414 = vmor %vm1412, %vm1413
        %v1415 = vsel %vm1414, %v1407, %v1411
        %v1416 = vand.u32 2147483647, %v715
        %vm1417 = vcmp.eq.f32.partialorder %v1416, 8.507059e+37
        %v1418 = vand.u32 %v715, 2147483648
        %v1419 = vor.u32 1.1754944e-38, %v1418
        %v1420 = vsel %vm1417, %v1419, %v1415
        %v1421 = vrcp.pop %v716
        %v1422 = vmul.f32 %v716, %v1421
        %v1423 = vsub.f32 1.0, %v1422
        %v1424 = vmul.f32 %v1421, %v1423
        %v1425 = vadd.f32 %v1421, %v1424
        %vm1426 = vweird.f32 %v716
        %vm1427 = vweird.f32 %v1421
        %vm1428 = vmor %vm1426, %vm1427
        %v1429 = vsel %vm1428, %v1421, %v1425
        %v1430 = vand.u32 2147483647, %v716
        %vm1431 = vcmp.eq.f32.partialorder %v1430, 8.507059e+37
        %v1432 = vand.u32 %v716, 2147483648
        %v1433 = vor.u32 1.1754944e-38, %v1432
        %v1434 = vsel %vm1431, %v1433, %v1429
        %v1435 = vrcp.pop %v717
        %v1436 = vmul.f32 %v717, %v1435
        %v1437 = vsub.f32 1.0, %v1436
        %v1438 = vmul.f32 %v1435, %v1437
        %v1439 = vadd.f32 %v1435, %v1438
        %vm1440 = vweird.f32 %v717
        %vm1441 = vweird.f32 %v1435
        %vm1442 = vmor %vm1440, %vm1441
        %v1443 = vsel %vm1442, %v1435, %v1439
        %v1444 = vand.u32 2147483647, %v717
        %vm1445 = vcmp.eq.f32.partialorder %v1444, 8.507059e+37
        %v1446 = vand.u32 %v717, 2147483648
        %v1447 = vor.u32 1.1754944e-38, %v1446
        %v1448 = vsel %vm1445, %v1447, %v1443
        %v1449 = vrcp.pop %v718
        %v1450 = vmul.f32 %v718, %v1449
        %v1451 = vsub.f32 1.0, %v1450
        %v1452 = vmul.f32 %v1449, %v1451
        %v1453 = vadd.f32 %v1449, %v1452
        %vm1454 = vweird.f32 %v718
        %vm1455 = vweird.f32 %v1449
        %vm1456 = vmor %vm1454, %vm1455
        %v1457 = vsel %vm1456, %v1449, %v1453
        %v1458 = vand.u32 2147483647, %v718
        %vm1459 = vcmp.eq.f32.partialorder %v1458, 8.507059e+37
        %v1460 = vand.u32 %v718, 2147483648
        %v1461 = vor.u32 1.1754944e-38, %v1460
        %v1462 = vsel %vm1459, %v1461, %v1457
        %v1463 = vrcp.pop %v719
        %v1464 = vmul.f32 %v719, %v1463
        %v1465 = vsub.f32 1.0, %v1464
        %v1466 = vmul.f32 %v1463, %v1465
        %v1467 = vadd.f32 %v1463, %v1466
        %vm1468 = vweird.f32 %v719
        %vm1469 = vweird.f32 %v1463
        %vm1470 = vmor %vm1468, %vm1469
        %v1471 = vsel %vm1470, %v1463, %v1467
        %v1472 = vand.u32 2147483647, %v719
        %vm1473 = vcmp.eq.f32.partialorder %v1472, 8.507059e+37
        %v1474 = vand.u32 %v719, 2147483648
        %v1475 = vor.u32 1.1754944e-38, %v1474
        %v1476 = vsel %vm1473, %v1475, %v1471
        %v1477 = vrcp.pop %v720
        %v1478 = vmul.f32 %v720, %v1477
        %v1479 = vsub.f32 1.0, %v1478
        %v1480 = vmul.f32 %v1477, %v1479
        %v1481 = vadd.f32 %v1477, %v1480
        %vm1482 = vweird.f32 %v720
        %vm1483 = vweird.f32 %v1477
        %vm1484 = vmor %vm1482, %vm1483
        %v1485 = vsel %vm1484, %v1477, %v1481
        %v1486 = vand.u32 2147483647, %v720
        %vm1487 = vcmp.eq.f32.partialorder %v1486, 8.507059e+37
        %v1488 = vand.u32 %v720, 2147483648
        %v1489 = vor.u32 1.1754944e-38, %v1488
        %v1490 = vsel %vm1487, %v1489, %v1485
        %v1491 = vrcp.pop %v721
        %v1492 = vmul.f32 %v721, %v1491
        %v1493 = vsub.f32 1.0, %v1492
        %v1494 = vmul.f32 %v1491, %v1493
        %v1495 = vadd.f32 %v1491, %v1494
        %vm1496 = vweird.f32 %v721
        %vm1497 = vweird.f32 %v1491
        %vm1498 = vmor %vm1496, %vm1497
        %v1499 = vsel %vm1498, %v1491, %v1495
        %v1500 = vand.u32 2147483647, %v721
        %vm1501 = vcmp.eq.f32.partialorder %v1500, 8.507059e+37
        %v1502 = vand.u32 %v721, 2147483648
        %v1503 = vor.u32 1.1754944e-38, %v1502
        %v1504 = vsel %vm1501, %v1503, %v1499
        %v1505 = vrcp.pop %v722
        %v1506 = vmul.f32 %v722, %v1505
        %v1507 = vsub.f32 1.0, %v1506
        %v1508 = vmul.f32 %v1505, %v1507
        %v1509 = vadd.f32 %v1505, %v1508
        %vm1510 = vweird.f32 %v722
        %vm1511 = vweird.f32 %v1505
        %vm1512 = vmor %vm1510, %vm1511
        %v1513 = vsel %vm1512, %v1505, %v1509
        %v1514 = vand.u32 2147483647, %v722
        %vm1515 = vcmp.eq.f32.partialorder %v1514, 8.507059e+37
        %v1516 = vand.u32 %v722, 2147483648
        %v1517 = vor.u32 1.1754944e-38, %v1516
        %v1518 = vsel %vm1515, %v1517, %v1513
        %v1519 = vrcp.pop %v723
        %v1520 = vmul.f32 %v723, %v1519
        %v1521 = vsub.f32 1.0, %v1520
        %v1522 = vmul.f32 %v1519, %v1521
        %v1523 = vadd.f32 %v1519, %v1522
        %vm1524 = vweird.f32 %v723
        %vm1525 = vweird.f32 %v1519
        %vm1526 = vmor %vm1524, %vm1525
        %v1527 = vsel %vm1526, %v1519, %v1523
        %v1528 = vand.u32 2147483647, %v723
        %vm1529 = vcmp.eq.f32.partialorder %v1528, 8.507059e+37
        %v1530 = vand.u32 %v723, 2147483648
        %v1531 = vor.u32 1.1754944e-38, %v1530
        %v1532 = vsel %vm1529, %v1531, %v1527
        %v1533 = vrcp.pop %v724
        %v1534 = vmul.f32 %v724, %v1533
        %v1535 = vsub.f32 1.0, %v1534
        %v1536 = vmul.f32 %v1533, %v1535
        %v1537 = vadd.f32 %v1533, %v1536
        %vm1538 = vweird.f32 %v724
        %vm1539 = vweird.f32 %v1533
        %vm1540 = vmor %vm1538, %vm1539
        %v1541 = vsel %vm1540, %v1533, %v1537
        %v1542 = vand.u32 2147483647, %v724
        %vm1543 = vcmp.eq.f32.partialorder %v1542, 8.507059e+37
        %v1544 = vand.u32 %v724, 2147483648
        %v1545 = vor.u32 1.1754944e-38, %v1544
        %v1546 = vsel %vm1543, %v1545, %v1541
        %v1547 = vrcp.pop %v725
        %v1548 = vmul.f32 %v725, %v1547
        %v1549 = vsub.f32 1.0, %v1548
        %v1550 = vmul.f32 %v1547, %v1549
        %v1551 = vadd.f32 %v1547, %v1550
        %vm1552 = vweird.f32 %v725
        %vm1553 = vweird.f32 %v1547
        %vm1554 = vmor %vm1552, %vm1553
        %v1555 = vsel %vm1554, %v1547, %v1551
        %v1556 = vand.u32 2147483647, %v725
        %vm1557 = vcmp.eq.f32.partialorder %v1556, 8.507059e+37
        %v1558 = vand.u32 %v725, 2147483648
        %v1559 = vor.u32 1.1754944e-38, %v1558
        %v1560 = vsel %vm1557, %v1559, %v1555
        %v1561 = vrcp.pop %v726
        %v1562 = vmul.f32 %v726, %v1561
        %v1563 = vsub.f32 1.0, %v1562
        %v1564 = vmul.f32 %v1561, %v1563
        %v1565 = vadd.f32 %v1561, %v1564
        %vm1566 = vweird.f32 %v726
        %vm1567 = vweird.f32 %v1561
        %vm1568 = vmor %vm1566, %vm1567
        %v1569 = vsel %vm1568, %v1561, %v1565
        %v1570 = vand.u32 2147483647, %v726
        %vm1571 = vcmp.eq.f32.partialorder %v1570, 8.507059e+37
        %v1572 = vand.u32 %v726, 2147483648
        %v1573 = vor.u32 1.1754944e-38, %v1572
        %v1574 = vsel %vm1571, %v1573, %v1569
        %v1575 = vrcp.pop %v727
        %v1576 = vmul.f32 %v727, %v1575
        %v1577 = vsub.f32 1.0, %v1576
        %v1578 = vmul.f32 %v1575, %v1577
        %v1579 = vadd.f32 %v1575, %v1578
        %vm1580 = vweird.f32 %v727
        %vm1581 = vweird.f32 %v1575
        %vm1582 = vmor %vm1580, %vm1581
        %v1583 = vsel %vm1582, %v1575, %v1579
        %v1584 = vand.u32 2147483647, %v727
        %vm1585 = vcmp.eq.f32.partialorder %v1584, 8.507059e+37
        %v1586 = vand.u32 %v727, 2147483648
        %v1587 = vor.u32 1.1754944e-38, %v1586
        %v1588 = vsel %vm1585, %v1587, %v1583
        %v1589 = vrcp.pop %v728
        %v1590 = vmul.f32 %v728, %v1589
        %v1591 = vsub.f32 1.0, %v1590
        %v1592 = vmul.f32 %v1589, %v1591
        %v1593 = vadd.f32 %v1589, %v1592
        %vm1594 = vweird.f32 %v728
        %vm1595 = vweird.f32 %v1589
        %vm1596 = vmor %vm1594, %vm1595
        %v1597 = vsel %vm1596, %v1589, %v1593
        %v1598 = vand.u32 2147483647, %v728
        %vm1599 = vcmp.eq.f32.partialorder %v1598, 8.507059e+37
        %v1600 = vand.u32 %v728, 2147483648
        %v1601 = vor.u32 1.1754944e-38, %v1600
        %v1602 = vsel %vm1599, %v1601, %v1597
        %v1603 = vrcp.pop %v729
        %v1604 = vmul.f32 %v729, %v1603
        %v1605 = vsub.f32 1.0, %v1604
        %v1606 = vmul.f32 %v1603, %v1605
        %v1607 = vadd.f32 %v1603, %v1606
        %vm1608 = vweird.f32 %v729
        %vm1609 = vweird.f32 %v1603
        %vm1610 = vmor %vm1608, %vm1609
        %v1611 = vsel %vm1610, %v1603, %v1607
        %v1612 = vand.u32 2147483647, %v729
        %vm1613 = vcmp.eq.f32.partialorder %v1612, 8.507059e+37
        %v1614 = vand.u32 %v729, 2147483648
        %v1615 = vor.u32 1.1754944e-38, %v1614
        %v1616 = vsel %vm1613, %v1615, %v1611
        %v1617 = vrcp.pop %v730
        %v1618 = vmul.f32 %v730, %v1617
        %v1619 = vsub.f32 1.0, %v1618
        %v1620 = vmul.f32 %v1617, %v1619
        %v1621 = vadd.f32 %v1617, %v1620
        %vm1622 = vweird.f32 %v730
        %vm1623 = vweird.f32 %v1617
        %vm1624 = vmor %vm1622, %vm1623
        %v1625 = vsel %vm1624, %v1617, %v1621
        %v1626 = vand.u32 2147483647, %v730
        %vm1627 = vcmp.eq.f32.partialorder %v1626, 8.507059e+37
        %v1628 = vand.u32 %v730, 2147483648
        %v1629 = vor.u32 1.1754944e-38, %v1628
        %v1630 = vsel %vm1627, %v1629, %v1625
        %v1631 = vmul.f32 %v1088, %v1196
        %v1632 = vmul.f32 %v1091, %v1210
        %v1633 = vmul.f32 %v1094, %v1224
        %v1634 = vmul.f32 %v1097, %v1238
        %v1635 = vmul.f32 %v1100, %v1252
        %v1636 = vmul.f32 %v1103, %v1266
        %v1637 = vmul.f32 %v1106, %v1280
        %v1638 = vmul.f32 %v1109, %v1294
        %v1639 = vmul.f32 %v1112, %v1308
        %v1640 = vmul.f32 %v1115, %v1322
        %v1641 = vmul.f32 %v1118, %v1336
        %v1642 = vmul.f32 %v1121, %v1350
        %v1643 = vmul.f32 %v1124, %v1364
        %v1644 = vmul.f32 %v1127, %v1378
        %v1645 = vmul.f32 %v1130, %v1392
        %v1646 = vmul.f32 %v1133, %v1406
        %v1647 = vmul.f32 %v1136, %v1420
        %v1648 = vmul.f32 %v1139, %v1434
        %v1649 = vmul.f32 %v1142, %v1448
        %v1650 = vmul.f32 %v1145, %v1462
        %v1651 = vmul.f32 %v1148, %v1476
        %v1652 = vmul.f32 %v1151, %v1490
        %v1653 = vmul.f32 %v1154, %v1504
        %v1654 = vmul.f32 %v1157, %v1518
        %v1655 = vmul.f32 %v1160, %v1532
        %v1656 = vmul.f32 %v1163, %v1546
        %v1657 = vmul.f32 %v1166, %v1560
        %v1658 = vmul.f32 %v1169, %v1574
        %v1659 = vmul.f32 %v1172, %v1588
        %v1660 = vmul.f32 %v1175, %v1602
        %v1661 = vmul.f32 %v1178, %v1616
        %v1662 = vmul.f32 %v1181, %v1630
        %v1663 = vld [vmem:[%s287] sm:$0xff]
        %v1664 = vld [vmem:[%s287 + $0x8] sm:$0xff]
        %v1665 = vld [vmem:[%s287 + $0x10] sm:$0xff]
        %v1666 = vld [vmem:[%s287 + $0x18] sm:$0xff]
        %v1667 = vld [vmem:[%s287 + $0x20] sm:$0xff]
        %v1668 = vld [vmem:[%s287 + $0x28] sm:$0xff]
        %v1669 = vld [vmem:[%s287 + $0x30] sm:$0xff]
        %v1670 = vld [vmem:[%s287 + $0x38] sm:$0xff]
        %v1671 = vld [vmem:[%s287 + $0x40] sm:$0xff]
        %v1672 = vld [vmem:[%s287 + $0x48] sm:$0xff]
        %v1673 = vld [vmem:[%s287 + $0x50] sm:$0xff]
        %v1674 = vld [vmem:[%s287 + $0x58] sm:$0xff]
        %v1675 = vld [vmem:[%s287 + $0x60] sm:$0xff]
        %v1676 = vld [vmem:[%s287 + $0x68] sm:$0xff]
        %v1677 = vld [vmem:[%s287 + $0x70] sm:$0xff]
        %v1678 = vld [vmem:[%s287 + $0x78] sm:$0xff]
        %v1679 = vld [vmem:[%s287 + $0x80] sm:$0xff]
        %v1680 = vld [vmem:[%s287 + $0x88] sm:$0xff]
        %v1681 = vld [vmem:[%s287 + $0x90] sm:$0xff]
        %v1682 = vld [vmem:[%s287 + $0x98] sm:$0xff]
        %v1683 = vld [vmem:[%s287 + $0xa0] sm:$0xff]
        %v1684 = vld [vmem:[%s287 + $0xa8] sm:$0xff]
        %v1685 = vld [vmem:[%s287 + $0xb0] sm:$0xff]
        %v1686 = vld [vmem:[%s287 + $0xb8] sm:$0xff]
        %v1687 = vld [vmem:[%s287 + $0xc0] sm:$0xff]
        %v1688 = vld [vmem:[%s287 + $0xc8] sm:$0xff]
        %v1689 = vld [vmem:[%s287 + $0xd0] sm:$0xff]
        %v1690 = vld [vmem:[%s287 + $0xd8] sm:$0xff]
        %v1691 = vld [vmem:[%s287 + $0xe0] sm:$0xff]
        %v1692 = vld [vmem:[%s287 + $0xe8] sm:$0xff]
        %v1693 = vld [vmem:[%s287 + $0xf0] sm:$0xff]
        %v1694 = vld [vmem:[%s287 + $0xf8] sm:$0xff]
        %v1695 = vld [vmem:[%s287 + $0x100] sm:$0xff]
        %v1696 = vld [vmem:[%s287 + $0x108] sm:$0xff]
        %v1697 = vld [vmem:[%s287 + $0x110] sm:$0xff]
        %v1698 = vld [vmem:[%s287 + $0x118] sm:$0xff]
        %v1699 = vld [vmem:[%s287 + $0x120] sm:$0xff]
        %v1700 = vld [vmem:[%s287 + $0x128] sm:$0xff]
        %v1701 = vld [vmem:[%s287 + $0x130] sm:$0xff]
        %v1702 = vld [vmem:[%s287 + $0x138] sm:$0xff]
        %v1703 = vld [vmem:[%s287 + $0x140] sm:$0xff]
        %v1704 = vld [vmem:[%s287 + $0x148] sm:$0xff]
        %v1705 = vld [vmem:[%s287 + $0x150] sm:$0xff]
        %v1706 = vld [vmem:[%s287 + $0x158] sm:$0xff]
        %v1707 = vld [vmem:[%s287 + $0x160] sm:$0xff]
        %v1708 = vld [vmem:[%s287 + $0x168] sm:$0xff]
        %v1709 = vld [vmem:[%s287 + $0x170] sm:$0xff]
        %v1710 = vld [vmem:[%s287 + $0x178] sm:$0xff]
        %v1711 = vld [vmem:[%s287 + $0x180] sm:$0xff]
        %v1712 = vld [vmem:[%s287 + $0x188] sm:$0xff]
        %v1713 = vld [vmem:[%s287 + $0x190] sm:$0xff]
        %v1714 = vld [vmem:[%s287 + $0x198] sm:$0xff]
        %v1715 = vld [vmem:[%s287 + $0x1a0] sm:$0xff]
        %v1716 = vld [vmem:[%s287 + $0x1a8] sm:$0xff]
        %v1717 = vld [vmem:[%s287 + $0x1b0] sm:$0xff]
        %v1718 = vld [vmem:[%s287 + $0x1b8] sm:$0xff]
        %v1719 = vld [vmem:[%s287 + $0x1c0] sm:$0xff]
        %v1720 = vld [vmem:[%s287 + $0x1c8] sm:$0xff]
        %v1721 = vld [vmem:[%s287 + $0x1d0] sm:$0xff]
        %v1722 = vld [vmem:[%s287 + $0x1d8] sm:$0xff]
        %v1723 = vld [vmem:[%s287 + $0x1e0] sm:$0xff]
        %v1724 = vld [vmem:[%s287 + $0x1e8] sm:$0xff]
        %v1725 = vld [vmem:[%s287 + $0x1f0] sm:$0xff]
        %v1726 = vld [vmem:[%s287 + $0x1f8] sm:$0xff]
        %v1727 = vld [vmem:[%s287 + $0x200] sm:$0xff]
        %v1728 = vld [vmem:[%s287 + $0x208] sm:$0xff]
        %v1729 = vld [vmem:[%s287 + $0x210] sm:$0xff]
        %v1730 = vld [vmem:[%s287 + $0x218] sm:$0xff]
        %v1731 = vld [vmem:[%s287 + $0x220] sm:$0xff]
        %v1732 = vld [vmem:[%s287 + $0x228] sm:$0xff]
        %v1733 = vld [vmem:[%s287 + $0x230] sm:$0xff]
        %v1734 = vld [vmem:[%s287 + $0x238] sm:$0xff]
        %v1735 = vld [vmem:[%s287 + $0x240] sm:$0xff]
        %v1736 = vld [vmem:[%s287 + $0x248] sm:$0xff]
        %v1737 = vld [vmem:[%s287 + $0x250] sm:$0xff]
        %v1738 = vld [vmem:[%s287 + $0x258] sm:$0xff]
        %v1739 = vld [vmem:[%s287 + $0x260] sm:$0xff]
        %v1740 = vld [vmem:[%s287 + $0x268] sm:$0xff]
        %v1741 = vld [vmem:[%s287 + $0x270] sm:$0xff]
        %v1742 = vld [vmem:[%s287 + $0x278] sm:$0xff]
        %v1743 = vld [vmem:[%s287 + $0x280] sm:$0xff]
        %v1744 = vld [vmem:[%s287 + $0x288] sm:$0xff]
        %v1745 = vld [vmem:[%s287 + $0x290] sm:$0xff]
        %v1746 = vld [vmem:[%s287 + $0x298] sm:$0xff]
        %v1747 = vld [vmem:[%s287 + $0x2a0] sm:$0xff]
        %v1748 = vld [vmem:[%s287 + $0x2a8] sm:$0xff]
        %v1749 = vld [vmem:[%s287 + $0x2b0] sm:$0xff]
        %v1750 = vld [vmem:[%s287 + $0x2b8] sm:$0xff]
        %v1751 = vld [vmem:[%s287 + $0x2c0] sm:$0xff]
        %v1752 = vld [vmem:[%s287 + $0x2c8] sm:$0xff]
        %v1753 = vld [vmem:[%s287 + $0x2d0] sm:$0xff]
        %v1754 = vld [vmem:[%s287 + $0x2d8] sm:$0xff]
        %v1755 = vld [vmem:[%s287 + $0x2e0] sm:$0xff]
        %v1756 = vld [vmem:[%s287 + $0x2e8] sm:$0xff]
        %v1757 = vld [vmem:[%s287 + $0x2f0] sm:$0xff]
        %v1758 = vld [vmem:[%s287 + $0x2f8] sm:$0xff]
        %v1759 = vld [vmem:[%s287 + $0x300] sm:$0xff]
        %v1760 = vld [vmem:[%s287 + $0x308] sm:$0xff]
        %v1761 = vld [vmem:[%s287 + $0x310] sm:$0xff]
        %v1762 = vld [vmem:[%s287 + $0x318] sm:$0xff]
        %v1763 = vld [vmem:[%s287 + $0x320] sm:$0xff]
        %v1764 = vld [vmem:[%s287 + $0x328] sm:$0xff]
        %v1765 = vld [vmem:[%s287 + $0x330] sm:$0xff]
        %v1766 = vld [vmem:[%s287 + $0x338] sm:$0xff]
        %v1767 = vld [vmem:[%s287 + $0x340] sm:$0xff]
        %v1768 = vld [vmem:[%s287 + $0x348] sm:$0xff]
        %v1769 = vld [vmem:[%s287 + $0x350] sm:$0xff]
        %v1770 = vld [vmem:[%s287 + $0x358] sm:$0xff]
        %v1771 = vld [vmem:[%s287 + $0x360] sm:$0xff]
        %v1772 = vld [vmem:[%s287 + $0x368] sm:$0xff]
        %v1773 = vld [vmem:[%s287 + $0x370] sm:$0xff]
        %v1774 = vld [vmem:[%s287 + $0x378] sm:$0xff]
        %v1775 = vld [vmem:[%s287 + $0x380] sm:$0xff]
        %v1776 = vld [vmem:[%s287 + $0x388] sm:$0xff]
        %v1777 = vld [vmem:[%s287 + $0x390] sm:$0xff]
        %v1778 = vld [vmem:[%s287 + $0x398] sm:$0xff]
        %v1779 = vld [vmem:[%s287 + $0x3a0] sm:$0xff]
        %v1780 = vld [vmem:[%s287 + $0x3a8] sm:$0xff]
        %v1781 = vld [vmem:[%s287 + $0x3b0] sm:$0xff]
        %v1782 = vld [vmem:[%s287 + $0x3b8] sm:$0xff]
        %v1783 = vld [vmem:[%s287 + $0x3c0] sm:$0xff]
        %v1784 = vld [vmem:[%s287 + $0x3c8] sm:$0xff]
        %v1785 = vld [vmem:[%s287 + $0x3d0] sm:$0xff]
        %v1786 = vld [vmem:[%s287 + $0x3d8] sm:$0xff]
        %v1787 = vld [vmem:[%s287 + $0x3e0] sm:$0xff]
        %v1788 = vld [vmem:[%s287 + $0x3e8] sm:$0xff]
        %v1789 = vld [vmem:[%s287 + $0x3f0] sm:$0xff]
        %v1790 = vld [vmem:[%s287 + $0x3f8] sm:$0xff]
        %v1791 = vadd.f32 %v1663, %v1664
        %v1792 = vadd.f32 %v1791, %v1665
        %v1793 = vadd.f32 %v1792, %v1666
        %1794 = vadd.xlane.f32.xlu0 %v1793
        %v1795 = vpop.xlane.xlu0 %1794
        %v1796 = vadd.f32 %v1667, %v1668
        %v1797 = vadd.f32 %v1796, %v1669
        %v1798 = vadd.f32 %v1797, %v1670
        %1799 = vadd.xlane.f32.xlu0 %v1798
        %v1800 = vpop.xlane.xlu0 %1799
        %v1801 = vadd.f32 %v1671, %v1672
        %v1802 = vadd.f32 %v1801, %v1673
        %v1803 = vadd.f32 %v1802, %v1674
        %1804 = vadd.xlane.f32.xlu0 %v1803
        %v1805 = vpop.xlane.xlu0 %1804
        %v1806 = vadd.f32 %v1675, %v1676
        %v1807 = vadd.f32 %v1806, %v1677
        %v1808 = vadd.f32 %v1807, %v1678
        %1809 = vadd.xlane.f32.xlu0 %v1808
        %v1810 = vpop.xlane.xlu0 %1809
        %v1811 = vadd.f32 %v1679, %v1680
        %v1812 = vadd.f32 %v1811, %v1681
        %v1813 = vadd.f32 %v1812, %v1682
        %1814 = vadd.xlane.f32.xlu0 %v1813
        %v1815 = vpop.xlane.xlu0 %1814
        %v1816 = vadd.f32 %v1683, %v1684
        %v1817 = vadd.f32 %v1816, %v1685
        %v1818 = vadd.f32 %v1817, %v1686
        %1819 = vadd.xlane.f32.xlu0 %v1818
        %v1820 = vpop.xlane.xlu0 %1819
        %v1821 = vadd.f32 %v1687, %v1688
        %v1822 = vadd.f32 %v1821, %v1689
        %v1823 = vadd.f32 %v1822, %v1690
        %1824 = vadd.xlane.f32.xlu0 %v1823
        %v1825 = vpop.xlane.xlu0 %1824
        %v1826 = vadd.f32 %v1691, %v1692
        %v1827 = vadd.f32 %v1826, %v1693
        %v1828 = vadd.f32 %v1827, %v1694
        %1829 = vadd.xlane.f32.xlu0 %v1828
        %v1830 = vpop.xlane.xlu0 %1829
        %v1831 = vadd.f32 %v1695, %v1696
        %v1832 = vadd.f32 %v1831, %v1697
        %v1833 = vadd.f32 %v1832, %v1698
        %1834 = vadd.xlane.f32.xlu0 %v1833
        %v1835 = vpop.xlane.xlu0 %1834
        %v1836 = vadd.f32 %v1699, %v1700
        %v1837 = vadd.f32 %v1836, %v1701
        %v1838 = vadd.f32 %v1837, %v1702
        %1839 = vadd.xlane.f32.xlu0 %v1838
        %v1840 = vpop.xlane.xlu0 %1839
        %v1841 = vadd.f32 %v1703, %v1704
        %v1842 = vadd.f32 %v1841, %v1705
        %v1843 = vadd.f32 %v1842, %v1706
        %1844 = vadd.xlane.f32.xlu0 %v1843
        %v1845 = vpop.xlane.xlu0 %1844
        %v1846 = vadd.f32 %v1707, %v1708
        %v1847 = vadd.f32 %v1846, %v1709
        %v1848 = vadd.f32 %v1847, %v1710
        %1849 = vadd.xlane.f32.xlu0 %v1848
        %v1850 = vpop.xlane.xlu0 %1849
        %v1851 = vadd.f32 %v1711, %v1712
        %v1852 = vadd.f32 %v1851, %v1713
        %v1853 = vadd.f32 %v1852, %v1714
        %1854 = vadd.xlane.f32.xlu0 %v1853
        %v1855 = vpop.xlane.xlu0 %1854
        %v1856 = vadd.f32 %v1715, %v1716
        %v1857 = vadd.f32 %v1856, %v1717
        %v1858 = vadd.f32 %v1857, %v1718
        %1859 = vadd.xlane.f32.xlu0 %v1858
        %v1860 = vpop.xlane.xlu0 %1859
        %v1861 = vadd.f32 %v1719, %v1720
        %v1862 = vadd.f32 %v1861, %v1721
        %v1863 = vadd.f32 %v1862, %v1722
        %1864 = vadd.xlane.f32.xlu0 %v1863
        %v1865 = vpop.xlane.xlu0 %1864
        %v1866 = vadd.f32 %v1723, %v1724
        %v1867 = vadd.f32 %v1866, %v1725
        %v1868 = vadd.f32 %v1867, %v1726
        %1869 = vadd.xlane.f32.xlu0 %v1868
        %v1870 = vpop.xlane.xlu0 %1869
        %v1871 = vadd.f32 %v1727, %v1728
        %v1872 = vadd.f32 %v1871, %v1729
        %v1873 = vadd.f32 %v1872, %v1730
        %1874 = vadd.xlane.f32.xlu0 %v1873
        %v1875 = vpop.xlane.xlu0 %1874
        %v1876 = vadd.f32 %v1731, %v1732
        %v1877 = vadd.f32 %v1876, %v1733
        %v1878 = vadd.f32 %v1877, %v1734
        %1879 = vadd.xlane.f32.xlu0 %v1878
        %v1880 = vpop.xlane.xlu0 %1879
        %v1881 = vadd.f32 %v1735, %v1736
        %v1882 = vadd.f32 %v1881, %v1737
        %v1883 = vadd.f32 %v1882, %v1738
        %1884 = vadd.xlane.f32.xlu0 %v1883
        %v1885 = vpop.xlane.xlu0 %1884
        %v1886 = vadd.f32 %v1739, %v1740
        %v1887 = vadd.f32 %v1886, %v1741
        %v1888 = vadd.f32 %v1887, %v1742
        %1889 = vadd.xlane.f32.xlu0 %v1888
        %v1890 = vpop.xlane.xlu0 %1889
        %v1891 = vadd.f32 %v1743, %v1744
        %v1892 = vadd.f32 %v1891, %v1745
        %v1893 = vadd.f32 %v1892, %v1746
        %1894 = vadd.xlane.f32.xlu0 %v1893
        %v1895 = vpop.xlane.xlu0 %1894
        %v1896 = vadd.f32 %v1747, %v1748
        %v1897 = vadd.f32 %v1896, %v1749
        %v1898 = vadd.f32 %v1897, %v1750
        %1899 = vadd.xlane.f32.xlu0 %v1898
        %v1900 = vpop.xlane.xlu0 %1899
        %v1901 = vadd.f32 %v1751, %v1752
        %v1902 = vadd.f32 %v1901, %v1753
        %v1903 = vadd.f32 %v1902, %v1754
        %1904 = vadd.xlane.f32.xlu0 %v1903
        %v1905 = vpop.xlane.xlu0 %1904
        %v1906 = vadd.f32 %v1755, %v1756
        %v1907 = vadd.f32 %v1906, %v1757
        %v1908 = vadd.f32 %v1907, %v1758
        %1909 = vadd.xlane.f32.xlu0 %v1908
        %v1910 = vpop.xlane.xlu0 %1909
        %v1911 = vadd.f32 %v1759, %v1760
        %v1912 = vadd.f32 %v1911, %v1761
        %v1913 = vadd.f32 %v1912, %v1762
        %1914 = vadd.xlane.f32.xlu0 %v1913
        %v1915 = vpop.xlane.xlu0 %1914
        %v1916 = vadd.f32 %v1763, %v1764
        %v1917 = vadd.f32 %v1916, %v1765
        %v1918 = vadd.f32 %v1917, %v1766
        %1919 = vadd.xlane.f32.xlu0 %v1918
        %v1920 = vpop.xlane.xlu0 %1919
        %v1921 = vadd.f32 %v1767, %v1768
        %v1922 = vadd.f32 %v1921, %v1769
        %v1923 = vadd.f32 %v1922, %v1770
        %1924 = vadd.xlane.f32.xlu0 %v1923
        %v1925 = vpop.xlane.xlu0 %1924
        %v1926 = vadd.f32 %v1771, %v1772
        %v1927 = vadd.f32 %v1926, %v1773
        %v1928 = vadd.f32 %v1927, %v1774
        %1929 = vadd.xlane.f32.xlu0 %v1928
        %v1930 = vpop.xlane.xlu0 %1929
        %v1931 = vadd.f32 %v1775, %v1776
        %v1932 = vadd.f32 %v1931, %v1777
        %v1933 = vadd.f32 %v1932, %v1778
        %1934 = vadd.xlane.f32.xlu0 %v1933
        %v1935 = vpop.xlane.xlu0 %1934
        %v1936 = vadd.f32 %v1779, %v1780
        %v1937 = vadd.f32 %v1936, %v1781
        %v1938 = vadd.f32 %v1937, %v1782
        %1939 = vadd.xlane.f32.xlu0 %v1938
        %v1940 = vpop.xlane.xlu0 %1939
        %v1941 = vadd.f32 %v1783, %v1784
        %v1942 = vadd.f32 %v1941, %v1785
        %v1943 = vadd.f32 %v1942, %v1786
        %1944 = vadd.xlane.f32.xlu0 %v1943
        %v1945 = vpop.xlane.xlu0 %1944
        %v1946 = vadd.f32 %v1787, %v1788
        %v1947 = vadd.f32 %v1946, %v1789
        %v1948 = vadd.f32 %v1947, %v1790
        %1949 = vadd.xlane.f32.xlu0 %v1948
        %v1950 = vpop.xlane.xlu0 %1949
        %v1951 = vmax.f32 %v1795, 1.0
        %v1952 = vmax.f32 %v1800, 1.0
        %v1953 = vmax.f32 %v1805, 1.0
        %v1954 = vmax.f32 %v1810, 1.0
        %v1955 = vmax.f32 %v1815, 1.0
        %v1956 = vmax.f32 %v1820, 1.0
        %v1957 = vmax.f32 %v1825, 1.0
        %v1958 = vmax.f32 %v1830, 1.0
        %v1959 = vmax.f32 %v1835, 1.0
        %v1960 = vmax.f32 %v1840, 1.0
        %v1961 = vmax.f32 %v1845, 1.0
        %v1962 = vmax.f32 %v1850, 1.0
        %v1963 = vmax.f32 %v1855, 1.0
        %v1964 = vmax.f32 %v1860, 1.0
        %v1965 = vmax.f32 %v1865, 1.0
        %v1966 = vmax.f32 %v1870, 1.0
        %v1967 = vmax.f32 %v1875, 1.0
        %v1968 = vmax.f32 %v1880, 1.0
        %v1969 = vmax.f32 %v1885, 1.0
        %v1970 = vmax.f32 %v1890, 1.0
        %v1971 = vmax.f32 %v1895, 1.0
        %v1972 = vmax.f32 %v1900, 1.0
        %v1973 = vmax.f32 %v1905, 1.0
        %v1974 = vmax.f32 %v1910, 1.0
        %v1975 = vmax.f32 %v1915, 1.0
        %v1976 = vmax.f32 %v1920, 1.0
        %v1977 = vmax.f32 %v1925, 1.0
        %v1978 = vmax.f32 %v1930, 1.0
        %v1979 = vmax.f32 %v1935, 1.0
        %v1980 = vmax.f32 %v1940, 1.0
        %v1981 = vmax.f32 %v1945, 1.0
        %v1982 = vmax.f32 %v1950, 1.0
        %1983 = vmatpush.msra.mxu0 %v346
        %1984 = vmatpush.msra.mxu0 %v345
        %1985 = vmatpush.msra.mxu0 %v344
        %1986 = vmatpush.msra.mxu0 %v343
        %1987 = vmatpush.msra.mxu0 %v342
        %1988 = vmatpush.msra.mxu0 %v341
        %1989 = vmatpush.msra.mxu0 %v340
        %1990 = vmatpush.msra.mxu0 %v339
        %1991 = vmatpush.msra.mxu0 %v338
        %1992 = vmatpush.msra.mxu0 %v337
        %1993 = vmatpush.msra.mxu0 %v336
        %1994 = vmatpush.msra.mxu0 %v335
        %1995 = vmatpush.msra.mxu0 %v334
        %1996 = vmatpush.msra.mxu0 %v333
        %1997 = vmatpush.msra.mxu0 %v332
        %1998 = vmatpush.msra.mxu0 %v331
        %1999 = vmatmul.f32.gmra.mxu0 %v1663
        %v2000 = vpop.f32.mrf.mxu0
        %v2001 = vadd.f32 0.0, %v2000
        %2002 = vmatmul.f32.gmra.mxu0 %v1667
        %v2003 = vpop.f32.mrf.mxu0
        %v2004 = vadd.f32 0.0, %v2003
        %2005 = vmatmul.f32.gmra.mxu0 %v1671
        %v2006 = vpop.f32.mrf.mxu0
        %v2007 = vadd.f32 0.0, %v2006
        %2008 = vmatmul.f32.gmra.mxu0 %v1675
        %v2009 = vpop.f32.mrf.mxu0
        %v2010 = vadd.f32 0.0, %v2009
        %2011 = vmatmul.f32.gmra.mxu0 %v1679
        %v2012 = vpop.f32.mrf.mxu0
        %v2013 = vadd.f32 0.0, %v2012
        %2014 = vmatmul.f32.gmra.mxu0 %v1683
        %v2015 = vpop.f32.mrf.mxu0
        %v2016 = vadd.f32 0.0, %v2015
        %2017 = vmatmul.f32.gmra.mxu0 %v1687
        %v2018 = vpop.f32.mrf.mxu0
        %v2019 = vadd.f32 0.0, %v2018
        %2020 = vmatmul.f32.gmra.mxu0 %v1691
        %v2021 = vpop.f32.mrf.mxu0
        %v2022 = vadd.f32 0.0, %v2021
        %2023 = vmatmul.f32.gmra.mxu0 %v1695
        %v2024 = vpop.f32.mrf.mxu0
        %v2025 = vadd.f32 0.0, %v2024
        %2026 = vmatmul.f32.gmra.mxu0 %v1699
        %v2027 = vpop.f32.mrf.mxu0
        %v2028 = vadd.f32 0.0, %v2027
        %2029 = vmatmul.f32.gmra.mxu0 %v1703
        %v2030 = vpop.f32.mrf.mxu0
        %v2031 = vadd.f32 0.0, %v2030
        %2032 = vmatmul.f32.gmra.mxu0 %v1707
        %v2033 = vpop.f32.mrf.mxu0
        %v2034 = vadd.f32 0.0, %v2033
        %2035 = vmatmul.f32.gmra.mxu0 %v1711
        %v2036 = vpop.f32.mrf.mxu0
        %v2037 = vadd.f32 0.0, %v2036
        %2038 = vmatmul.f32.gmra.mxu0 %v1715
        %v2039 = vpop.f32.mrf.mxu0
        %v2040 = vadd.f32 0.0, %v2039
        %2041 = vmatmul.f32.gmra.mxu0 %v1719
        %v2042 = vpop.f32.mrf.mxu0
        %v2043 = vadd.f32 0.0, %v2042
        %2044 = vmatmul.f32.gmra.mxu0 %v1723
        %v2045 = vpop.f32.mrf.mxu0
        %v2046 = vadd.f32 0.0, %v2045
        %2047 = vmatmul.f32.gmra.mxu0 %v1727
        %v2048 = vpop.f32.mrf.mxu0
        %v2049 = vadd.f32 0.0, %v2048
        %2050 = vmatmul.f32.gmra.mxu0 %v1731
        %v2051 = vpop.f32.mrf.mxu0
        %v2052 = vadd.f32 0.0, %v2051
        %2053 = vmatmul.f32.gmra.mxu0 %v1735
        %v2054 = vpop.f32.mrf.mxu0
        %v2055 = vadd.f32 0.0, %v2054
        %2056 = vmatmul.f32.gmra.mxu0 %v1739
        %v2057 = vpop.f32.mrf.mxu0
        %v2058 = vadd.f32 0.0, %v2057
        %2059 = vmatmul.f32.gmra.mxu0 %v1743
        %v2060 = vpop.f32.mrf.mxu0
        %v2061 = vadd.f32 0.0, %v2060
        %2062 = vmatmul.f32.gmra.mxu0 %v1747
        %v2063 = vpop.f32.mrf.mxu0
        %v2064 = vadd.f32 0.0, %v2063
        %2065 = vmatmul.f32.gmra.mxu0 %v1751
        %v2066 = vpop.f32.mrf.mxu0
        %v2067 = vadd.f32 0.0, %v2066
        %2068 = vmatmul.f32.gmra.mxu0 %v1755
        %v2069 = vpop.f32.mrf.mxu0
        %v2070 = vadd.f32 0.0, %v2069
        %2071 = vmatmul.f32.gmra.mxu0 %v1759
        %v2072 = vpop.f32.mrf.mxu0
        %v2073 = vadd.f32 0.0, %v2072
        %2074 = vmatmul.f32.gmra.mxu0 %v1763
        %v2075 = vpop.f32.mrf.mxu0
        %v2076 = vadd.f32 0.0, %v2075
        %2077 = vmatmul.f32.gmra.mxu0 %v1767
        %v2078 = vpop.f32.mrf.mxu0
        %v2079 = vadd.f32 0.0, %v2078
        %2080 = vmatmul.f32.gmra.mxu0 %v1771
        %v2081 = vpop.f32.mrf.mxu0
        %v2082 = vadd.f32 0.0, %v2081
        %2083 = vmatmul.f32.gmra.mxu0 %v1775
        %v2084 = vpop.f32.mrf.mxu0
        %v2085 = vadd.f32 0.0, %v2084
        %2086 = vmatmul.f32.gmra.mxu0 %v1779
        %v2087 = vpop.f32.mrf.mxu0
        %v2088 = vadd.f32 0.0, %v2087
        %2089 = vmatmul.f32.gmra.mxu0 %v1783
        %v2090 = vpop.f32.mrf.mxu0
        %v2091 = vadd.f32 0.0, %v2090
        %2092 = vmatmul.f32.gmra.mxu0 %v1787
        %v2093 = vpop.f32.mrf.mxu0
        %v2094 = vadd.f32 0.0, %v2093
        %2095 = vdwg.mxu0
        %2096 = vmatpush.msra.mxu0 %v362
        %2097 = vmatpush.msra.mxu0 %v361
        %2098 = vmatpush.msra.mxu0 %v360
        %2099 = vmatpush.msra.mxu0 %v359
        %2100 = vmatpush.msra.mxu0 %v358
        %2101 = vmatpush.msra.mxu0 %v357
        %2102 = vmatpush.msra.mxu0 %v356
        %2103 = vmatpush.msra.mxu0 %v355
        %2104 = vmatpush.msra.mxu0 %v354
        %2105 = vmatpush.msra.mxu0 %v353
        %2106 = vmatpush.msra.mxu0 %v352
        %2107 = vmatpush.msra.mxu0 %v351
        %2108 = vmatpush.msra.mxu0 %v350
        %2109 = vmatpush.msra.mxu0 %v349
        %2110 = vmatpush.msra.mxu0 %v348
        %2111 = vmatpush.msra.mxu0 %v347
        %2112 = vmatmul.f32.gmra.mxu0 %v1664
        %v2113 = vpop.f32.mrf.mxu0
        %v2114 = vadd.f32 %v2001, %v2113
        %2115 = vmatmul.f32.gmra.mxu0 %v1668
        %v2116 = vpop.f32.mrf.mxu0
        %v2117 = vadd.f32 %v2004, %v2116
        %2118 = vmatmul.f32.gmra.mxu0 %v1672
        %v2119 = vpop.f32.mrf.mxu0
        %v2120 = vadd.f32 %v2007, %v2119
        %2121 = vmatmul.f32.gmra.mxu0 %v1676
        %v2122 = vpop.f32.mrf.mxu0
        %v2123 = vadd.f32 %v2010, %v2122
        %2124 = vmatmul.f32.gmra.mxu0 %v1680
        %v2125 = vpop.f32.mrf.mxu0
        %v2126 = vadd.f32 %v2013, %v2125
        %2127 = vmatmul.f32.gmra.mxu0 %v1684
        %v2128 = vpop.f32.mrf.mxu0
        %v2129 = vadd.f32 %v2016, %v2128
        %2130 = vmatmul.f32.gmra.mxu0 %v1688
        %v2131 = vpop.f32.mrf.mxu0
        %v2132 = vadd.f32 %v2019, %v2131
        %2133 = vmatmul.f32.gmra.mxu0 %v1692
        %v2134 = vpop.f32.mrf.mxu0
        %v2135 = vadd.f32 %v2022, %v2134
        %2136 = vmatmul.f32.gmra.mxu0 %v1696
        %v2137 = vpop.f32.mrf.mxu0
        %v2138 = vadd.f32 %v2025, %v2137
        %2139 = vmatmul.f32.gmra.mxu0 %v1700
        %v2140 = vpop.f32.mrf.mxu0
        %v2141 = vadd.f32 %v2028, %v2140
        %2142 = vmatmul.f32.gmra.mxu0 %v1704
        %v2143 = vpop.f32.mrf.mxu0
        %v2144 = vadd.f32 %v2031, %v2143
        %2145 = vmatmul.f32.gmra.mxu0 %v1708
        %v2146 = vpop.f32.mrf.mxu0
        %v2147 = vadd.f32 %v2034, %v2146
        %2148 = vmatmul.f32.gmra.mxu0 %v1712
        %v2149 = vpop.f32.mrf.mxu0
        %v2150 = vadd.f32 %v2037, %v2149
        %2151 = vmatmul.f32.gmra.mxu0 %v1716
        %v2152 = vpop.f32.mrf.mxu0
        %v2153 = vadd.f32 %v2040, %v2152
        %2154 = vmatmul.f32.gmra.mxu0 %v1720
        %v2155 = vpop.f32.mrf.mxu0
        %v2156 = vadd.f32 %v2043, %v2155
        %2157 = vmatmul.f32.gmra.mxu0 %v1724
        %v2158 = vpop.f32.mrf.mxu0
        %v2159 = vadd.f32 %v2046, %v2158
        %2160 = vmatmul.f32.gmra.mxu0 %v1728
        %v2161 = vpop.f32.mrf.mxu0
        %v2162 = vadd.f32 %v2049, %v2161
        %2163 = vmatmul.f32.gmra.mxu0 %v1732
        %v2164 = vpop.f32.mrf.mxu0
        %v2165 = vadd.f32 %v2052, %v2164
        %2166 = vmatmul.f32.gmra.mxu0 %v1736
        %v2167 = vpop.f32.mrf.mxu0
        %v2168 = vadd.f32 %v2055, %v2167
        %2169 = vmatmul.f32.gmra.mxu0 %v1740
        %v2170 = vpop.f32.mrf.mxu0
        %v2171 = vadd.f32 %v2058, %v2170
        %2172 = vmatmul.f32.gmra.mxu0 %v1744
        %v2173 = vpop.f32.mrf.mxu0
        %v2174 = vadd.f32 %v2061, %v2173
        %2175 = vmatmul.f32.gmra.mxu0 %v1748
        %v2176 = vpop.f32.mrf.mxu0
        %v2177 = vadd.f32 %v2064, %v2176
        %2178 = vmatmul.f32.gmra.mxu0 %v1752
        %v2179 = vpop.f32.mrf.mxu0
        %v2180 = vadd.f32 %v2067, %v2179
        %2181 = vmatmul.f32.gmra.mxu0 %v1756
        %v2182 = vpop.f32.mrf.mxu0
        %v2183 = vadd.f32 %v2070, %v2182
        %2184 = vmatmul.f32.gmra.mxu0 %v1760
        %v2185 = vpop.f32.mrf.mxu0
        %v2186 = vadd.f32 %v2073, %v2185
        %2187 = vmatmul.f32.gmra.mxu0 %v1764
        %v2188 = vpop.f32.mrf.mxu0
        %v2189 = vadd.f32 %v2076, %v2188
        %2190 = vmatmul.f32.gmra.mxu0 %v1768
        %v2191 = vpop.f32.mrf.mxu0
        %v2192 = vadd.f32 %v2079, %v2191
        %2193 = vmatmul.f32.gmra.mxu0 %v1772
        %v2194 = vpop.f32.mrf.mxu0
        %v2195 = vadd.f32 %v2082, %v2194
        %2196 = vmatmul.f32.gmra.mxu0 %v1776
        %v2197 = vpop.f32.mrf.mxu0
        %v2198 = vadd.f32 %v2085, %v2197
        %2199 = vmatmul.f32.gmra.mxu0 %v1780
        %v2200 = vpop.f32.mrf.mxu0
        %v2201 = vadd.f32 %v2088, %v2200
        %2202 = vmatmul.f32.gmra.mxu0 %v1784
        %v2203 = vpop.f32.mrf.mxu0
        %v2204 = vadd.f32 %v2091, %v2203
        %2205 = vmatmul.f32.gmra.mxu0 %v1788
        %v2206 = vpop.f32.mrf.mxu0
        %v2207 = vadd.f32 %v2094, %v2206
        %2208 = vdwg.mxu0
        %2209 = vmatpush.msra.mxu0 %v378
        %2210 = vmatpush.msra.mxu0 %v377
        %2211 = vmatpush.msra.mxu0 %v376
        %2212 = vmatpush.msra.mxu0 %v375
        %2213 = vmatpush.msra.mxu0 %v374
        %2214 = vmatpush.msra.mxu0 %v373
        %2215 = vmatpush.msra.mxu0 %v372
        %2216 = vmatpush.msra.mxu0 %v371
        %2217 = vmatpush.msra.mxu0 %v370
        %2218 = vmatpush.msra.mxu0 %v369
        %2219 = vmatpush.msra.mxu0 %v368
        %2220 = vmatpush.msra.mxu0 %v367
        %2221 = vmatpush.msra.mxu0 %v366
        %2222 = vmatpush.msra.mxu0 %v365
        %2223 = vmatpush.msra.mxu0 %v364
        %2224 = vmatpush.msra.mxu0 %v363
        %2225 = vmatmul.f32.gmra.mxu0 %v1665
        %v2226 = vpop.f32.mrf.mxu0
        %v2227 = vadd.f32 %v2114, %v2226
        %2228 = vmatmul.f32.gmra.mxu0 %v1669
        %v2229 = vpop.f32.mrf.mxu0
        %v2230 = vadd.f32 %v2117, %v2229
        %2231 = vmatmul.f32.gmra.mxu0 %v1673
        %v2232 = vpop.f32.mrf.mxu0
        %v2233 = vadd.f32 %v2120, %v2232
        %2234 = vmatmul.f32.gmra.mxu0 %v1677
        %v2235 = vpop.f32.mrf.mxu0
        %v2236 = vadd.f32 %v2123, %v2235
        %2237 = vmatmul.f32.gmra.mxu0 %v1681
        %v2238 = vpop.f32.mrf.mxu0
        %v2239 = vadd.f32 %v2126, %v2238
        %2240 = vmatmul.f32.gmra.mxu0 %v1685
        %v2241 = vpop.f32.mrf.mxu0
        %v2242 = vadd.f32 %v2129, %v2241
        %2243 = vmatmul.f32.gmra.mxu0 %v1689
        %v2244 = vpop.f32.mrf.mxu0
        %v2245 = vadd.f32 %v2132, %v2244
        %2246 = vmatmul.f32.gmra.mxu0 %v1693
        %v2247 = vpop.f32.mrf.mxu0
        %v2248 = vadd.f32 %v2135, %v2247
        %2249 = vmatmul.f32.gmra.mxu0 %v1697
        %v2250 = vpop.f32.mrf.mxu0
        %v2251 = vadd.f32 %v2138, %v2250
        %2252 = vmatmul.f32.gmra.mxu0 %v1701
        %v2253 = vpop.f32.mrf.mxu0
        %v2254 = vadd.f32 %v2141, %v2253
        %2255 = vmatmul.f32.gmra.mxu0 %v1705
        %v2256 = vpop.f32.mrf.mxu0
        %v2257 = vadd.f32 %v2144, %v2256
        %2258 = vmatmul.f32.gmra.mxu0 %v1709
        %v2259 = vpop.f32.mrf.mxu0
        %v2260 = vadd.f32 %v2147, %v2259
        %2261 = vmatmul.f32.gmra.mxu0 %v1713
        %v2262 = vpop.f32.mrf.mxu0
        %v2263 = vadd.f32 %v2150, %v2262
        %2264 = vmatmul.f32.gmra.mxu0 %v1717
        %v2265 = vpop.f32.mrf.mxu0
        %v2266 = vadd.f32 %v2153, %v2265
        %2267 = vmatmul.f32.gmra.mxu0 %v1721
        %v2268 = vpop.f32.mrf.mxu0
        %v2269 = vadd.f32 %v2156, %v2268
        %2270 = vmatmul.f32.gmra.mxu0 %v1725
        %v2271 = vpop.f32.mrf.mxu0
        %v2272 = vadd.f32 %v2159, %v2271
        %2273 = vmatmul.f32.gmra.mxu0 %v1729
        %v2274 = vpop.f32.mrf.mxu0
        %v2275 = vadd.f32 %v2162, %v2274
        %2276 = vmatmul.f32.gmra.mxu0 %v1733
        %v2277 = vpop.f32.mrf.mxu0
        %v2278 = vadd.f32 %v2165, %v2277
        %2279 = vmatmul.f32.gmra.mxu0 %v1737
        %v2280 = vpop.f32.mrf.mxu0
        %v2281 = vadd.f32 %v2168, %v2280
        %2282 = vmatmul.f32.gmra.mxu0 %v1741
        %v2283 = vpop.f32.mrf.mxu0
        %v2284 = vadd.f32 %v2171, %v2283
        %2285 = vmatmul.f32.gmra.mxu0 %v1745
        %v2286 = vpop.f32.mrf.mxu0
        %v2287 = vadd.f32 %v2174, %v2286
        %2288 = vmatmul.f32.gmra.mxu0 %v1749
        %v2289 = vpop.f32.mrf.mxu0
        %v2290 = vadd.f32 %v2177, %v2289
        %2291 = vmatmul.f32.gmra.mxu0 %v1753
        %v2292 = vpop.f32.mrf.mxu0
        %v2293 = vadd.f32 %v2180, %v2292
        %2294 = vmatmul.f32.gmra.mxu0 %v1757
        %v2295 = vpop.f32.mrf.mxu0
        %v2296 = vadd.f32 %v2183, %v2295
        %2297 = vmatmul.f32.gmra.mxu0 %v1761
        %v2298 = vpop.f32.mrf.mxu0
        %v2299 = vadd.f32 %v2186, %v2298
        %2300 = vmatmul.f32.gmra.mxu0 %v1765
        %v2301 = vpop.f32.mrf.mxu0
        %v2302 = vadd.f32 %v2189, %v2301
        %2303 = vmatmul.f32.gmra.mxu0 %v1769
        %v2304 = vpop.f32.mrf.mxu0
        %v2305 = vadd.f32 %v2192, %v2304
        %2306 = vmatmul.f32.gmra.mxu0 %v1773
        %v2307 = vpop.f32.mrf.mxu0
        %v2308 = vadd.f32 %v2195, %v2307
        %2309 = vmatmul.f32.gmra.mxu0 %v1777
        %v2310 = vpop.f32.mrf.mxu0
        %v2311 = vadd.f32 %v2198, %v2310
        %2312 = vmatmul.f32.gmra.mxu0 %v1781
        %v2313 = vpop.f32.mrf.mxu0
        %v2314 = vadd.f32 %v2201, %v2313
        %2315 = vmatmul.f32.gmra.mxu0 %v1785
        %v2316 = vpop.f32.mrf.mxu0
        %v2317 = vadd.f32 %v2204, %v2316
        %2318 = vmatmul.f32.gmra.mxu0 %v1789
        %v2319 = vpop.f32.mrf.mxu0
        %v2320 = vadd.f32 %v2207, %v2319
        %2321 = vdwg.mxu0
        %2322 = vmatpush.msra.mxu0 %v394
        %2323 = vmatpush.msra.mxu0 %v393
        %2324 = vmatpush.msra.mxu0 %v392
        %2325 = vmatpush.msra.mxu0 %v391
        %2326 = vmatpush.msra.mxu0 %v390
        %2327 = vmatpush.msra.mxu0 %v389
        %2328 = vmatpush.msra.mxu0 %v388
        %2329 = vmatpush.msra.mxu0 %v387
        %2330 = vmatpush.msra.mxu0 %v386
        %2331 = vmatpush.msra.mxu0 %v385
        %2332 = vmatpush.msra.mxu0 %v384
        %2333 = vmatpush.msra.mxu0 %v383
        %2334 = vmatpush.msra.mxu0 %v382
        %2335 = vmatpush.msra.mxu0 %v381
        %2336 = vmatpush.msra.mxu0 %v380
        %2337 = vmatpush.msra.mxu0 %v379
        %2338 = vmatmul.f32.gmra.mxu0 %v1666
        %v2339 = vpop.f32.mrf.mxu0
        %v2340 = vadd.f32 %v2227, %v2339
        %2341 = vmatmul.f32.gmra.mxu0 %v1670
        %v2342 = vpop.f32.mrf.mxu0
        %v2343 = vadd.f32 %v2230, %v2342
        %2344 = vmatmul.f32.gmra.mxu0 %v1674
        %v2345 = vpop.f32.mrf.mxu0
        %v2346 = vadd.f32 %v2233, %v2345
        %2347 = vmatmul.f32.gmra.mxu0 %v1678
        %v2348 = vpop.f32.mrf.mxu0
        %v2349 = vadd.f32 %v2236, %v2348
        %2350 = vmatmul.f32.gmra.mxu0 %v1682
        %v2351 = vpop.f32.mrf.mxu0
        %v2352 = vadd.f32 %v2239, %v2351
        %2353 = vmatmul.f32.gmra.mxu0 %v1686
        %v2354 = vpop.f32.mrf.mxu0
        %v2355 = vadd.f32 %v2242, %v2354
        %2356 = vmatmul.f32.gmra.mxu0 %v1690
        %v2357 = vpop.f32.mrf.mxu0
        %v2358 = vadd.f32 %v2245, %v2357
        %2359 = vmatmul.f32.gmra.mxu0 %v1694
        %v2360 = vpop.f32.mrf.mxu0
        %v2361 = vadd.f32 %v2248, %v2360
        %2362 = vmatmul.f32.gmra.mxu0 %v1698
        %v2363 = vpop.f32.mrf.mxu0
        %v2364 = vadd.f32 %v2251, %v2363
        %2365 = vmatmul.f32.gmra.mxu0 %v1702
        %v2366 = vpop.f32.mrf.mxu0
        %v2367 = vadd.f32 %v2254, %v2366
        %2368 = vmatmul.f32.gmra.mxu0 %v1706
        %v2369 = vpop.f32.mrf.mxu0
        %v2370 = vadd.f32 %v2257, %v2369
        %2371 = vmatmul.f32.gmra.mxu0 %v1710
        %v2372 = vpop.f32.mrf.mxu0
        %v2373 = vadd.f32 %v2260, %v2372
        %2374 = vmatmul.f32.gmra.mxu0 %v1714
        %v2375 = vpop.f32.mrf.mxu0
        %v2376 = vadd.f32 %v2263, %v2375
        %2377 = vmatmul.f32.gmra.mxu0 %v1718
        %v2378 = vpop.f32.mrf.mxu0
        %v2379 = vadd.f32 %v2266, %v2378
        %2380 = vmatmul.f32.gmra.mxu0 %v1722
        %v2381 = vpop.f32.mrf.mxu0
        %v2382 = vadd.f32 %v2269, %v2381
        %2383 = vmatmul.f32.gmra.mxu0 %v1726
        %v2384 = vpop.f32.mrf.mxu0
        %v2385 = vadd.f32 %v2272, %v2384
        %2386 = vmatmul.f32.gmra.mxu0 %v1730
        %v2387 = vpop.f32.mrf.mxu0
        %v2388 = vadd.f32 %v2275, %v2387
        %2389 = vmatmul.f32.gmra.mxu0 %v1734
        %v2390 = vpop.f32.mrf.mxu0
        %v2391 = vadd.f32 %v2278, %v2390
        %2392 = vmatmul.f32.gmra.mxu0 %v1738
        %v2393 = vpop.f32.mrf.mxu0
        %v2394 = vadd.f32 %v2281, %v2393
        %2395 = vmatmul.f32.gmra.mxu0 %v1742
        %v2396 = vpop.f32.mrf.mxu0
        %v2397 = vadd.f32 %v2284, %v2396
        %2398 = vmatmul.f32.gmra.mxu0 %v1746
        %v2399 = vpop.f32.mrf.mxu0
        %v2400 = vadd.f32 %v2287, %v2399
        %2401 = vmatmul.f32.gmra.mxu0 %v1750
        %v2402 = vpop.f32.mrf.mxu0
        %v2403 = vadd.f32 %v2290, %v2402
        %2404 = vmatmul.f32.gmra.mxu0 %v1754
        %v2405 = vpop.f32.mrf.mxu0
        %v2406 = vadd.f32 %v2293, %v2405
        %2407 = vmatmul.f32.gmra.mxu0 %v1758
        %v2408 = vpop.f32.mrf.mxu0
        %v2409 = vadd.f32 %v2296, %v2408
        %2410 = vmatmul.f32.gmra.mxu0 %v1762
        %v2411 = vpop.f32.mrf.mxu0
        %v2412 = vadd.f32 %v2299, %v2411
        %2413 = vmatmul.f32.gmra.mxu0 %v1766
        %v2414 = vpop.f32.mrf.mxu0
        %v2415 = vadd.f32 %v2302, %v2414
        %2416 = vmatmul.f32.gmra.mxu0 %v1770
        %v2417 = vpop.f32.mrf.mxu0
        %v2418 = vadd.f32 %v2305, %v2417
        %2419 = vmatmul.f32.gmra.mxu0 %v1774
        %v2420 = vpop.f32.mrf.mxu0
        %v2421 = vadd.f32 %v2308, %v2420
        %2422 = vmatmul.f32.gmra.mxu0 %v1778
        %v2423 = vpop.f32.mrf.mxu0
        %v2424 = vadd.f32 %v2311, %v2423
        %2425 = vmatmul.f32.gmra.mxu0 %v1782
        %v2426 = vpop.f32.mrf.mxu0
        %v2427 = vadd.f32 %v2314, %v2426
        %2428 = vmatmul.f32.gmra.mxu0 %v1786
        %v2429 = vpop.f32.mrf.mxu0
        %v2430 = vadd.f32 %v2317, %v2429
        %2431 = vmatmul.f32.gmra.mxu0 %v1790
        %v2432 = vpop.f32.mrf.mxu0
        %v2433 = vadd.f32 %v2320, %v2432
        %2434 = vdwg.mxu0
        %v2435 = vrcp.pop %v1951
        %v2436 = vmul.f32 %v1951, %v2435
        %v2437 = vsub.f32 1.0, %v2436
        %v2438 = vmul.f32 %v2435, %v2437
        %v2439 = vadd.f32 %v2435, %v2438
        %vm2440 = vweird.f32 %v1951
        %vm2441 = vweird.f32 %v2435
        %vm2442 = vmor %vm2440, %vm2441
        %v2443 = vsel %vm2442, %v2435, %v2439
        %v2444 = vand.u32 2147483647, %v1951
        %vm2445 = vcmp.eq.f32.partialorder %v2444, 8.507059e+37
        %v2446 = vand.u32 %v1951, 2147483648
        %v2447 = vor.u32 1.1754944e-38, %v2446
        %v2448 = vsel %vm2445, %v2447, %v2443
        %v2449 = vrcp.pop %v1952
        %v2450 = vmul.f32 %v1952, %v2449
        %v2451 = vsub.f32 1.0, %v2450
        %v2452 = vmul.f32 %v2449, %v2451
        %v2453 = vadd.f32 %v2449, %v2452
        %vm2454 = vweird.f32 %v1952
        %vm2455 = vweird.f32 %v2449
        %vm2456 = vmor %vm2454, %vm2455
        %v2457 = vsel %vm2456, %v2449, %v2453
        %v2458 = vand.u32 2147483647, %v1952
        %vm2459 = vcmp.eq.f32.partialorder %v2458, 8.507059e+37
        %v2460 = vand.u32 %v1952, 2147483648
        %v2461 = vor.u32 1.1754944e-38, %v2460
        %v2462 = vsel %vm2459, %v2461, %v2457
        %v2463 = vrcp.pop %v1953
        %v2464 = vmul.f32 %v1953, %v2463
        %v2465 = vsub.f32 1.0, %v2464
        %v2466 = vmul.f32 %v2463, %v2465
        %v2467 = vadd.f32 %v2463, %v2466
        %vm2468 = vweird.f32 %v1953
        %vm2469 = vweird.f32 %v2463
        %vm2470 = vmor %vm2468, %vm2469
        %v2471 = vsel %vm2470, %v2463, %v2467
        %v2472 = vand.u32 2147483647, %v1953
        %vm2473 = vcmp.eq.f32.partialorder %v2472, 8.507059e+37
        %v2474 = vand.u32 %v1953, 2147483648
        %v2475 = vor.u32 1.1754944e-38, %v2474
        %v2476 = vsel %vm2473, %v2475, %v2471
        %v2477 = vrcp.pop %v1954
        %v2478 = vmul.f32 %v1954, %v2477
        %v2479 = vsub.f32 1.0, %v2478
        %v2480 = vmul.f32 %v2477, %v2479
        %v2481 = vadd.f32 %v2477, %v2480
        %vm2482 = vweird.f32 %v1954
        %vm2483 = vweird.f32 %v2477
        %vm2484 = vmor %vm2482, %vm2483
        %v2485 = vsel %vm2484, %v2477, %v2481
        %v2486 = vand.u32 2147483647, %v1954
        %vm2487 = vcmp.eq.f32.partialorder %v2486, 8.507059e+37
        %v2488 = vand.u32 %v1954, 2147483648
        %v2489 = vor.u32 1.1754944e-38, %v2488
        %v2490 = vsel %vm2487, %v2489, %v2485
        %v2491 = vrcp.pop %v1955
        %v2492 = vmul.f32 %v1955, %v2491
        %v2493 = vsub.f32 1.0, %v2492
        %v2494 = vmul.f32 %v2491, %v2493
        %v2495 = vadd.f32 %v2491, %v2494
        %vm2496 = vweird.f32 %v1955
        %vm2497 = vweird.f32 %v2491
        %vm2498 = vmor %vm2496, %vm2497
        %v2499 = vsel %vm2498, %v2491, %v2495
        %v2500 = vand.u32 2147483647, %v1955
        %vm2501 = vcmp.eq.f32.partialorder %v2500, 8.507059e+37
        %v2502 = vand.u32 %v1955, 2147483648
        %v2503 = vor.u32 1.1754944e-38, %v2502
        %v2504 = vsel %vm2501, %v2503, %v2499
        %v2505 = vrcp.pop %v1956
        %v2506 = vmul.f32 %v1956, %v2505
        %v2507 = vsub.f32 1.0, %v2506
        %v2508 = vmul.f32 %v2505, %v2507
        %v2509 = vadd.f32 %v2505, %v2508
        %vm2510 = vweird.f32 %v1956
        %vm2511 = vweird.f32 %v2505
        %vm2512 = vmor %vm2510, %vm2511
        %v2513 = vsel %vm2512, %v2505, %v2509
        %v2514 = vand.u32 2147483647, %v1956
        %vm2515 = vcmp.eq.f32.partialorder %v2514, 8.507059e+37
        %v2516 = vand.u32 %v1956, 2147483648
        %v2517 = vor.u32 1.1754944e-38, %v2516
        %v2518 = vsel %vm2515, %v2517, %v2513
        %v2519 = vrcp.pop %v1957
        %v2520 = vmul.f32 %v1957, %v2519
        %v2521 = vsub.f32 1.0, %v2520
        %v2522 = vmul.f32 %v2519, %v2521
        %v2523 = vadd.f32 %v2519, %v2522
        %vm2524 = vweird.f32 %v1957
        %vm2525 = vweird.f32 %v2519
        %vm2526 = vmor %vm2524, %vm2525
        %v2527 = vsel %vm2526, %v2519, %v2523
        %v2528 = vand.u32 2147483647, %v1957
        %vm2529 = vcmp.eq.f32.partialorder %v2528, 8.507059e+37
        %v2530 = vand.u32 %v1957, 2147483648
        %v2531 = vor.u32 1.1754944e-38, %v2530
        %v2532 = vsel %vm2529, %v2531, %v2527
        %v2533 = vrcp.pop %v1958
        %v2534 = vmul.f32 %v1958, %v2533
        %v2535 = vsub.f32 1.0, %v2534
        %v2536 = vmul.f32 %v2533, %v2535
        %v2537 = vadd.f32 %v2533, %v2536
        %vm2538 = vweird.f32 %v1958
        %vm2539 = vweird.f32 %v2533
        %vm2540 = vmor %vm2538, %vm2539
        %v2541 = vsel %vm2540, %v2533, %v2537
        %v2542 = vand.u32 2147483647, %v1958
        %vm2543 = vcmp.eq.f32.partialorder %v2542, 8.507059e+37
        %v2544 = vand.u32 %v1958, 2147483648
        %v2545 = vor.u32 1.1754944e-38, %v2544
        %v2546 = vsel %vm2543, %v2545, %v2541
        %v2547 = vrcp.pop %v1959
        %v2548 = vmul.f32 %v1959, %v2547
        %v2549 = vsub.f32 1.0, %v2548
        %v2550 = vmul.f32 %v2547, %v2549
        %v2551 = vadd.f32 %v2547, %v2550
        %vm2552 = vweird.f32 %v1959
        %vm2553 = vweird.f32 %v2547
        %vm2554 = vmor %vm2552, %vm2553
        %v2555 = vsel %vm2554, %v2547, %v2551
        %v2556 = vand.u32 2147483647, %v1959
        %vm2557 = vcmp.eq.f32.partialorder %v2556, 8.507059e+37
        %v2558 = vand.u32 %v1959, 2147483648
        %v2559 = vor.u32 1.1754944e-38, %v2558
        %v2560 = vsel %vm2557, %v2559, %v2555
        %v2561 = vrcp.pop %v1960
        %v2562 = vmul.f32 %v1960, %v2561
        %v2563 = vsub.f32 1.0, %v2562
        %v2564 = vmul.f32 %v2561, %v2563
        %v2565 = vadd.f32 %v2561, %v2564
        %vm2566 = vweird.f32 %v1960
        %vm2567 = vweird.f32 %v2561
        %vm2568 = vmor %vm2566, %vm2567
        %v2569 = vsel %vm2568, %v2561, %v2565
        %v2570 = vand.u32 2147483647, %v1960
        %vm2571 = vcmp.eq.f32.partialorder %v2570, 8.507059e+37
        %v2572 = vand.u32 %v1960, 2147483648
        %v2573 = vor.u32 1.1754944e-38, %v2572
        %v2574 = vsel %vm2571, %v2573, %v2569
        %v2575 = vrcp.pop %v1961
        %v2576 = vmul.f32 %v1961, %v2575
        %v2577 = vsub.f32 1.0, %v2576
        %v2578 = vmul.f32 %v2575, %v2577
        %v2579 = vadd.f32 %v2575, %v2578
        %vm2580 = vweird.f32 %v1961
        %vm2581 = vweird.f32 %v2575
        %vm2582 = vmor %vm2580, %vm2581
        %v2583 = vsel %vm2582, %v2575, %v2579
        %v2584 = vand.u32 2147483647, %v1961
        %vm2585 = vcmp.eq.f32.partialorder %v2584, 8.507059e+37
        %v2586 = vand.u32 %v1961, 2147483648
        %v2587 = vor.u32 1.1754944e-38, %v2586
        %v2588 = vsel %vm2585, %v2587, %v2583
        %v2589 = vrcp.pop %v1962
        %v2590 = vmul.f32 %v1962, %v2589
        %v2591 = vsub.f32 1.0, %v2590
        %v2592 = vmul.f32 %v2589, %v2591
        %v2593 = vadd.f32 %v2589, %v2592
        %vm2594 = vweird.f32 %v1962
        %vm2595 = vweird.f32 %v2589
        %vm2596 = vmor %vm2594, %vm2595
        %v2597 = vsel %vm2596, %v2589, %v2593
        %v2598 = vand.u32 2147483647, %v1962
        %vm2599 = vcmp.eq.f32.partialorder %v2598, 8.507059e+37
        %v2600 = vand.u32 %v1962, 2147483648
        %v2601 = vor.u32 1.1754944e-38, %v2600
        %v2602 = vsel %vm2599, %v2601, %v2597
        %v2603 = vrcp.pop %v1963
        %v2604 = vmul.f32 %v1963, %v2603
        %v2605 = vsub.f32 1.0, %v2604
        %v2606 = vmul.f32 %v2603, %v2605
        %v2607 = vadd.f32 %v2603, %v2606
        %vm2608 = vweird.f32 %v1963
        %vm2609 = vweird.f32 %v2603
        %vm2610 = vmor %vm2608, %vm2609
        %v2611 = vsel %vm2610, %v2603, %v2607
        %v2612 = vand.u32 2147483647, %v1963
        %vm2613 = vcmp.eq.f32.partialorder %v2612, 8.507059e+37
        %v2614 = vand.u32 %v1963, 2147483648
        %v2615 = vor.u32 1.1754944e-38, %v2614
        %v2616 = vsel %vm2613, %v2615, %v2611
        %v2617 = vrcp.pop %v1964
        %v2618 = vmul.f32 %v1964, %v2617
        %v2619 = vsub.f32 1.0, %v2618
        %v2620 = vmul.f32 %v2617, %v2619
        %v2621 = vadd.f32 %v2617, %v2620
        %vm2622 = vweird.f32 %v1964
        %vm2623 = vweird.f32 %v2617
        %vm2624 = vmor %vm2622, %vm2623
        %v2625 = vsel %vm2624, %v2617, %v2621
        %v2626 = vand.u32 2147483647, %v1964
        %vm2627 = vcmp.eq.f32.partialorder %v2626, 8.507059e+37
        %v2628 = vand.u32 %v1964, 2147483648
        %v2629 = vor.u32 1.1754944e-38, %v2628
        %v2630 = vsel %vm2627, %v2629, %v2625
        %v2631 = vrcp.pop %v1965
        %v2632 = vmul.f32 %v1965, %v2631
        %v2633 = vsub.f32 1.0, %v2632
        %v2634 = vmul.f32 %v2631, %v2633
        %v2635 = vadd.f32 %v2631, %v2634
        %vm2636 = vweird.f32 %v1965
        %vm2637 = vweird.f32 %v2631
        %vm2638 = vmor %vm2636, %vm2637
        %v2639 = vsel %vm2638, %v2631, %v2635
        %v2640 = vand.u32 2147483647, %v1965
        %vm2641 = vcmp.eq.f32.partialorder %v2640, 8.507059e+37
        %v2642 = vand.u32 %v1965, 2147483648
        %v2643 = vor.u32 1.1754944e-38, %v2642
        %v2644 = vsel %vm2641, %v2643, %v2639
        %v2645 = vrcp.pop %v1966
        %v2646 = vmul.f32 %v1966, %v2645
        %v2647 = vsub.f32 1.0, %v2646
        %v2648 = vmul.f32 %v2645, %v2647
        %v2649 = vadd.f32 %v2645, %v2648
        %vm2650 = vweird.f32 %v1966
        %vm2651 = vweird.f32 %v2645
        %vm2652 = vmor %vm2650, %vm2651
        %v2653 = vsel %vm2652, %v2645, %v2649
        %v2654 = vand.u32 2147483647, %v1966
        %vm2655 = vcmp.eq.f32.partialorder %v2654, 8.507059e+37
        %v2656 = vand.u32 %v1966, 2147483648
        %v2657 = vor.u32 1.1754944e-38, %v2656
        %v2658 = vsel %vm2655, %v2657, %v2653
        %v2659 = vrcp.pop %v1967
        %v2660 = vmul.f32 %v1967, %v2659
        %v2661 = vsub.f32 1.0, %v2660
        %v2662 = vmul.f32 %v2659, %v2661
        %v2663 = vadd.f32 %v2659, %v2662
        %vm2664 = vweird.f32 %v1967
        %vm2665 = vweird.f32 %v2659
        %vm2666 = vmor %vm2664, %vm2665
        %v2667 = vsel %vm2666, %v2659, %v2663
        %v2668 = vand.u32 2147483647, %v1967
        %vm2669 = vcmp.eq.f32.partialorder %v2668, 8.507059e+37
        %v2670 = vand.u32 %v1967, 2147483648
        %v2671 = vor.u32 1.1754944e-38, %v2670
        %v2672 = vsel %vm2669, %v2671, %v2667
        %v2673 = vrcp.pop %v1968
        %v2674 = vmul.f32 %v1968, %v2673
        %v2675 = vsub.f32 1.0, %v2674
        %v2676 = vmul.f32 %v2673, %v2675
        %v2677 = vadd.f32 %v2673, %v2676
        %vm2678 = vweird.f32 %v1968
        %vm2679 = vweird.f32 %v2673
        %vm2680 = vmor %vm2678, %vm2679
        %v2681 = vsel %vm2680, %v2673, %v2677
        %v2682 = vand.u32 2147483647, %v1968
        %vm2683 = vcmp.eq.f32.partialorder %v2682, 8.507059e+37
        %v2684 = vand.u32 %v1968, 2147483648
        %v2685 = vor.u32 1.1754944e-38, %v2684
        %v2686 = vsel %vm2683, %v2685, %v2681
        %v2687 = vrcp.pop %v1969
        %v2688 = vmul.f32 %v1969, %v2687
        %v2689 = vsub.f32 1.0, %v2688
        %v2690 = vmul.f32 %v2687, %v2689
        %v2691 = vadd.f32 %v2687, %v2690
        %vm2692 = vweird.f32 %v1969
        %vm2693 = vweird.f32 %v2687
        %vm2694 = vmor %vm2692, %vm2693
        %v2695 = vsel %vm2694, %v2687, %v2691
        %v2696 = vand.u32 2147483647, %v1969
        %vm2697 = vcmp.eq.f32.partialorder %v2696, 8.507059e+37
        %v2698 = vand.u32 %v1969, 2147483648
        %v2699 = vor.u32 1.1754944e-38, %v2698
        %v2700 = vsel %vm2697, %v2699, %v2695
        %v2701 = vrcp.pop %v1970
        %v2702 = vmul.f32 %v1970, %v2701
        %v2703 = vsub.f32 1.0, %v2702
        %v2704 = vmul.f32 %v2701, %v2703
        %v2705 = vadd.f32 %v2701, %v2704
        %vm2706 = vweird.f32 %v1970
        %vm2707 = vweird.f32 %v2701
        %vm2708 = vmor %vm2706, %vm2707
        %v2709 = vsel %vm2708, %v2701, %v2705
        %v2710 = vand.u32 2147483647, %v1970
        %vm2711 = vcmp.eq.f32.partialorder %v2710, 8.507059e+37
        %v2712 = vand.u32 %v1970, 2147483648
        %v2713 = vor.u32 1.1754944e-38, %v2712
        %v2714 = vsel %vm2711, %v2713, %v2709
        %v2715 = vrcp.pop %v1971
        %v2716 = vmul.f32 %v1971, %v2715
        %v2717 = vsub.f32 1.0, %v2716
        %v2718 = vmul.f32 %v2715, %v2717
        %v2719 = vadd.f32 %v2715, %v2718
        %vm2720 = vweird.f32 %v1971
        %vm2721 = vweird.f32 %v2715
        %vm2722 = vmor %vm2720, %vm2721
        %v2723 = vsel %vm2722, %v2715, %v2719
        %v2724 = vand.u32 2147483647, %v1971
        %vm2725 = vcmp.eq.f32.partialorder %v2724, 8.507059e+37
        %v2726 = vand.u32 %v1971, 2147483648
        %v2727 = vor.u32 1.1754944e-38, %v2726
        %v2728 = vsel %vm2725, %v2727, %v2723
        %v2729 = vrcp.pop %v1972
        %v2730 = vmul.f32 %v1972, %v2729
        %v2731 = vsub.f32 1.0, %v2730
        %v2732 = vmul.f32 %v2729, %v2731
        %v2733 = vadd.f32 %v2729, %v2732
        %vm2734 = vweird.f32 %v1972
        %vm2735 = vweird.f32 %v2729
        %vm2736 = vmor %vm2734, %vm2735
        %v2737 = vsel %vm2736, %v2729, %v2733
        %v2738 = vand.u32 2147483647, %v1972
        %vm2739 = vcmp.eq.f32.partialorder %v2738, 8.507059e+37
        %v2740 = vand.u32 %v1972, 2147483648
        %v2741 = vor.u32 1.1754944e-38, %v2740
        %v2742 = vsel %vm2739, %v2741, %v2737
        %v2743 = vrcp.pop %v1973
        %v2744 = vmul.f32 %v1973, %v2743
        %v2745 = vsub.f32 1.0, %v2744
        %v2746 = vmul.f32 %v2743, %v2745
        %v2747 = vadd.f32 %v2743, %v2746
        %vm2748 = vweird.f32 %v1973
        %vm2749 = vweird.f32 %v2743
        %vm2750 = vmor %vm2748, %vm2749
        %v2751 = vsel %vm2750, %v2743, %v2747
        %v2752 = vand.u32 2147483647, %v1973
        %vm2753 = vcmp.eq.f32.partialorder %v2752, 8.507059e+37
        %v2754 = vand.u32 %v1973, 2147483648
        %v2755 = vor.u32 1.1754944e-38, %v2754
        %v2756 = vsel %vm2753, %v2755, %v2751
        %v2757 = vrcp.pop %v1974
        %v2758 = vmul.f32 %v1974, %v2757
        %v2759 = vsub.f32 1.0, %v2758
        %v2760 = vmul.f32 %v2757, %v2759
        %v2761 = vadd.f32 %v2757, %v2760
        %vm2762 = vweird.f32 %v1974
        %vm2763 = vweird.f32 %v2757
        %vm2764 = vmor %vm2762, %vm2763
        %v2765 = vsel %vm2764, %v2757, %v2761
        %v2766 = vand.u32 2147483647, %v1974
        %vm2767 = vcmp.eq.f32.partialorder %v2766, 8.507059e+37
        %v2768 = vand.u32 %v1974, 2147483648
        %v2769 = vor.u32 1.1754944e-38, %v2768
        %v2770 = vsel %vm2767, %v2769, %v2765
        %v2771 = vrcp.pop %v1975
        %v2772 = vmul.f32 %v1975, %v2771
        %v2773 = vsub.f32 1.0, %v2772
        %v2774 = vmul.f32 %v2771, %v2773
        %v2775 = vadd.f32 %v2771, %v2774
        %vm2776 = vweird.f32 %v1975
        %vm2777 = vweird.f32 %v2771
        %vm2778 = vmor %vm2776, %vm2777
        %v2779 = vsel %vm2778, %v2771, %v2775
        %v2780 = vand.u32 2147483647, %v1975
        %vm2781 = vcmp.eq.f32.partialorder %v2780, 8.507059e+37
        %v2782 = vand.u32 %v1975, 2147483648
        %v2783 = vor.u32 1.1754944e-38, %v2782
        %v2784 = vsel %vm2781, %v2783, %v2779
        %v2785 = vrcp.pop %v1976
        %v2786 = vmul.f32 %v1976, %v2785
        %v2787 = vsub.f32 1.0, %v2786
        %v2788 = vmul.f32 %v2785, %v2787
        %v2789 = vadd.f32 %v2785, %v2788
        %vm2790 = vweird.f32 %v1976
        %vm2791 = vweird.f32 %v2785
        %vm2792 = vmor %vm2790, %vm2791
        %v2793 = vsel %vm2792, %v2785, %v2789
        %v2794 = vand.u32 2147483647, %v1976
        %vm2795 = vcmp.eq.f32.partialorder %v2794, 8.507059e+37
        %v2796 = vand.u32 %v1976, 2147483648
        %v2797 = vor.u32 1.1754944e-38, %v2796
        %v2798 = vsel %vm2795, %v2797, %v2793
        %v2799 = vrcp.pop %v1977
        %v2800 = vmul.f32 %v1977, %v2799
        %v2801 = vsub.f32 1.0, %v2800
        %v2802 = vmul.f32 %v2799, %v2801
        %v2803 = vadd.f32 %v2799, %v2802
        %vm2804 = vweird.f32 %v1977
        %vm2805 = vweird.f32 %v2799
        %vm2806 = vmor %vm2804, %vm2805
        %v2807 = vsel %vm2806, %v2799, %v2803
        %v2808 = vand.u32 2147483647, %v1977
        %vm2809 = vcmp.eq.f32.partialorder %v2808, 8.507059e+37
        %v2810 = vand.u32 %v1977, 2147483648
        %v2811 = vor.u32 1.1754944e-38, %v2810
        %v2812 = vsel %vm2809, %v2811, %v2807
        %v2813 = vrcp.pop %v1978
        %v2814 = vmul.f32 %v1978, %v2813
        %v2815 = vsub.f32 1.0, %v2814
        %v2816 = vmul.f32 %v2813, %v2815
        %v2817 = vadd.f32 %v2813, %v2816
        %vm2818 = vweird.f32 %v1978
        %vm2819 = vweird.f32 %v2813
        %vm2820 = vmor %vm2818, %vm2819
        %v2821 = vsel %vm2820, %v2813, %v2817
        %v2822 = vand.u32 2147483647, %v1978
        %vm2823 = vcmp.eq.f32.partialorder %v2822, 8.507059e+37
        %v2824 = vand.u32 %v1978, 2147483648
        %v2825 = vor.u32 1.1754944e-38, %v2824
        %v2826 = vsel %vm2823, %v2825, %v2821
        %v2827 = vrcp.pop %v1979
        %v2828 = vmul.f32 %v1979, %v2827
        %v2829 = vsub.f32 1.0, %v2828
        %v2830 = vmul.f32 %v2827, %v2829
        %v2831 = vadd.f32 %v2827, %v2830
        %vm2832 = vweird.f32 %v1979
        %vm2833 = vweird.f32 %v2827
        %vm2834 = vmor %vm2832, %vm2833
        %v2835 = vsel %vm2834, %v2827, %v2831
        %v2836 = vand.u32 2147483647, %v1979
        %vm2837 = vcmp.eq.f32.partialorder %v2836, 8.507059e+37
        %v2838 = vand.u32 %v1979, 2147483648
        %v2839 = vor.u32 1.1754944e-38, %v2838
        %v2840 = vsel %vm2837, %v2839, %v2835
        %v2841 = vrcp.pop %v1980
        %v2842 = vmul.f32 %v1980, %v2841
        %v2843 = vsub.f32 1.0, %v2842
        %v2844 = vmul.f32 %v2841, %v2843
        %v2845 = vadd.f32 %v2841, %v2844
        %vm2846 = vweird.f32 %v1980
        %vm2847 = vweird.f32 %v2841
        %vm2848 = vmor %vm2846, %vm2847
        %v2849 = vsel %vm2848, %v2841, %v2845
        %v2850 = vand.u32 2147483647, %v1980
        %vm2851 = vcmp.eq.f32.partialorder %v2850, 8.507059e+37
        %v2852 = vand.u32 %v1980, 2147483648
        %v2853 = vor.u32 1.1754944e-38, %v2852
        %v2854 = vsel %vm2851, %v2853, %v2849
        %v2855 = vrcp.pop %v1981
        %v2856 = vmul.f32 %v1981, %v2855
        %v2857 = vsub.f32 1.0, %v2856
        %v2858 = vmul.f32 %v2855, %v2857
        %v2859 = vadd.f32 %v2855, %v2858
        %vm2860 = vweird.f32 %v1981
        %vm2861 = vweird.f32 %v2855
        %vm2862 = vmor %vm2860, %vm2861
        %v2863 = vsel %vm2862, %v2855, %v2859
        %v2864 = vand.u32 2147483647, %v1981
        %vm2865 = vcmp.eq.f32.partialorder %v2864, 8.507059e+37
        %v2866 = vand.u32 %v1981, 2147483648
        %v2867 = vor.u32 1.1754944e-38, %v2866
        %v2868 = vsel %vm2865, %v2867, %v2863
        %v2869 = vrcp.pop %v1982
        %v2870 = vmul.f32 %v1982, %v2869
        %v2871 = vsub.f32 1.0, %v2870
        %v2872 = vmul.f32 %v2869, %v2871
        %v2873 = vadd.f32 %v2869, %v2872
        %vm2874 = vweird.f32 %v1982
        %vm2875 = vweird.f32 %v2869
        %vm2876 = vmor %vm2874, %vm2875
        %v2877 = vsel %vm2876, %v2869, %v2873
        %v2878 = vand.u32 2147483647, %v1982
        %vm2879 = vcmp.eq.f32.partialorder %v2878, 8.507059e+37
        %v2880 = vand.u32 %v1982, 2147483648
        %v2881 = vor.u32 1.1754944e-38, %v2880
        %v2882 = vsel %vm2879, %v2881, %v2877
        %v2883 = vmul.f32 %v2340, %v2448
        %v2884 = vmul.f32 %v2343, %v2462
        %v2885 = vmul.f32 %v2346, %v2476
        %v2886 = vmul.f32 %v2349, %v2490
        %v2887 = vmul.f32 %v2352, %v2504
        %v2888 = vmul.f32 %v2355, %v2518
        %v2889 = vmul.f32 %v2358, %v2532
        %v2890 = vmul.f32 %v2361, %v2546
        %v2891 = vmul.f32 %v2364, %v2560
        %v2892 = vmul.f32 %v2367, %v2574
        %v2893 = vmul.f32 %v2370, %v2588
        %v2894 = vmul.f32 %v2373, %v2602
        %v2895 = vmul.f32 %v2376, %v2616
        %v2896 = vmul.f32 %v2379, %v2630
        %v2897 = vmul.f32 %v2382, %v2644
        %v2898 = vmul.f32 %v2385, %v2658
        %v2899 = vmul.f32 %v2388, %v2672
        %v2900 = vmul.f32 %v2391, %v2686
        %v2901 = vmul.f32 %v2394, %v2700
        %v2902 = vmul.f32 %v2397, %v2714
        %v2903 = vmul.f32 %v2400, %v2728
        %v2904 = vmul.f32 %v2403, %v2742
        %v2905 = vmul.f32 %v2406, %v2756
        %v2906 = vmul.f32 %v2409, %v2770
        %v2907 = vmul.f32 %v2412, %v2784
        %v2908 = vmul.f32 %v2415, %v2798
        %v2909 = vmul.f32 %v2418, %v2812
        %v2910 = vmul.f32 %v2421, %v2826
        %v2911 = vmul.f32 %v2424, %v2840
        %v2912 = vmul.f32 %v2427, %v2854
        %v2913 = vmul.f32 %v2430, %v2868
        %v2914 = vmul.f32 %v2433, %v2882
        %vm2915 = vcmask 523264
        %v2917 = vsel %vm2915, %v395, 0
        %v2920 = vsel %vm2915, %v396, 0
        %v2923 = vsel %vm2915, %v397, 0
        %v2926 = vsel %vm2915, %v398, 0
        %v2929 = vsel %vm2915, %v399, 0
        %v2932 = vsel %vm2915, %v400, 0
        %v2935 = vsel %vm2915, %v401, 0
        %v2938 = vsel %vm2915, %v402, 0
        %v2941 = vsel %vm2915, %v1631, 0
        %v2944 = vsel %vm2915, %v1632, 0
        %v2947 = vsel %vm2915, %v1633, 0
        %v2950 = vsel %vm2915, %v1634, 0
        %v2953 = vsel %vm2915, %v1635, 0
        %v2956 = vsel %vm2915, %v1636, 0
        %v2959 = vsel %vm2915, %v1637, 0
        %v2962 = vsel %vm2915, %v1638, 0
        %v2965 = vsel %vm2915, %v1639, 0
        %v2968 = vsel %vm2915, %v1640, 0
        %v2971 = vsel %vm2915, %v1641, 0
        %v2974 = vsel %vm2915, %v1642, 0
        %v2977 = vsel %vm2915, %v1643, 0
        %v2980 = vsel %vm2915, %v1644, 0
        %v2983 = vsel %vm2915, %v1645, 0
        %v2986 = vsel %vm2915, %v1646, 0
        %v2989 = vsel %vm2915, %v1647, 0
        %v2992 = vsel %vm2915, %v1648, 0
        %v2995 = vsel %vm2915, %v1649, 0
        %v2998 = vsel %vm2915, %v1650, 0
        %v3001 = vsel %vm2915, %v1651, 0
        %v3004 = vsel %vm2915, %v1652, 0
        %v3007 = vsel %vm2915, %v1653, 0
        %v3010 = vsel %vm2915, %v1654, 0
        %v3013 = vsel %vm2915, %v1655, 0
        %v3016 = vsel %vm2915, %v1656, 0
        %v3019 = vsel %vm2915, %v1657, 0
        %v3022 = vsel %vm2915, %v1658, 0
        %v3025 = vsel %vm2915, %v1659, 0
        %v3028 = vsel %vm2915, %v1660, 0
        %v3031 = vsel %vm2915, %v1661, 0
        %v3034 = vsel %vm2915, %v1662, 0
        %3036 = vmatpush.xpose.msra.mxu0 %v2986
        %3037 = vmatpush.xpose.msra.mxu0 %v2983
        %3038 = vmatpush.xpose.msra.mxu0 %v2980
        %3039 = vmatpush.xpose.msra.mxu0 %v2977
        %3040 = vmatpush.xpose.msra.mxu0 %v2974
        %3041 = vmatpush.xpose.msra.mxu0 %v2971
        %3042 = vmatpush.xpose.msra.mxu0 %v2968
        %3043 = vmatpush.xpose.msra.mxu0 %v2965
        %3044 = vmatpush.xpose.msra.mxu0 %v2962
        %3045 = vmatpush.xpose.msra.mxu0 %v2959
        %3046 = vmatpush.xpose.msra.mxu0 %v2956
        %3047 = vmatpush.xpose.msra.mxu0 %v2953
        %3048 = vmatpush.xpose.msra.mxu0 %v2950
        %3049 = vmatpush.xpose.msra.mxu0 %v2947
        %3050 = vmatpush.xpose.msra.mxu0 %v2944
        %3051 = vmatpush.xpose.msra.mxu0 %v2941
        %3052 = vmatmul.f32.gmra.mxu0 %v2917
        %v3053 = vpop.f32.mrf.mxu0
        %v3054 = vadd.f32 0.0, %v3053
        %3055 = vmatmul.f32.gmra.mxu0 %v2920
        %v3056 = vpop.f32.mrf.mxu0
        %v3057 = vadd.f32 0.0, %v3056
        %3058 = vmatmul.f32.gmra.mxu0 %v2923
        %v3059 = vpop.f32.mrf.mxu0
        %v3060 = vadd.f32 0.0, %v3059
        %3061 = vmatmul.f32.gmra.mxu0 %v2926
        %v3062 = vpop.f32.mrf.mxu0
        %v3063 = vadd.f32 0.0, %v3062
        %3064 = vmatmul.f32.gmra.mxu0 %v2929
        %v3065 = vpop.f32.mrf.mxu0
        %v3066 = vadd.f32 0.0, %v3065
        %3067 = vmatmul.f32.gmra.mxu0 %v2932
        %v3068 = vpop.f32.mrf.mxu0
        %v3069 = vadd.f32 0.0, %v3068
        %3070 = vmatmul.f32.gmra.mxu0 %v2935
        %v3071 = vpop.f32.mrf.mxu0
        %v3072 = vadd.f32 0.0, %v3071
        %3073 = vmatmul.f32.gmra.mxu0 %v2938
        %v3074 = vpop.f32.mrf.mxu0
        %v3075 = vadd.f32 0.0, %v3074
        %3076 = vdwg.mxu0
        %3077 = vmatpush.xpose.msra.mxu0 %v3034
        %3078 = vmatpush.xpose.msra.mxu0 %v3031
        %3079 = vmatpush.xpose.msra.mxu0 %v3028
        %3080 = vmatpush.xpose.msra.mxu0 %v3025
        %3081 = vmatpush.xpose.msra.mxu0 %v3022
        %3082 = vmatpush.xpose.msra.mxu0 %v3019
        %3083 = vmatpush.xpose.msra.mxu0 %v3016
        %3084 = vmatpush.xpose.msra.mxu0 %v3013
        %3085 = vmatpush.xpose.msra.mxu0 %v3010
        %3086 = vmatpush.xpose.msra.mxu0 %v3007
        %3087 = vmatpush.xpose.msra.mxu0 %v3004
        %3088 = vmatpush.xpose.msra.mxu0 %v3001
        %3089 = vmatpush.xpose.msra.mxu0 %v2998
        %3090 = vmatpush.xpose.msra.mxu0 %v2995
        %3091 = vmatpush.xpose.msra.mxu0 %v2992
        %3092 = vmatpush.xpose.msra.mxu0 %v2989
        %3093 = vmatmul.f32.gmra.mxu0 %v2917
        %v3094 = vpop.f32.mrf.mxu0
        %v3095 = vadd.f32 0.0, %v3094
        %3096 = vmatmul.f32.gmra.mxu0 %v2920
        %v3097 = vpop.f32.mrf.mxu0
        %v3098 = vadd.f32 0.0, %v3097
        %3099 = vmatmul.f32.gmra.mxu0 %v2923
        %v3100 = vpop.f32.mrf.mxu0
        %v3101 = vadd.f32 0.0, %v3100
        %3102 = vmatmul.f32.gmra.mxu0 %v2926
        %v3103 = vpop.f32.mrf.mxu0
        %v3104 = vadd.f32 0.0, %v3103
        %3105 = vmatmul.f32.gmra.mxu0 %v2929
        %v3106 = vpop.f32.mrf.mxu0
        %v3107 = vadd.f32 0.0, %v3106
        %3108 = vmatmul.f32.gmra.mxu0 %v2932
        %v3109 = vpop.f32.mrf.mxu0
        %v3110 = vadd.f32 0.0, %v3109
        %3111 = vmatmul.f32.gmra.mxu0 %v2935
        %v3112 = vpop.f32.mrf.mxu0
        %v3113 = vadd.f32 0.0, %v3112
        %3114 = vmatmul.f32.gmra.mxu0 %v2938
        %v3115 = vpop.f32.mrf.mxu0
        %v3116 = vadd.f32 0.0, %v3115
        %3117 = vdwg.mxu0
        %v3118 = vtanh.pop %v3054
        %v3119 = vtanh.pop %v3095
        %v3120 = vtanh.pop %v3057
        %v3121 = vtanh.pop %v3098
        %v3122 = vtanh.pop %v3060
        %v3123 = vtanh.pop %v3101
        %v3124 = vtanh.pop %v3063
        %v3125 = vtanh.pop %v3104
        %v3126 = vtanh.pop %v3066
        %v3127 = vtanh.pop %v3107
        %v3128 = vtanh.pop %v3069
        %v3129 = vtanh.pop %v3110
        %v3130 = vtanh.pop %v3072
        %v3131 = vtanh.pop %v3113
        %v3132 = vtanh.pop %v3075
        %v3133 = vtanh.pop %v3116
        %3134 = vst [vmem:[%s319] sm:$0xff] %v3118
        %3135 = vst [vmem:[%s319 + $0x8] sm:$0xff] %v3119
        %3136 = vst [vmem:[%s319 + $0x10] sm:$0xff] %v3120
        %3137 = vst [vmem:[%s319 + $0x18] sm:$0xff] %v3121
        %3138 = vst [vmem:[%s319 + $0x20] sm:$0xff] %v3122
        %3139 = vst [vmem:[%s319 + $0x28] sm:$0xff] %v3123
        %3140 = vst [vmem:[%s319 + $0x30] sm:$0xff] %v3124
        %3141 = vst [vmem:[%s319 + $0x38] sm:$0xff] %v3125
        %3142 = vst [vmem:[%s319 + $0x40] sm:$0xff] %v3126
        %3143 = vst [vmem:[%s319 + $0x48] sm:$0xff] %v3127
        %3144 = vst [vmem:[%s319 + $0x50] sm:$0xff] %v3128
        %3145 = vst [vmem:[%s319 + $0x58] sm:$0xff] %v3129
        %3146 = vst [vmem:[%s319 + $0x60] sm:$0xff] %v3130
        %3147 = vst [vmem:[%s319 + $0x68] sm:$0xff] %v3131
        %3148 = vst [vmem:[%s319 + $0x70] sm:$0xff] %v3132
        %3149 = vst [vmem:[%s319 + $0x78] sm:$0xff] %v3133
        %v3151 = vsel %vm2915, %v403, 0
        %v3154 = vsel %vm2915, %v404, 0
        %v3157 = vsel %vm2915, %v405, 0
        %v3160 = vsel %vm2915, %v406, 0
        %v3163 = vsel %vm2915, %v407, 0
        %v3166 = vsel %vm2915, %v408, 0
        %v3169 = vsel %vm2915, %v409, 0
        %v3172 = vsel %vm2915, %v410, 0
        %v3175 = vsel %vm2915, %v2883, 0
        %v3178 = vsel %vm2915, %v2884, 0
        %v3181 = vsel %vm2915, %v2885, 0
        %v3184 = vsel %vm2915, %v2886, 0
        %v3187 = vsel %vm2915, %v2887, 0
        %v3190 = vsel %vm2915, %v2888, 0
        %v3193 = vsel %vm2915, %v2889, 0
        %v3196 = vsel %vm2915, %v2890, 0
        %v3199 = vsel %vm2915, %v2891, 0
        %v3202 = vsel %vm2915, %v2892, 0
        %v3205 = vsel %vm2915, %v2893, 0
        %v3208 = vsel %vm2915, %v2894, 0
        %v3211 = vsel %vm2915, %v2895, 0
        %v3214 = vsel %vm2915, %v2896, 0
        %v3217 = vsel %vm2915, %v2897, 0
        %v3220 = vsel %vm2915, %v2898, 0
        %v3223 = vsel %vm2915, %v2899, 0
        %v3226 = vsel %vm2915, %v2900, 0
        %v3229 = vsel %vm2915, %v2901, 0
        %v3232 = vsel %vm2915, %v2902, 0
        %v3235 = vsel %vm2915, %v2903, 0
        %v3238 = vsel %vm2915, %v2904, 0
        %v3241 = vsel %vm2915, %v2905, 0
        %v3244 = vsel %vm2915, %v2906, 0
        %v3247 = vsel %vm2915, %v2907, 0
        %v3250 = vsel %vm2915, %v2908, 0
        %v3253 = vsel %vm2915, %v2909, 0
        %v3256 = vsel %vm2915, %v2910, 0
        %v3259 = vsel %vm2915, %v2911, 0
        %v3262 = vsel %vm2915, %v2912, 0
        %v3265 = vsel %vm2915, %v2913, 0
        %v3268 = vsel %vm2915, %v2914, 0
        %3270 = vmatpush.xpose.msra.mxu0 %v3220
        %3271 = vmatpush.xpose.msra.mxu0 %v3217
        %3272 = vmatpush.xpose.msra.mxu0 %v3214
        %3273 = vmatpush.xpose.msra.mxu0 %v3211
        %3274 = vmatpush.xpose.msra.mxu0 %v3208
        %3275 = vmatpush.xpose.msra.mxu0 %v3205
        %3276 = vmatpush.xpose.msra.mxu0 %v3202
        %3277 = vmatpush.xpose.msra.mxu0 %v3199
        %3278 = vmatpush.xpose.msra.mxu0 %v3196
        %3279 = vmatpush.xpose.msra.mxu0 %v3193
        %3280 = vmatpush.xpose.msra.mxu0 %v3190
        %3281 = vmatpush.xpose.msra.mxu0 %v3187
        %3282 = vmatpush.xpose.msra.mxu0 %v3184
        %3283 = vmatpush.xpose.msra.mxu0 %v3181
        %3284 = vmatpush.xpose.msra.mxu0 %v3178
        %3285 = vmatpush.xpose.msra.mxu0 %v3175
        %3286 = vmatmul.f32.gmra.mxu0 %v3151
        %v3287 = vpop.f32.mrf.mxu0
        %v3288 = vadd.f32 0.0, %v3287
        %3289 = vmatmul.f32.gmra.mxu0 %v3154
        %v3290 = vpop.f32.mrf.mxu0
        %v3291 = vadd.f32 0.0, %v3290
        %3292 = vmatmul.f32.gmra.mxu0 %v3157
        %v3293 = vpop.f32.mrf.mxu0
        %v3294 = vadd.f32 0.0, %v3293
        %3295 = vmatmul.f32.gmra.mxu0 %v3160
        %v3296 = vpop.f32.mrf.mxu0
        %v3297 = vadd.f32 0.0, %v3296
        %3298 = vmatmul.f32.gmra.mxu0 %v3163
        %v3299 = vpop.f32.mrf.mxu0
        %v3300 = vadd.f32 0.0, %v3299
        %3301 = vmatmul.f32.gmra.mxu0 %v3166
        %v3302 = vpop.f32.mrf.mxu0
        %v3303 = vadd.f32 0.0, %v3302
        %3304 = vmatmul.f32.gmra.mxu0 %v3169
        %v3305 = vpop.f32.mrf.mxu0
        %v3306 = vadd.f32 0.0, %v3305
        %3307 = vmatmul.f32.gmra.mxu0 %v3172
        %v3308 = vpop.f32.mrf.mxu0
        %v3309 = vadd.f32 0.0, %v3308
        %3310 = vdwg.mxu0
        %3311 = vmatpush.xpose.msra.mxu0 %v3268
        %3312 = vmatpush.xpose.msra.mxu0 %v3265
        %3313 = vmatpush.xpose.msra.mxu0 %v3262
        %3314 = vmatpush.xpose.msra.mxu0 %v3259
        %3315 = vmatpush.xpose.msra.mxu0 %v3256
        %3316 = vmatpush.xpose.msra.mxu0 %v3253
        %3317 = vmatpush.xpose.msra.mxu0 %v3250
        %3318 = vmatpush.xpose.msra.mxu0 %v3247
        %3319 = vmatpush.xpose.msra.mxu0 %v3244
        %3320 = vmatpush.xpose.msra.mxu0 %v3241
        %3321 = vmatpush.xpose.msra.mxu0 %v3238
        %3322 = vmatpush.xpose.msra.mxu0 %v3235
        %3323 = vmatpush.xpose.msra.mxu0 %v3232
        %3324 = vmatpush.xpose.msra.mxu0 %v3229
        %3325 = vmatpush.xpose.msra.mxu0 %v3226
        %3326 = vmatpush.xpose.msra.mxu0 %v3223
        %3327 = vmatmul.f32.gmra.mxu0 %v3151
        %v3328 = vpop.f32.mrf.mxu0
        %v3329 = vadd.f32 0.0, %v3328
        %3330 = vmatmul.f32.gmra.mxu0 %v3154
        %v3331 = vpop.f32.mrf.mxu0
        %v3332 = vadd.f32 0.0, %v3331
        %3333 = vmatmul.f32.gmra.mxu0 %v3157
        %v3334 = vpop.f32.mrf.mxu0
        %v3335 = vadd.f32 0.0, %v3334
        %3336 = vmatmul.f32.gmra.mxu0 %v3160
        %v3337 = vpop.f32.mrf.mxu0
        %v3338 = vadd.f32 0.0, %v3337
        %3339 = vmatmul.f32.gmra.mxu0 %v3163
        %v3340 = vpop.f32.mrf.mxu0
        %v3341 = vadd.f32 0.0, %v3340
        %3342 = vmatmul.f32.gmra.mxu0 %v3166
        %v3343 = vpop.f32.mrf.mxu0
        %v3344 = vadd.f32 0.0, %v3343
        %3345 = vmatmul.f32.gmra.mxu0 %v3169
        %v3346 = vpop.f32.mrf.mxu0
        %v3347 = vadd.f32 0.0, %v3346
        %3348 = vmatmul.f32.gmra.mxu0 %v3172
        %v3349 = vpop.f32.mrf.mxu0
        %v3350 = vadd.f32 0.0, %v3349
        %3351 = vdwg.mxu0
        %v3352 = vtanh.pop %v3288
        %v3353 = vtanh.pop %v3329
        %v3354 = vtanh.pop %v3291
        %v3355 = vtanh.pop %v3332
        %v3356 = vtanh.pop %v3294
        %v3357 = vtanh.pop %v3335
        %v3358 = vtanh.pop %v3297
        %v3359 = vtanh.pop %v3338
        %v3360 = vtanh.pop %v3300
        %v3361 = vtanh.pop %v3341
        %v3362 = vtanh.pop %v3303
        %v3363 = vtanh.pop %v3344
        %v3364 = vtanh.pop %v3306
        %v3365 = vtanh.pop %v3347
        %v3366 = vtanh.pop %v3309
        %v3367 = vtanh.pop %v3350
        %3368 = vst [vmem:[%s326] sm:$0xff] %v3352
        %3369 = vst [vmem:[%s326 + $0x8] sm:$0xff] %v3353
        %3370 = vst [vmem:[%s326 + $0x10] sm:$0xff] %v3354
        %3371 = vst [vmem:[%s326 + $0x18] sm:$0xff] %v3355
        %3372 = vst [vmem:[%s326 + $0x20] sm:$0xff] %v3356
        %3373 = vst [vmem:[%s326 + $0x28] sm:$0xff] %v3357
        %3374 = vst [vmem:[%s326 + $0x30] sm:$0xff] %v3358
        %3375 = vst [vmem:[%s326 + $0x38] sm:$0xff] %v3359
        %3376 = vst [vmem:[%s326 + $0x40] sm:$0xff] %v3360
        %3377 = vst [vmem:[%s326 + $0x48] sm:$0xff] %v3361
        %3378 = vst [vmem:[%s326 + $0x50] sm:$0xff] %v3362
        %3379 = vst [vmem:[%s326 + $0x58] sm:$0xff] %v3363
        %3380 = vst [vmem:[%s326 + $0x60] sm:$0xff] %v3364
        %3381 = vst [vmem:[%s326 + $0x68] sm:$0xff] %v3365
        %3382 = vst [vmem:[%s326 + $0x70] sm:$0xff] %v3366
        %3383 = vst [vmem:[%s326 + $0x78] sm:$0xff] %v3367
        %s3384 = sand.u32 %s153, 1
        %s3385 = scalar_lea.sflag [#allocation4], %s3384
        %s3386 = sand.u32 %s153, 1
        %s3387 = smul.addr %s3386, 128
        %s3388 = scalar_lea.vmem [#allocation7], %s3387
        %s3389 = sand.u32 %s179, 1
        %s3390 = scalar_lea.sflag [#allocation9], %s3389
        %s3391 = sand.u32 %s179, 1
        %s3392 = smul.addr %s3391, 128
        %s3393 = scalar_lea.vmem [#allocation8], %s3392
        // Predicated region
        $region49: #{tpu_custom_call.1} parent=39 // pred_check
          %p3394 = pneg %p163
        $region50: #{tpu_custom_call.1} parent=39 // pred_check_branch
          %3396 = sbr.rel (%p3394) target = $region52
        $region51: #{tpu_custom_call.1} parent=39 // pred_region
          %s3397 = smul.u32 2, %s30
          %3399 = vsyncadd %s3385, 0
          %s3400 = smul.addr %s3397, 8
          %s3401 = scalar_lea.hbm %s5, %s3400
          %s3402 = sshll.u32 %s3388, 4
          %s3403 = int_to_ptr.vmem [resolvable:$true] %s3402
          %s3404 = sshll.u32 %s3401, 4
          %s3405 = int_to_ptr.hbm [resolvable:$true] %s3404
          %3410 = dma.vmem_to_hbm [thread:$0]  %s3403, 2048, %s3405, %s3385, 256, 512, 16
        $region52: #{tpu_custom_call.1} parent=39 // pred_fallthru
          _
        // Predicated region
        $region53: #{tpu_custom_call.1} parent=39 // pred_check
          %p3411 = pneg %p189
        $region54: #{tpu_custom_call.1} parent=39 // pred_check_branch
          %3413 = sbr.rel (%p3411) target = $region56
        $region55: #{tpu_custom_call.1} parent=39 // pred_region
          %s3414 = smul.u32 2, %s30
          %3416 = vsyncadd %s3390, 0
          %s3417 = smul.addr %s3414, 8
          %s3418 = scalar_lea.hbm %s6, %s3417
          %s3419 = sshll.u32 %s3393, 4
          %s3420 = int_to_ptr.vmem [resolvable:$true] %s3419
          %s3421 = sshll.u32 %s3418, 4
          %s3422 = int_to_ptr.hbm [resolvable:$true] %s3421
          %3427 = dma.vmem_to_hbm [thread:$0]  %s3420, 2048, %s3422, %s3390, 256, 512, 16
        $region56: #{tpu_custom_call.1} parent=39 // pred_fallthru
          _
      $region40: #{tpu_custom_call.1} parent=5 // pred_fallthru
        _
      %p3428 = scmp.le.s32.totalorder 2, %s25
      // Predicated region
      $region57: #{tpu_custom_call.1} parent=5 // pred_check
        %p3429 = pneg %p3428
      $region58: #{tpu_custom_call.1} parent=5 // pred_check_branch
        %3431 = sbr.rel (%p3429) target = $region60
      $region59: #{tpu_custom_call.1} parent=5 // pred_region
        %s3432 = ssub.s32 %s25, 2
        // Predicated region
        $region61: #{tpu_custom_call.1} parent=59 // pred_check
          %p3433 = pneg %p169
        $region62: #{tpu_custom_call.1} parent=59 // pred_check_branch
          %3435 = sbr.rel (%p3433) target = $region64
        $region63: #{tpu_custom_call.1} parent=59 // pred_region
          %s3436 = sand.u32 %s154, 1
          %s3437 = scalar_lea.sflag [#allocation4], %s3436
          %s3438 = sand.u32 %s154, 1
          %s3439 = smul.addr %s3438, 128
          %s3440 = scalar_lea.vmem [#allocation7], %s3439
          %3442 = dma.done %s3437, 2048
        $region64: #{tpu_custom_call.1} parent=59 // pred_fallthru
          _
        // Predicated region
        $region65: #{tpu_custom_call.1} parent=59 // pred_check
          %p3443 = pneg %p195
        $region66: #{tpu_custom_call.1} parent=59 // pred_check_branch
          %3445 = sbr.rel (%p3443) target = $region68
        $region67: #{tpu_custom_call.1} parent=59 // pred_region
          %s3446 = sand.u32 %s180, 1
          %s3447 = scalar_lea.sflag [#allocation9], %s3446
          %s3448 = sand.u32 %s180, 1
          %s3449 = smul.addr %s3448, 128
          %s3450 = scalar_lea.vmem [#allocation8], %s3449
          %3452 = dma.done %s3447, 2048
        $region68: #{tpu_custom_call.1} parent=59 // pred_fallthru
          _
      $region60: #{tpu_custom_call.1} parent=5 // pred_fallthru
        _
    $region6: #{tpu_custom_call.1} parent=1 // loop_footer
      %s29 = sadd.s32 1, %s25
    $region7: #{tpu_custom_call.1} parent=1 // loop_footer_branch
      %24 = sbr.rel target = $region3
    $region8: #{tpu_custom_call.1} parent=1 // loop_exit
      _
    %3453 = vsyncpa [#allocation3], 1
    %s3454 = scalar_lea.sflag [#allocation3], 1
    %3455 = vsyncpa %s3454, 1
    %3456 = vsyncpa [#allocation6], 1
    %s3457 = scalar_lea.sflag [#allocation6], 1
    %3458 = vsyncpa %s3457, 1
    %3459 = vsyncpa [#allocation4], 1
    %s3460 = scalar_lea.sflag [#allocation4], 1
    %3461 = vsyncpa %s3460, 1
    %3462 = vsyncpa [#allocation9], 1
    %s3463 = scalar_lea.sflag [#allocation9], 1
    %3464 = vsyncpa %s3463, 1

</llo_original>
